<compile_context>
chip_gen: v7x
topology: tpu7x:2x2x1
jax: 0.10.0
libtpu: 0.0.40
codegen_flags: <defaults>
</compile_context>

<pallas_src>
import functools
import numpy as np
import jax
import jax.numpy as jnp
from jax import lax
from jax.experimental import pallas as pl
from jax.experimental.pallas import tpu as pltpu


def _round_up(x, m):
    return (x + m - 1) // m * m


def _yolo_loss_kernel(nobj_ref, pred_ref, trow_ref, tcol_ref, out_ref, acc_ref,
                      *, precise_iou):
    """One (row-tile i, col-tile j) grid step.

    nobj_ref : SMEM (1,) int32   number of object cells (scalar prefetch)
    pred_ref : (TM, 4)  prediction boxes (cx, cy, w, h), compacted (objects first)
    trow_ref : (TM, 4)  target boxes for the same rows (mask + O(K) losses)
    tcol_ref : (4, TN)  target boxes, transposed (lane-dense), column tile j
    out_ref  : (1, 8, 128) per-row-tile partial sums, written on the last j:
               lane 0 = sum(iou), lane 1 = center_loss, lane 2 = box_loss
    acc_ref  : SMEM (4,) f32     scalar accumulators carried across j
    """
    i = pl.program_id(0)
    j = pl.program_id(1)
    nj = pl.num_programs(1)
    tm = pred_ref.shape[0]
    tn = tcol_ref.shape[1]
    n_obj = nobj_ref[0]

    row_active = (i * tm) < n_obj        # this row tile contains object cells
    col_active = (j * tn) < n_obj        # this column tile contains object cells

    @pl.when(j == 0)
    def _():
        acc_ref[0] = jnp.float32(0.0)
        acc_ref[1] = jnp.float32(0.0)
        acc_ref[2] = jnp.float32(0.0)
        acc_ref[3] = jnp.float32(0.0)

    # O(K) per-row terms: only once per row tile, only if the tile holds objects.
    @pl.when(jnp.logical_and(j == 0, row_active))
    def _():
        pred = pred_ref[...]
        trow = trow_ref[...]
        m_col = trow[:, 3:4] > 0.0                       # obj_mask = target h > 0
        m_f = m_col.astype(jnp.float32)
        d_cx = pred[:, 0:1] - trow[:, 0:1]
        d_cy = pred[:, 1:2] - trow[:, 1:2]
        center_s = jnp.sum(m_f * (d_cx * d_cx + d_cy * d_cy))
        # mask before sqrt so non-object (possibly negative) preds cannot NaN
        dw = (jnp.sqrt(jnp.where(m_col, pred[:, 2:3], 0.0))
              - jnp.sqrt(jnp.where(m_col, trow[:, 2:3], 0.0)))
        dh = (jnp.sqrt(jnp.where(m_col, pred[:, 3:4], 0.0))
              - jnp.sqrt(jnp.where(m_col, trow[:, 3:4], 0.0)))
        box_s = jnp.sum(dw * dw + dh * dh)
        acc_ref[1] = center_s
        acc_ref[2] = box_s

    # Pairwise IoU tile — skipped entirely when either side has no objects.
    @pl.when(jnp.logical_and(row_active, col_active))
    def _():
        pred = pred_ref[...]
        trow = trow_ref[...]
        tcol = tcol_ref[...]

        m_col = trow[:, 3:4] > 0.0                       # (TM, 1)
        m_row = tcol[3:4, :] > 0.0                       # (1, TN)
        pair_mask = jnp.logical_and(m_col, m_row)        # (TM, TN)

        p_cx, p_cy = pred[:, 0:1], pred[:, 1:2]
        p_w, p_h = pred[:, 2:3], pred[:, 3:4]
        q_cx, q_cy = tcol[0:1, :], tcol[1:2, :]
        q_w, q_h = tcol[2:3, :], tcol[3:4, :]

        # torchvision box_iou semantics on cxcywh -> xyxy boxes
        p_xmin, p_xmax = p_cx - 0.5 * p_w, p_cx + 0.5 * p_w     # (TM, 1)
        p_ymin, p_ymax = p_cy - 0.5 * p_h, p_cy + 0.5 * p_h
        q_xmin, q_xmax = q_cx - 0.5 * q_w, q_cx + 0.5 * q_w     # (1, TN)
        q_ymin, q_ymax = q_cy - 0.5 * q_h, q_cy + 0.5 * q_h

        iw = jnp.maximum(jnp.minimum(p_xmax, q_xmax) - jnp.maximum(p_xmin, q_xmin), 0.0)
        ih = jnp.maximum(jnp.minimum(p_ymax, q_ymax) - jnp.maximum(p_ymin, q_ymin), 0.0)
        inter = iw * ih                                          # (TM, TN)
        # maximum() keeps the denominator safe (masked / degenerate pairs give
        # inter == 0, so iou stays exactly 0 — no NaN, no extra select)
        union = jnp.maximum(p_w * p_h + q_w * q_h - inter, 1e-12)

        inv = pl.reciprocal(union, approx=True)                  # EUP slot
        if precise_iou:
            inv = inv * (2.0 - union * inv)                      # optional Newton step
        iou = jnp.where(pair_mask, inter * inv, 0.0)
        acc_ref[0] = acc_ref[0] + jnp.sum(iou)

    # Final lane-dense write, once per row tile.
    @pl.when(j == nj - 1)
    def _():
        lane = lax.broadcasted_iota(jnp.int32, (1, 8, 128), 2)
        out_ref[...] = (jnp.where(lane == 0, acc_ref[0], 0.0)
                        + jnp.where(lane == 1, acc_ref[1], 0.0)
                        + jnp.where(lane == 2, acc_ref[2], 0.0))


def yolo_loss(predictions, target, l_center=2.0, l_dim=10.0, l_iou=10.0,
              l_noobj=0.0, *, tile_m=512, tile_n=1024, precise_iou=False):
    """JAX/Pallas equivalent of YOLOLoss.forward (l_noobj is unused, as in torch)."""
    del l_noobj
    # TODO(synk): the debug `print(box_predictions[0], box_targets[0])` side
    # effect from the PyTorch forward is intentionally omitted.
    batch = predictions.shape[0]
    pred = predictions[..., :4].reshape(-1, 4).astype(jnp.float32)   # (K, 4)
    tgt = target[..., :4].reshape(-1, 4).astype(jnp.float32)         # (K, 4)
    k = pred.shape[0]

    # --- compaction: move object cells (target h > 0) to the front -----------
    # The pairwise IoU sum and the paired center/box sums are permutation
    # invariant, so reordering both tensors with the same permutation is exact.
    mask = tgt[:, 3] > 0.0
    n_obj = jnp.sum(mask.astype(jnp.int32)).astype(jnp.int32)
    order = jnp.argsort((~mask).astype(jnp.int32))                   # objects first
    pred = jnp.take(pred, order, axis=0)
    tgt = jnp.take(tgt, order, axis=0)

    # --- tile sizes -----------------------------------------------------------
    tm = min(tile_m, _round_up(k, 8))
    km = _round_up(k, tm)
    if km // tm < 2:
        # keep at least two row tiles so the "parallel" axis feeds both v7x cores
        tm_half = _round_up(max(tm // 2, 8), 8)
        if tm_half < tm:
            tm = tm_half
            km = _round_up(k, tm)
    tn = min(tile_n, _round_up(k, 128))
    kn = _round_up(k, tn)

    # Zero padding is safe: padded cells have target h == 0 -> masked out.
    pred_rows = jnp.pad(pred, ((0, km - k), (0, 0)))                 # (km, 4)
    tgt_rows = jnp.pad(tgt, ((0, km - k), (0, 0)))                   # (km, 4)
    tgt_cols = jnp.transpose(jnp.pad(tgt, ((0, kn - k), (0, 0))), (1, 0))  # (4, kn)

    grid = (km // tm, kn // tn)
    num_i = grid[0]

    cost = pl.CostEstimate(
        flops=int(20 * km * kn + 12 * km),
        transcendentals=int(km * kn + 4 * km),
        # tgt_cols is re-streamed once per row tile
        bytes_accessed=int(2 * km * 16 + num_i * kn * 16 + num_i * 8 * 128 * 4),
    )

    partials = pl.pallas_call(
        functools.partial(_yolo_loss_kernel, precise_iou=precise_iou),
        out_shape=jax.ShapeDtypeStruct((num_i, 8, 128), jnp.float32),
        grid_spec=pltpu.PrefetchScalarGridSpec(
            num_scalar_prefetch=1,
            grid=grid,
            in_specs=[
                pl.BlockSpec((tm, 4), lambda i, j, n: (i, 0)),   # pred rows (resident over j)
                pl.BlockSpec((tm, 4), lambda i, j, n: (i, 0)),   # target rows (resident over j)
                pl.BlockSpec((4, tn), lambda i, j, n: (0, j)),   # target cols (lane-dense)
            ],
            out_specs=pl.BlockSpec((1, 8, 128), lambda i, j, n: (i, 0, 0)),
            scratch_shapes=[pltpu.SMEM((4,), jnp.float32)],
        ),
        compiler_params=pltpu.CompilerParams(
            dimension_semantics=("parallel", "arbitrary"),
            vmem_limit_bytes=48 * 1024 * 1024),
        cost_estimate=cost,
    )(jnp.reshape(n_obj, (1,)), pred_rows, tgt_rows, tgt_cols)

    sums = jnp.sum(partials[:, 0, :], axis=0)                 # (128,)
    iou_sum, center_sum, box_sum = sums[0], sums[1], sums[2]
    n_obj_f = n_obj.astype(jnp.float32)
    # NOTE: if no target cell has h > 0, n_obj == 0 and iou_loss is NaN — the
    # PyTorch reference is equally undefined in that case (documented precondition).
    iou_loss = 1.0 - iou_sum / (n_obj_f * n_obj_f)
    total = (l_center * center_sum + l_dim * box_sum + l_iou * iou_loss) / batch
    return total


def _numpy_reference(predictions, target, l_center=2.0, l_dim=10.0, l_iou=10.0):
    """Mirrors the PyTorch masked-gather semantics exactly (for verification)."""
    p = np.asarray(predictions, dtype=np.float64)
    t = np.asarray(target, dtype=np.float64)
    mask = t[..., 3] > 0
    bp = p[..., :4][mask]
    bt = t[..., :4][mask]

    def to_xyxy(b):
        cx, cy, w, h = b[:, 0], b[:, 1], b[:, 2], b[:, 3]
        return np.stack([cx - 0.5 * w, cy - 0.5 * h, cx + 0.5 * w, cy + 0.5 * h], -1)

    b1, b2 = to_xyxy(bp), to_xyxy(bt)
    area1 = (b1[:, 2] - b1[:, 0]) * (b1[:, 3] - b1[:, 1])
    area2 = (b2[:, 2] - b2[:, 0]) * (b2[:, 3] - b2[:, 1])
    lt = np.maximum(b1[:, None, :2], b2[None, :, :2])
    rb = np.minimum(b1[:, None, 2:], b2[None, :, 2:])
    wh = np.clip(rb - lt, 0.0, None)
    inter = wh[..., 0] * wh[..., 1]
    iou = inter / (area1[:, None] + area2[None, :] - inter)
    iou_loss = 1.0 - iou.mean()
    box_loss = np.sum((np.sqrt(bp[:, 2:4]) - np.sqrt(bt[:, 2:4])) ** 2)
    center_loss = np.sum((bp[:, :2] - bt[:, :2]) ** 2)
    return (l_center * center_loss + l_dim * box_loss + l_iou * iou_loss) / p.shape[0]


if __name__ == "__main__":
    key = jax.random.PRNGKey(0)
    B, S, C = 2, 16, 6  # K = B*S*S = 512 cells
    k1, k2, k3, k4, k5 = jax.random.split(key, 5)

    # Targets: a subset of cells has an object (positive cx,cy,w,h); rest are 0.
    centers = jax.random.uniform(k1, (B, S, S, 2), minval=0.1, maxval=0.9)
    dims = jax.random.uniform(k2, (B, S, S, 2), minval=0.05, maxval=0.55)
    obj = (jax.random.uniform(k3, (B, S, S, 1)) > 0.6).astype(jnp.float32)
    tgt_boxes = jnp.concatenate([centers, dims], axis=-1) * obj
    target = jnp.concatenate(
        [tgt_boxes, obj, jnp.zeros((B, S, S, C - 5), jnp.float32)], axis=-1)

    # Predictions: noisy positive boxes everywhere (sqrt requires positivity,
    # exactly as the PyTorch code implicitly does).
    p_centers = jnp.clip(centers + 0.05 * jax.random.normal(k4, centers.shape), 0.01, 0.99)
    p_dims = jnp.clip(dims + 0.05 * jax.random.normal(k5, dims.shape), 0.01, 0.99)
    predictions = jnp.concatenate(
        [p_centers, p_dims, jnp.zeros((B, S, S, C - 4), jnp.float32)], axis=-1)

    loss = jax.block_until_ready(yolo_loss(predictions, target))

    ref = _numpy_reference(predictions, target)
    assert np.isfinite(float(loss)), "kernel produced non-finite loss"
    assert np.allclose(float(loss), ref, rtol=1e-3, atol=1e-3), (float(loss), ref)
    print("KERNEL_OK")
</pallas_src>

<mosaic_0001>
module attributes {stable_mosaic.version = 11 : i64} {
  func.func @_yolo_loss_kernel(%arg0: i32, %arg1: i32, %arg2: memref<1xi32, #tpu.memory_space<smem>>, %arg3: memref<256x4xf32, #tpu.memory_space<vmem>>, %arg4: memref<256x4xf32, #tpu.memory_space<vmem>>, %arg5: memref<4x512xf32, #tpu.memory_space<vmem>>, %arg6: memref<1x8x128xf32, #tpu.memory_space<vmem>>, %arg7: memref<4xf32, #tpu.memory_space<smem>>) attributes {dimension_semantics = [#tpu.dimension_semantics<parallel>, #tpu.dimension_semantics<arbitrary>], iteration_bounds = array<i64: 2, 1>, scalar_prefetch = 1 : i64, scratch_operands = 1 : i64, tpu.core_type = #tpu.core_type<tc>, window_params = [{transform_indices = @transform_0, window_bounds = array<i64: 256, 4>}, {transform_indices = @transform_1, window_bounds = array<i64: 256, 4>}, {transform_indices = @transform_2, window_bounds = array<i64: 4, 512>}, {transform_indices = @transform_3, window_bounds = array<i64: 1, 8, 128>}]} {
    %c0 = arith.constant 0 : index
    %0 = memref.load %arg2[%c0] : memref<1xi32, #tpu.memory_space<smem>>
    %c256_i32 = arith.constant 256 : i32
    %1 = arith.muli %arg0, %c256_i32 : i32
    %2 = arith.cmpi slt, %1, %0 : i32
    %c512_i32 = arith.constant 512 : i32
    %3 = arith.muli %arg1, %c512_i32 : i32
    %4 = arith.cmpi slt, %3, %0 : i32
    %c0_i32 = arith.constant 0 : i32
    %5 = arith.cmpi eq, %arg1, %c0_i32 : i32
    %6 = arith.extui %5 : i1 to i32
    %c0_i32_0 = arith.constant 0 : i32
    %7 = arith.cmpi ne, %6, %c0_i32_0 : i32
    scf.if %7 {
      %cst = arith.constant 0.000000e+00 : f32
      %c0_6 = arith.constant 0 : index
      %18 = memref.load %arg7[%c0_6] : memref<4xf32, #tpu.memory_space<smem>>
      memref.store %cst, %arg7[%c0_6] : memref<4xf32, #tpu.memory_space<smem>>
      %cst_7 = arith.constant 0.000000e+00 : f32
      %c1 = arith.constant 1 : index
      %19 = memref.load %arg7[%c1] : memref<4xf32, #tpu.memory_space<smem>>
      memref.store %cst_7, %arg7[%c1] : memref<4xf32, #tpu.memory_space<smem>>
      %cst_8 = arith.constant 0.000000e+00 : f32
      %c2 = arith.constant 2 : index
      %20 = memref.load %arg7[%c2] : memref<4xf32, #tpu.memory_space<smem>>
      memref.store %cst_8, %arg7[%c2] : memref<4xf32, #tpu.memory_space<smem>>
      %cst_9 = arith.constant 0.000000e+00 : f32
      %c3 = arith.constant 3 : index
      %21 = memref.load %arg7[%c3] : memref<4xf32, #tpu.memory_space<smem>>
      memref.store %cst_9, %arg7[%c3] : memref<4xf32, #tpu.memory_space<smem>>
    } else {
    }
    %c0_i32_1 = arith.constant 0 : i32
    %8 = arith.cmpi eq, %arg1, %c0_i32_1 : i32
    %9 = arith.andi %8, %2 : i1
    %10 = arith.extui %9 : i1 to i32
    %c0_i32_2 = arith.constant 0 : i32
    %11 = arith.cmpi ne, %10, %c0_i32_2 : i32
    scf.if %11 {
      %c0_6 = arith.constant 0 : index
      %c0_7 = arith.constant 0 : index
      %18 = vector.load %arg3[%c0_6, %c0_7] : memref<256x4xf32, #tpu.memory_space<vmem>>, vector<256x4xf32>
      %c0_8 = arith.constant 0 : index
      %c0_9 = arith.constant 0 : index
      %19 = vector.load %arg4[%c0_8, %c0_9] : memref<256x4xf32, #tpu.memory_space<vmem>>, vector<256x4xf32>
      %20 = vector.extract_strided_slice %19 {offsets = [0, 3], sizes = [256, 1], strides = [1, 1]} : vector<256x4xf32> to vector<256x1xf32>
      %cst = arith.constant 0.000000e+00 : f32
      %21 = vector.broadcast %cst : f32 to vector<256x1xf32>
      %22 = arith.cmpf ogt, %20, %21 : vector<256x1xf32>
      %23 = arith.extui %22 : vector<256x1xi1> to vector<256x1xi32>
      %24 = arith.sitofp %23 : vector<256x1xi32> to vector<256x1xf32>
      %25 = vector.extract_strided_slice %18 {offsets = [0, 0], sizes = [256, 1], strides = [1, 1]} : vector<256x4xf32> to vector<256x1xf32>
      %26 = vector.extract_strided_slice %19 {offsets = [0, 0], sizes = [256, 1], strides = [1, 1]} : vector<256x4xf32> to vector<256x1xf32>
      %27 = arith.subf %25, %26 : vector<256x1xf32>
      %28 = vector.extract_strided_slice %18 {offsets = [0, 1], sizes = [256, 1], strides = [1, 1]} : vector<256x4xf32> to vector<256x1xf32>
      %29 = vector.extract_strided_slice %19 {offsets = [0, 1], sizes = [256, 1], strides = [1, 1]} : vector<256x4xf32> to vector<256x1xf32>
      %30 = arith.subf %28, %29 : vector<256x1xf32>
      %31 = arith.mulf %27, %27 : vector<256x1xf32>
      %32 = arith.mulf %30, %30 : vector<256x1xf32>
      %33 = arith.addf %31, %32 : vector<256x1xf32>
      %34 = arith.mulf %24, %33 : vector<256x1xf32>
      %35 = vector.shape_cast %34 : vector<256x1xf32> to vector<1x256x1xf32>
      %cst_10 = arith.constant dense<0.000000e+00> : vector<1xf32>
      %36 = vector.multi_reduction <add>, %35, %cst_10 [1, 2] : vector<1x256x1xf32> to vector<1xf32>
      %37 = vector.shape_cast %36 : vector<1xf32> to vector<1x1x1xf32>
      %38 = vector.extract %37[0, 0, 0] : f32 from vector<1x1x1xf32>
      %39 = vector.extract_strided_slice %18 {offsets = [0, 2], sizes = [256, 1], strides = [1, 1]} : vector<256x4xf32> to vector<256x1xf32>
      %cst_11 = arith.constant 0.000000e+00 : f32
      %40 = vector.broadcast %cst_11 : f32 to vector<256x1xf32>
      %41 = arith.select %22, %39, %40 : vector<256x1xi1>, vector<256x1xf32>
      %42 = math.sqrt %41 : vector<256x1xf32>
      %43 = vector.extract_strided_slice %19 {offsets = [0, 2], sizes = [256, 1], strides = [1, 1]} : vector<256x4xf32> to vector<256x1xf32>
      %cst_12 = arith.constant 0.000000e+00 : f32
      %44 = vector.broadcast %cst_12 : f32 to vector<256x1xf32>
      %45 = arith.select %22, %43, %44 : vector<256x1xi1>, vector<256x1xf32>
      %46 = math.sqrt %45 : vector<256x1xf32>
      %47 = arith.subf %42, %46 : vector<256x1xf32>
      %48 = vector.extract_strided_slice %18 {offsets = [0, 3], sizes = [256, 1], strides = [1, 1]} : vector<256x4xf32> to vector<256x1xf32>
      %cst_13 = arith.constant 0.000000e+00 : f32
      %49 = vector.broadcast %cst_13 : f32 to vector<256x1xf32>
      %50 = arith.select %22, %48, %49 : vector<256x1xi1>, vector<256x1xf32>
      %51 = math.sqrt %50 : vector<256x1xf32>
      %52 = vector.extract_strided_slice %19 {offsets = [0, 3], sizes = [256, 1], strides = [1, 1]} : vector<256x4xf32> to vector<256x1xf32>
      %cst_14 = arith.constant 0.000000e+00 : f32
      %53 = vector.broadcast %cst_14 : f32 to vector<256x1xf32>
      %54 = arith.select %22, %52, %53 : vector<256x1xi1>, vector<256x1xf32>
      %55 = math.sqrt %54 : vector<256x1xf32>
      %56 = arith.subf %51, %55 : vector<256x1xf32>
      %57 = arith.mulf %47, %47 : vector<256x1xf32>
      %58 = arith.mulf %56, %56 : vector<256x1xf32>
      %59 = arith.addf %57, %58 : vector<256x1xf32>
      %60 = vector.shape_cast %59 : vector<256x1xf32> to vector<1x256x1xf32>
      %cst_15 = arith.constant dense<0.000000e+00> : vector<1xf32>
      %61 = vector.multi_reduction <add>, %60, %cst_15 [1, 2] : vector<1x256x1xf32> to vector<1xf32>
      %62 = vector.shape_cast %61 : vector<1xf32> to vector<1x1x1xf32>
      %63 = vector.extract %62[0, 0, 0] : f32 from vector<1x1x1xf32>
      %c1 = arith.constant 1 : index
      %64 = memref.load %arg7[%c1] : memref<4xf32, #tpu.memory_space<smem>>
      memref.store %38, %arg7[%c1] : memref<4xf32, #tpu.memory_space<smem>>
      %c2 = arith.constant 2 : index
      %65 = memref.load %arg7[%c2] : memref<4xf32, #tpu.memory_space<smem>>
      memref.store %63, %arg7[%c2] : memref<4xf32, #tpu.memory_space<smem>>
    } else {
    }
    %12 = arith.andi %2, %4 : i1
    %13 = arith.extui %12 : i1 to i32
    %c0_i32_3 = arith.constant 0 : i32
    %14 = arith.cmpi ne, %13, %c0_i32_3 : i32
    scf.if %14 {
      %c0_6 = arith.constant 0 : index
      %c0_7 = arith.constant 0 : index
      %18 = vector.load %arg3[%c0_6, %c0_7] : memref<256x4xf32, #tpu.memory_space<vmem>>, vector<256x4xf32>
      %c0_8 = arith.constant 0 : index
      %c0_9 = arith.constant 0 : index
      %19 = vector.load %arg4[%c0_8, %c0_9] : memref<256x4xf32, #tpu.memory_space<vmem>>, vector<256x4xf32>
      %c0_10 = arith.constant 0 : index
      %c0_11 = arith.constant 0 : index
      %20 = vector.load %arg5[%c0_10, %c0_11] : memref<4x512xf32, #tpu.memory_space<vmem>>, vector<4x512xf32>
      %21 = vector.extract_strided_slice %19 {offsets = [0, 3], sizes = [256, 1], strides = [1, 1]} : vector<256x4xf32> to vector<256x1xf32>
      %cst = arith.constant 0.000000e+00 : f32
      %22 = vector.broadcast %cst : f32 to vector<256x1xf32>
      %23 = arith.cmpf ogt, %21, %22 : vector<256x1xf32>
      %24 = vector.extract_strided_slice %20 {offsets = [3, 0], sizes = [1, 512], strides = [1, 1]} : vector<4x512xf32> to vector<1x512xf32>
      %cst_12 = arith.constant 0.000000e+00 : f32
      %25 = vector.broadcast %cst_12 : f32 to vector<1x512xf32>
      %26 = arith.cmpf ogt, %24, %25 : vector<1x512xf32>
      %27 = vector.broadcast %23 : vector<256x1xi1> to vector<256x512xi1>
      %28 = vector.broadcast %26 : vector<1x512xi1> to vector<256x512xi1>
      %29 = arith.andi %27, %28 : vector<256x512xi1>
      %30 = vector.extract_strided_slice %18 {offsets = [0, 0], sizes = [256, 1], strides = [1, 1]} : vector<256x4xf32> to vector<256x1xf32>
      %31 = vector.extract_strided_slice %18 {offsets = [0, 1], sizes = [256, 1], strides = [1, 1]} : vector<256x4xf32> to vector<256x1xf32>
      %32 = vector.extract_strided_slice %18 {offsets = [0, 2], sizes = [256, 1], strides = [1, 1]} : vector<256x4xf32> to vector<256x1xf32>
      %33 = vector.extract_strided_slice %18 {offsets = [0, 3], sizes = [256, 1], strides = [1, 1]} : vector<256x4xf32> to vector<256x1xf32>
      %34 = vector.extract_strided_slice %20 {offsets = [0, 0], sizes = [1, 512], strides = [1, 1]} : vector<4x512xf32> to vector<1x512xf32>
      %35 = vector.extract_strided_slice %20 {offsets = [1, 0], sizes = [1, 512], strides = [1, 1]} : vector<4x512xf32> to vector<1x512xf32>
      %36 = vector.extract_strided_slice %20 {offsets = [2, 0], sizes = [1, 512], strides = [1, 1]} : vector<4x512xf32> to vector<1x512xf32>
      %37 = vector.extract_strided_slice %20 {offsets = [3, 0], sizes = [1, 512], strides = [1, 1]} : vector<4x512xf32> to vector<1x512xf32>
      %cst_13 = arith.constant 5.000000e-01 : f32
      %38 = vector.broadcast %cst_13 : f32 to vector<256x1xf32>
      %39 = arith.mulf %38, %32 : vector<256x1xf32>
      %40 = arith.subf %30, %39 : vector<256x1xf32>
      %cst_14 = arith.constant 5.000000e-01 : f32
      %41 = vector.broadcast %cst_14 : f32 to vector<256x1xf32>
      %42 = arith.mulf %41, %32 : vector<256x1xf32>
      %43 = arith.addf %30, %42 : vector<256x1xf32>
      %cst_15 = arith.constant 5.000000e-01 : f32
      %44 = vector.broadcast %cst_15 : f32 to vector<256x1xf32>
      %45 = arith.mulf %44, %33 : vector<256x1xf32>
      %46 = arith.subf %31, %45 : vector<256x1xf32>
      %cst_16 = arith.constant 5.000000e-01 : f32
      %47 = vector.broadcast %cst_16 : f32 to vector<256x1xf32>
      %48 = arith.mulf %47, %33 : vector<256x1xf32>
      %49 = arith.addf %31, %48 : vector<256x1xf32>
      %cst_17 = arith.constant 5.000000e-01 : f32
      %50 = vector.broadcast %cst_17 : f32 to vector<1x512xf32>
      %51 = arith.mulf %50, %36 : vector<1x512xf32>
      %52 = arith.subf %34, %51 : vector<1x512xf32>
      %cst_18 = arith.constant 5.000000e-01 : f32
      %53 = vector.broadcast %cst_18 : f32 to vector<1x512xf32>
      %54 = arith.mulf %53, %36 : vector<1x512xf32>
      %55 = arith.addf %34, %54 : vector<1x512xf32>
      %cst_19 = arith.constant 5.000000e-01 : f32
      %56 = vector.broadcast %cst_19 : f32 to vector<1x512xf32>
      %57 = arith.mulf %56, %37 : vector<1x512xf32>
      %58 = arith.subf %35, %57 : vector<1x512xf32>
      %cst_20 = arith.constant 5.000000e-01 : f32
      %59 = vector.broadcast %cst_20 : f32 to vector<1x512xf32>
      %60 = arith.mulf %59, %37 : vector<1x512xf32>
      %61 = arith.addf %35, %60 : vector<1x512xf32>
      %62 = vector.broadcast %43 : vector<256x1xf32> to vector<256x512xf32>
      %63 = vector.broadcast %55 : vector<1x512xf32> to vector<256x512xf32>
      %64 = arith.minimumf %62, %63 : vector<256x512xf32>
      %65 = vector.broadcast %40 : vector<256x1xf32> to vector<256x512xf32>
      %66 = vector.broadcast %52 : vector<1x512xf32> to vector<256x512xf32>
      %67 = arith.maximumf %65, %66 : vector<256x512xf32>
      %68 = arith.subf %64, %67 : vector<256x512xf32>
      %cst_21 = arith.constant 0.000000e+00 : f32
      %69 = vector.broadcast %cst_21 : f32 to vector<256x512xf32>
      %70 = arith.maximumf %68, %69 : vector<256x512xf32>
      %71 = vector.broadcast %49 : vector<256x1xf32> to vector<256x512xf32>
      %72 = vector.broadcast %61 : vector<1x512xf32> to vector<256x512xf32>
      %73 = arith.minimumf %71, %72 : vector<256x512xf32>
      %74 = vector.broadcast %46 : vector<256x1xf32> to vector<256x512xf32>
      %75 = vector.broadcast %58 : vector<1x512xf32> to vector<256x512xf32>
      %76 = arith.maximumf %74, %75 : vector<256x512xf32>
      %77 = arith.subf %73, %76 : vector<256x512xf32>
      %cst_22 = arith.constant 0.000000e+00 : f32
      %78 = vector.broadcast %cst_22 : f32 to vector<256x512xf32>
      %79 = arith.maximumf %77, %78 : vector<256x512xf32>
      %80 = arith.mulf %70, %79 : vector<256x512xf32>
      %81 = arith.mulf %32, %33 : vector<256x1xf32>
      %82 = arith.mulf %36, %37 : vector<1x512xf32>
      %83 = vector.broadcast %81 : vector<256x1xf32> to vector<256x512xf32>
      %84 = vector.broadcast %82 : vector<1x512xf32> to vector<256x512xf32>
      %85 = arith.addf %83, %84 : vector<256x512xf32>
      %86 = arith.subf %85, %80 : vector<256x512xf32>
      %cst_23 = arith.constant 9.99999996E-13 : f32
      %87 = vector.broadcast %cst_23 : f32 to vector<256x512xf32>
      %88 = arith.maximumf %86, %87 : vector<256x512xf32>
      %89 = tpu.reciprocal %88 {approx = true} : vector<256x512xf32> -> vector<256x512xf32>
      %90 = arith.mulf %80, %89 : vector<256x512xf32>
      %cst_24 = arith.constant 0.000000e+00 : f32
      %91 = vector.broadcast %cst_24 : f32 to vector<256x512xf32>
      %92 = arith.select %29, %90, %91 : vector<256x512xi1>, vector<256x512xf32>
      %c0_25 = arith.constant 0 : index
      %93 = memref.load %arg7[%c0_25] : memref<4xf32, #tpu.memory_space<smem>>
      %94 = vector.shape_cast %92 : vector<256x512xf32> to vector<1x256x512xf32>
      %cst_26 = arith.constant dense<0.000000e+00> : vector<1xf32>
      %95 = vector.multi_reduction <add>, %94, %cst_26 [1, 2] : vector<1x256x512xf32> to vector<1xf32>
      %96 = vector.shape_cast %95 : vector<1xf32> to vector<1x1x1xf32>
      %97 = vector.extract %96[0, 0, 0] : f32 from vector<1x1x1xf32>
      %98 = arith.addf %93, %97 : f32
      %c0_27 = arith.constant 0 : index
      %99 = memref.load %arg7[%c0_27] : memref<4xf32, #tpu.memory_space<smem>>
      memref.store %98, %arg7[%c0_27] : memref<4xf32, #tpu.memory_space<smem>>
    } else {
    }
    %c0_i32_4 = arith.constant 0 : i32
    %15 = arith.cmpi eq, %arg1, %c0_i32_4 : i32
    %16 = arith.extui %15 : i1 to i32
    %c0_i32_5 = arith.constant 0 : i32
    %17 = arith.cmpi ne, %16, %c0_i32_5 : i32
    scf.if %17 {
      %18 = tpu.iota {dimensions = array<i32: 2>} : vector<1x8x128xi32>
      %c0_i32_6 = arith.constant 0 : i32
      %19 = vector.broadcast %c0_i32_6 : i32 to vector<1x8x128xi32>
      %20 = arith.cmpi eq, %18, %19 : vector<1x8x128xi32>
      %c0_7 = arith.constant 0 : index
      %21 = memref.load %arg7[%c0_7] : memref<4xf32, #tpu.memory_space<smem>>
      %cst = arith.constant 0.000000e+00 : f32
      %22 = vector.broadcast %21 : f32 to vector<1x8x128xf32>
      %23 = vector.broadcast %cst : f32 to vector<1x8x128xf32>
      %24 = arith.select %20, %22, %23 : vector<1x8x128xi1>, vector<1x8x128xf32>
      %c1_i32 = arith.constant 1 : i32
      %25 = vector.broadcast %c1_i32 : i32 to vector<1x8x128xi32>
      %26 = arith.cmpi eq, %18, %25 : vector<1x8x128xi32>
      %c1 = arith.constant 1 : index
      %27 = memref.load %arg7[%c1] : memref<4xf32, #tpu.memory_space<smem>>
      %cst_8 = arith.constant 0.000000e+00 : f32
      %28 = vector.broadcast %27 : f32 to vector<1x8x128xf32>
      %29 = vector.broadcast %cst_8 : f32 to vector<1x8x128xf32>
      %30 = arith.select %26, %28, %29 : vector<1x8x128xi1>, vector<1x8x128xf32>
      %31 = arith.addf %24, %30 : vector<1x8x128xf32>
      %c2_i32 = arith.constant 2 : i32
      %32 = vector.broadcast %c2_i32 : i32 to vector<1x8x128xi32>
      %33 = arith.cmpi eq, %18, %32 : vector<1x8x128xi32>
      %c2 = arith.constant 2 : index
      %34 = memref.load %arg7[%c2] : memref<4xf32, #tpu.memory_space<smem>>
      %cst_9 = arith.constant 0.000000e+00 : f32
      %35 = vector.broadcast %34 : f32 to vector<1x8x128xf32>
      %36 = vector.broadcast %cst_9 : f32 to vector<1x8x128xf32>
      %37 = arith.select %33, %35, %36 : vector<1x8x128xi1>, vector<1x8x128xf32>
      %38 = arith.addf %31, %37 : vector<1x8x128xf32>
      %c0_10 = arith.constant 0 : index
      %c0_11 = arith.constant 0 : index
      %c0_12 = arith.constant 0 : index
      %39 = vector.load %arg6[%c0_10, %c0_11, %c0_12] : memref<1x8x128xf32, #tpu.memory_space<vmem>>, vector<1x8x128xf32>
      tpu.vector_store %arg6[%c0_10, %c0_11, %c0_12], %38 {strides = array<i32>} : memref<1x8x128xf32, #tpu.memory_space<vmem>>, vector<1x8x128xf32>,
    } else {
    }
    return
  }
  func.func @transform_0(%arg0: i32, %arg1: i32, %arg2: memref<1xi32, #tpu.memory_space<smem>>) -> (i32, i32) {
    %c0_i32 = arith.constant 0 : i32
    %c0_i32_0 = arith.constant 0 : i32
    return %arg0, %c0_i32 : i32, i32
  }
  func.func @transform_1(%arg0: i32, %arg1: i32, %arg2: memref<1xi32, #tpu.memory_space<smem>>) -> (i32, i32) {
    %c0_i32 = arith.constant 0 : i32
    %c0_i32_0 = arith.constant 0 : i32
    return %arg0, %c0_i32 : i32, i32
  }
  func.func @transform_2(%arg0: i32, %arg1: i32, %arg2: memref<1xi32, #tpu.memory_space<smem>>) -> (i32, i32) {
    %c0_i32 = arith.constant 0 : i32
    %c0_i32_0 = arith.constant 0 : i32
    return %c0_i32, %arg1 : i32, i32
  }
  func.func @transform_3(%arg0: i32, %arg1: i32, %arg2: memref<1xi32, #tpu.memory_space<smem>>) -> (i32, i32, i32) {
    %c0_i32 = arith.constant 0 : i32
    %c0_i32_0 = arith.constant 0 : i32
    %c0_i32_1 = arith.constant 0 : i32
    return %arg0, %c0_i32, %c0_i32_0 : i32, i32, i32
  }
}

</mosaic_0001>

<llo_original>
// kernel: tpu_custom_call.1
$region0: #{tpu_custom_call.1}
  #allocation0 [shape = 'u32[]', space=smem, size = 0x4, offset = 0x4, fixed_abs, tag = 'smem constant byte address 0x4 - core index']
  #allocation1 [shape = 'u32[144,128]{1,0:T(1,128)}', space=vmem, size = 0x12000, scoped, tag = 'internal scratch']
  #allocation2 [shape = 'f32[4]{0:T(128)}', space=smem, size = 0x200, scoped, tag = 'scratch operand']
  #allocation3 [shape = 's32[1]{0}', space=sflag, size = 0x4, scoped, tag = 'scoped memory for tpu_custom_call.1']
  #allocation4 [shape = 's32[1]{0:T(128)S(6)}', space=smem, size = 0x200, scoped, tag = 'prefetched SMEM operand 0']
  %s0 = inlined_call_operand.<no memory space> [shape: s32[1], index: 0, kind: input, shape index: {}]
  %s1 = inlined_call_operand.vmem [shape: f32[512,4], index: 1, kind: input, shape index: {}]
  %s2 = inlined_call_operand.vmem [shape: f32[512,4], index: 2, kind: input, shape index: {}]
  %s3 = inlined_call_operand.vmem [shape: f32[4,512], index: 3, kind: input, shape index: {}]
  %s4 = inlined_call_operand.hbm [shape: f32[2,8,128], index: 4, kind: output, shape index: {}]
  %s5 = sld [smem:[#allocation0]]
  $region61: #{tpu_custom_call.1} parent=0
    _
  %s7 = ssub.s32 1, %s5
  %s8 = scalar_select 0, %s7, %s5
  %9 = sst [smem:[#allocation4]] %s0
  $region1: #{tpu_custom_call.1} parent=0
    #allocation5 [shape = 'u8[8192]{0}', space=vmem, size = 0x2000, scoped, tag = 'output window, operand 0']
    #allocation6 [shape = 's32[2]{0}', space=sflag, size = 0x8, scoped, tag = 'scoped memory for tpu_custom_call.1']
    %10 = vsyncpa [#allocation6], 0
    %s11 = scalar_lea.sflag [#allocation6], 1
    %12 = vsyncpa %s11, 0
    loop: start=0, step=1, limit=4
    $region2: #{tpu_custom_call.1} parent=1 // loop_pre_header
      _
    $region3: #{tpu_custom_call.1} parent=1 // loop_header
      %s14 = sphi 0, %s18
      %p15 = scmp.ge.s32.totalorder %s14, 4
      %s21 = sphi 0, %s33
      %s22 = sphi 0, %s29
      %s23 = sphi 0, %s21
      %s24 = sphi 0, %s22
      %s25 = sphi 0, %s23
      %s26 = sphi 0, %s24
      %s36 = sphi 0, %s38
      %s39 = sphi 0, %s36
      %s40 = sphi 0, %s39
      %s56 = sphi 0, %s40
      %s62 = sphi 0, %s64
      %s65 = sphi 0, %s62
      %s66 = sphi 0, %s65
      %s82 = sphi 0, %s66
      %s88 = sphi 0, %s90
      %s91 = sphi 0, %s88
      %s92 = sphi 0, %s91
      %s108 = sphi 0, %s92
      %s114 = sphi 0, %s116
      %s117 = sphi 0, %s114
      %s118 = sphi 0, %s117
      %s134 = sphi 0, %s118
    $region4: #{tpu_custom_call.1} parent=1 // loop_header_branch
      %17 = sbr.rel (%p15) target = $region8
    $region5: #{tpu_custom_call.1} parent=1 // loop_body
      %s19 = ssub.s32 %s14, 1
      %s20 = ssub.s32 %s14, 2
      %s27 = sadd.s32 1, %s22
      %p28 = scmp.ge.s32.totalorder %s27, 1
      %s29 = scalar_select %p28, 0, %s27
      %s30 = sadd.s32 1, %s21
      %s31 = scalar_select %p28, %s30, %s21
      %p32 = scmp.ge.s32.totalorder %s31, 2
      %s33 = scalar_select %p32, 0, %s31
      %s34 = ssub.s32 %s21, %s33
      %p35 = scmp.eq.s32.totalorder %s34, 0
      %s37 = sadd.s32 %s36, 1
      %s38 = scalar_select %p35, %s36, %s37
      %p41 = pneg %p35
      %p42 = scmp.eq.s32.totalorder %s14, 1
      %p43 = por %p41, %p42
      %p44 = scmp.ne.s32.totalorder %s36, %s39
      %p45 = scmp.eq.s32.totalorder %s14, 0
      %p46 = por %p44, %p45
      %p47 = scmp.ne.s32.totalorder %s36, %s39
      %p48 = scmp.eq.s32.totalorder %s19, 1
      %p49 = por %p47, %p48
      %p50 = scmp.ne.s32.totalorder %s39, %s40
      %p51 = scmp.eq.s32.totalorder %s19, 0
      %p52 = por %p50, %p51
      %p53 = scmp.ne.s32.totalorder %s39, %s40
      %p54 = scmp.eq.s32.totalorder %s20, 1
      %p55 = por %p53, %p54
      %p57 = scmp.ne.s32.totalorder %s40, %s56
      %p58 = scmp.eq.s32.totalorder %s20, 0
      %p59 = por %p57, %p58
      %s60 = ssub.s32 %s21, %s33
      %p61 = scmp.eq.s32.totalorder %s60, 0
      %s63 = sadd.s32 %s62, 1
      %s64 = scalar_select %p61, %s62, %s63
      %p67 = pneg %p61
      %p68 = scmp.eq.s32.totalorder %s14, 1
      %p69 = por %p67, %p68
      %p70 = scmp.ne.s32.totalorder %s62, %s65
      %p71 = scmp.eq.s32.totalorder %s14, 0
      %p72 = por %p70, %p71
      %p73 = scmp.ne.s32.totalorder %s62, %s65
      %p74 = scmp.eq.s32.totalorder %s19, 1
      %p75 = por %p73, %p74
      %p76 = scmp.ne.s32.totalorder %s65, %s66
      %p77 = scmp.eq.s32.totalorder %s19, 0
      %p78 = por %p76, %p77
      %p79 = scmp.ne.s32.totalorder %s65, %s66
      %p80 = scmp.eq.s32.totalorder %s20, 1
      %p81 = por %p79, %p80
      %p83 = scmp.ne.s32.totalorder %s66, %s82
      %p84 = scmp.eq.s32.totalorder %s20, 0
      %p85 = por %p83, %p84
      %s86 = ssub.s32 %s22, %s29
      %p87 = scmp.eq.s32.totalorder %s86, 0
      %s89 = sadd.s32 %s88, 1
      %s90 = scalar_select %p87, %s88, %s89
      %p93 = pneg %p87
      %p94 = scmp.eq.s32.totalorder %s14, 1
      %p95 = por %p93, %p94
      %p96 = scmp.ne.s32.totalorder %s88, %s91
      %p97 = scmp.eq.s32.totalorder %s14, 0
      %p98 = por %p96, %p97
      %p99 = scmp.ne.s32.totalorder %s88, %s91
      %p100 = scmp.eq.s32.totalorder %s19, 1
      %p101 = por %p99, %p100
      %p102 = scmp.ne.s32.totalorder %s91, %s92
      %p103 = scmp.eq.s32.totalorder %s19, 0
      %p104 = por %p102, %p103
      %p105 = scmp.ne.s32.totalorder %s91, %s92
      %p106 = scmp.eq.s32.totalorder %s20, 1
      %p107 = por %p105, %p106
      %p109 = scmp.ne.s32.totalorder %s92, %s108
      %p110 = scmp.eq.s32.totalorder %s20, 0
      %p111 = por %p109, %p110
      %s112 = ssub.s32 %s21, %s33
      %p113 = scmp.eq.s32.totalorder %s112, 0
      %s115 = sadd.s32 %s114, 1
      %s116 = scalar_select %p113, %s114, %s115
      %p119 = pneg %p113
      %p120 = scmp.eq.s32.totalorder %s14, 1
      %p121 = por %p119, %p120
      %p122 = scmp.ne.s32.totalorder %s114, %s117
      %p123 = scmp.eq.s32.totalorder %s14, 0
      %p124 = por %p122, %p123
      %p125 = scmp.ne.s32.totalorder %s114, %s117
      %p126 = scmp.eq.s32.totalorder %s19, 1
      %p127 = por %p125, %p126
      %p128 = scmp.ne.s32.totalorder %s117, %s118
      %p129 = scmp.eq.s32.totalorder %s19, 0
      %p130 = por %p128, %p129
      %p131 = scmp.ne.s32.totalorder %s117, %s118
      %p132 = scmp.eq.s32.totalorder %s20, 1
      %p133 = por %p131, %p132
      %p135 = scmp.ne.s32.totalorder %s118, %s134
      %p136 = scmp.eq.s32.totalorder %s20, 0
      %p137 = por %p135, %p136
      %p138 = scmp.le.s32.totalorder 1, %s14
      %p139 = scmp.lt.s32.totalorder %s14, 3
      %p140 = pnand %p138, %p139
      %p141 = pneg %p140
      // Predicated region
      $region9: #{tpu_custom_call.1} parent=5 // pred_check
        _
      $region10: #{tpu_custom_call.1} parent=5 // pred_check_branch
        %143 = sbr.rel (%p140) target = $region12
      $region11: #{tpu_custom_call.1} parent=5 // pred_region
        %s144 = ssub.s32 %s14, 1
        // Predicated region
        $region13: #{tpu_custom_call.1} parent=11 // pred_check
          %p145 = pneg %p104
        $region14: #{tpu_custom_call.1} parent=11 // pred_check_branch
          %147 = sbr.rel (%p145) target = $region16
        $region15: #{tpu_custom_call.1} parent=11 // pred_region
          %s148 = smul.u32 4, %s24
          %p149 = scmp.lt.s32.totalorder %s148, 3
          %s150 = scalar_select %p149, %s148, 3
          %s151 = smul.addr %s150, 4
          %s152 = scalar_lea.vmem %s3, %s151
          %s153 = smul.u32 4, %s24
        $region16: #{tpu_custom_call.1} parent=11 // pred_fallthru
          _
      $region12: #{tpu_custom_call.1} parent=5 // pred_fallthru
        _
      %p154 = scmp.lt.s32.totalorder %s14, 2
      // Predicated region
      $region17: #{tpu_custom_call.1} parent=5 // pred_check
        %p155 = pneg %p154
      $region18: #{tpu_custom_call.1} parent=5 // pred_check_branch
        %157 = sbr.rel (%p155) target = $region20
      $region19: #{tpu_custom_call.1} parent=5 // pred_region
        // Predicated region
        $region21: #{tpu_custom_call.1} parent=19 // pred_check
          %p158 = pneg %p46
        $region22: #{tpu_custom_call.1} parent=19 // pred_check_branch
          %160 = sbr.rel (%p158) target = $region24
        $region23: #{tpu_custom_call.1} parent=19 // pred_region
          %s161 = smul.u32 32, %s21
          %p162 = scmp.lt.s32.totalorder %s161, 63
          %s163 = scalar_select %p162, %s161, 63
          %s164 = smul.addr %s163, 8
          %s165 = scalar_lea.vmem %s1, %s164
          %s166 = smul.u32 32, %s21
        $region24: #{tpu_custom_call.1} parent=19 // pred_fallthru
          _
        // Predicated region
        $region25: #{tpu_custom_call.1} parent=19 // pred_check
          %p167 = pneg %p72
        $region26: #{tpu_custom_call.1} parent=19 // pred_check_branch
          %169 = sbr.rel (%p167) target = $region28
        $region27: #{tpu_custom_call.1} parent=19 // pred_region
          %s170 = smul.u32 32, %s21
          %p171 = scmp.lt.s32.totalorder %s170, 63
          %s172 = scalar_select %p171, %s170, 63
          %s173 = smul.addr %s172, 8
          %s174 = scalar_lea.vmem %s2, %s173
          %s175 = smul.u32 32, %s21
        $region28: #{tpu_custom_call.1} parent=19 // pred_fallthru
          _
      $region20: #{tpu_custom_call.1} parent=5 // pred_fallthru
        _
      %p176 = scmp.le.s32.totalorder 1, %s14
      %p177 = scmp.lt.s32.totalorder %s14, 3
      %p178 = pnand %p176, %p177
      %p179 = pneg %p178
      // Predicated region
      $region29: #{tpu_custom_call.1} parent=5 // pred_check
        _
      $region30: #{tpu_custom_call.1} parent=5 // pred_check_branch
        %181 = sbr.rel (%p178) target = $region32
      $region31: #{tpu_custom_call.1} parent=5 // pred_region
        %s182 = ssub.s32 %s14, 1
        %s183 = smul.u32 32, %s23
        %p184 = scmp.lt.s32.totalorder %s183, 63
        %s185 = scalar_select %p184, %s183, 63
        %s186 = smul.addr %s185, 8
        %s187 = scalar_lea.vmem %s1, %s186
        %p188 = pneg %p52
        %p189 = pneg %p49
        %s190 = smul.u32 32, %s23
        %p191 = scmp.lt.s32.totalorder %s190, 63
        %s192 = scalar_select %p191, %s190, 63
        %s193 = smul.addr %s192, 8
        %s194 = scalar_lea.vmem %s2, %s193
        %p195 = pneg %p78
        %p196 = pneg %p75
        %s197 = smul.u32 4, %s24
        %p198 = scmp.lt.s32.totalorder %s197, 3
        %s199 = scalar_select %p198, %s197, 3
        %s200 = smul.addr %s199, 4
        %s201 = scalar_lea.vmem %s3, %s200
        %p202 = pneg %p104
        %p203 = pneg %p101
        %p204 = pneg %p130
        %p205 = pneg %p127
        %s206 = sand.u32 %s117, 1
        %s207 = scalar_lea.sflag [#allocation6], %s206
        %s208 = sand.u32 %s117, 1
        %s209 = smul.addr %s208, 8
        %s210 = scalar_lea.vmem [#allocation5], %s209
        %s211 = smul.u32 32, %s23
        %p212 = scmp.lt.s32.totalorder %s211, 63
        %s213 = scalar_select %p212, %s211, 63
        %s214 = smul.addr %s213, 8
        %s215 = scalar_lea.vmem %s1, %s214
        %s216 = smul.u32 32, %s23
        %s217 = smul.u32 32, %s23
        %p218 = scmp.lt.s32.totalorder %s217, 63
        %s219 = scalar_select %p218, %s217, 63
        %s220 = smul.addr %s219, 8
        %s221 = scalar_lea.vmem %s2, %s220
        %s222 = smul.u32 32, %s23
        %s223 = smul.u32 4, %s24
        %p224 = scmp.lt.s32.totalorder %s223, 3
        %s225 = scalar_select %p224, %s223, 3
        %s226 = smul.addr %s225, 4
        %s227 = scalar_lea.vmem %s3, %s226
        %s228 = smul.u32 4, %s24
        %s229 = sld [smem:[#allocation4]]
        %s230 = smul.u32 %s23, 256
        %p231 = scmp.lt.s32.totalorder %s230, %s229
        %s232 = smul.u32 %s24, 512
        %p233 = scmp.lt.s32.totalorder %s232, %s229
        %p234 = scmp.eq.s32.totalorder %s24, 0
        // Predicated region
        $region33: #{tpu_custom_call.1} parent=31 // pred_check
          %p235 = pneg %p234
        $region34: #{tpu_custom_call.1} parent=31 // pred_check_branch
          %237 = sbr.rel (%p235) target = $region36
        $region35: #{tpu_custom_call.1} parent=31 // pred_region
          %s238 = scalar_lea.smem [#allocation2], 0
          %239 = sst [smem:[%s238]] 0.0
          %s240 = scalar_lea.smem [#allocation2], 1
          %241 = sst [smem:[%s240]] 0.0
          %s242 = scalar_lea.smem [#allocation2], 2
          %243 = sst [smem:[%s242]] 0.0
          %s244 = scalar_lea.smem [#allocation2], 3
          %245 = sst [smem:[%s244]] 0.0
        $region36: #{tpu_custom_call.1} parent=31 // pred_fallthru
          _
        %p246 = pnand %p234, %p231
        %p247 = pneg %p246
        // Predicated region
        $region37: #{tpu_custom_call.1} parent=31 // pred_check
          _
        $region38: #{tpu_custom_call.1} parent=31 // pred_check_branch
          %249 = sbr.rel (%p246) target = $region40
        $region39: #{tpu_custom_call.1} parent=31 // pred_region
          %v250 = vld [vmem:[%s215] sm:$0xff]
          %v251 = vld [vmem:[%s215 + $0x8] sm:$0xff]
          %v252 = vld [vmem:[%s215 + $0x10] sm:$0xff]
          %v253 = vld [vmem:[%s215 + $0x18] sm:$0xff]
          %v254 = vld [vmem:[%s215 + $0x20] sm:$0xff]
          %v255 = vld [vmem:[%s215 + $0x28] sm:$0xff]
          %v256 = vld [vmem:[%s215 + $0x30] sm:$0xff]
          %v257 = vld [vmem:[%s215 + $0x38] sm:$0xff]
          %v258 = vld [vmem:[%s215 + $0x40] sm:$0xff]
          %v259 = vld [vmem:[%s215 + $0x48] sm:$0xff]
          %v260 = vld [vmem:[%s215 + $0x50] sm:$0xff]
          %v261 = vld [vmem:[%s215 + $0x58] sm:$0xff]
          %v262 = vld [vmem:[%s215 + $0x60] sm:$0xff]
          %v263 = vld [vmem:[%s215 + $0x68] sm:$0xff]
          %v264 = vld [vmem:[%s215 + $0x70] sm:$0xff]
          %v265 = vld [vmem:[%s215 + $0x78] sm:$0xff]
          %v266 = vld [vmem:[%s215 + $0x80] sm:$0xff]
          %v267 = vld [vmem:[%s215 + $0x88] sm:$0xff]
          %v268 = vld [vmem:[%s215 + $0x90] sm:$0xff]
          %v269 = vld [vmem:[%s215 + $0x98] sm:$0xff]
          %v270 = vld [vmem:[%s215 + $0xa0] sm:$0xff]
          %v271 = vld [vmem:[%s215 + $0xa8] sm:$0xff]
          %v272 = vld [vmem:[%s215 + $0xb0] sm:$0xff]
          %v273 = vld [vmem:[%s215 + $0xb8] sm:$0xff]
          %v274 = vld [vmem:[%s215 + $0xc0] sm:$0xff]
          %v275 = vld [vmem:[%s215 + $0xc8] sm:$0xff]
          %v276 = vld [vmem:[%s215 + $0xd0] sm:$0xff]
          %v277 = vld [vmem:[%s215 + $0xd8] sm:$0xff]
          %v278 = vld [vmem:[%s215 + $0xe0] sm:$0xff]
          %v279 = vld [vmem:[%s215 + $0xe8] sm:$0xff]
          %v280 = vld [vmem:[%s215 + $0xf0] sm:$0xff]
          %v281 = vld [vmem:[%s215 + $0xf8] sm:$0xff]
          %v282 = vld [vmem:[%s221] sm:$0xff]
          %v283 = vld [vmem:[%s221 + $0x8] sm:$0xff]
          %v284 = vld [vmem:[%s221 + $0x10] sm:$0xff]
          %v285 = vld [vmem:[%s221 + $0x18] sm:$0xff]
          %v286 = vld [vmem:[%s221 + $0x20] sm:$0xff]
          %v287 = vld [vmem:[%s221 + $0x28] sm:$0xff]
          %v288 = vld [vmem:[%s221 + $0x30] sm:$0xff]
          %v289 = vld [vmem:[%s221 + $0x38] sm:$0xff]
          %v290 = vld [vmem:[%s221 + $0x40] sm:$0xff]
          %v291 = vld [vmem:[%s221 + $0x48] sm:$0xff]
          %v292 = vld [vmem:[%s221 + $0x50] sm:$0xff]
          %v293 = vld [vmem:[%s221 + $0x58] sm:$0xff]
          %v294 = vld [vmem:[%s221 + $0x60] sm:$0xff]
          %v295 = vld [vmem:[%s221 + $0x68] sm:$0xff]
          %v296 = vld [vmem:[%s221 + $0x70] sm:$0xff]
          %v297 = vld [vmem:[%s221 + $0x78] sm:$0xff]
          %v298 = vld [vmem:[%s221 + $0x80] sm:$0xff]
          %v299 = vld [vmem:[%s221 + $0x88] sm:$0xff]
          %v300 = vld [vmem:[%s221 + $0x90] sm:$0xff]
          %v301 = vld [vmem:[%s221 + $0x98] sm:$0xff]
          %v302 = vld [vmem:[%s221 + $0xa0] sm:$0xff]
          %v303 = vld [vmem:[%s221 + $0xa8] sm:$0xff]
          %v304 = vld [vmem:[%s221 + $0xb0] sm:$0xff]
          %v305 = vld [vmem:[%s221 + $0xb8] sm:$0xff]
          %v306 = vld [vmem:[%s221 + $0xc0] sm:$0xff]
          %v307 = vld [vmem:[%s221 + $0xc8] sm:$0xff]
          %v308 = vld [vmem:[%s221 + $0xd0] sm:$0xff]
          %v309 = vld [vmem:[%s221 + $0xd8] sm:$0xff]
          %v310 = vld [vmem:[%s221 + $0xe0] sm:$0xff]
          %v311 = vld [vmem:[%s221 + $0xe8] sm:$0xff]
          %v312 = vld [vmem:[%s221 + $0xf0] sm:$0xff]
          %v313 = vld [vmem:[%s221 + $0xf8] sm:$0xff]
          %vm314 = vcmp.gt.f32.partialorder %v282, 0.0
          %vm315 = vcmp.gt.f32.partialorder %v283, 0.0
          %vm316 = vcmp.gt.f32.partialorder %v284, 0.0
          %vm317 = vcmp.gt.f32.partialorder %v285, 0.0
          %vm318 = vcmp.gt.f32.partialorder %v286, 0.0
          %vm319 = vcmp.gt.f32.partialorder %v287, 0.0
          %vm320 = vcmp.gt.f32.partialorder %v288, 0.0
          %vm321 = vcmp.gt.f32.partialorder %v289, 0.0
          %vm322 = vcmp.gt.f32.partialorder %v290, 0.0
          %vm323 = vcmp.gt.f32.partialorder %v291, 0.0
          %vm324 = vcmp.gt.f32.partialorder %v292, 0.0
          %vm325 = vcmp.gt.f32.partialorder %v293, 0.0
          %vm326 = vcmp.gt.f32.partialorder %v294, 0.0
          %vm327 = vcmp.gt.f32.partialorder %v295, 0.0
          %vm328 = vcmp.gt.f32.partialorder %v296, 0.0
          %vm329 = vcmp.gt.f32.partialorder %v297, 0.0
          %vm330 = vcmp.gt.f32.partialorder %v298, 0.0
          %vm331 = vcmp.gt.f32.partialorder %v299, 0.0
          %vm332 = vcmp.gt.f32.partialorder %v300, 0.0
          %vm333 = vcmp.gt.f32.partialorder %v301, 0.0
          %vm334 = vcmp.gt.f32.partialorder %v302, 0.0
          %vm335 = vcmp.gt.f32.partialorder %v303, 0.0
          %vm336 = vcmp.gt.f32.partialorder %v304, 0.0
          %vm337 = vcmp.gt.f32.partialorder %v305, 0.0
          %vm338 = vcmp.gt.f32.partialorder %v306, 0.0
          %vm339 = vcmp.gt.f32.partialorder %v307, 0.0
          %vm340 = vcmp.gt.f32.partialorder %v308, 0.0
          %vm341 = vcmp.gt.f32.partialorder %v309, 0.0
          %vm342 = vcmp.gt.f32.partialorder %v310, 0.0
          %vm343 = vcmp.gt.f32.partialorder %v311, 0.0
          %vm344 = vcmp.gt.f32.partialorder %v312, 0.0
          %vm345 = vcmp.gt.f32.partialorder %v313, 0.0
          %v346 = vsel %vm314, 1, 0
          %v347 = vsel %vm315, 1, 0
          %v348 = vsel %vm316, 1, 0
          %v349 = vsel %vm317, 1, 0
          %v350 = vsel %vm318, 1, 0
          %v351 = vsel %vm319, 1, 0
          %v352 = vsel %vm320, 1, 0
          %v353 = vsel %vm321, 1, 0
          %v354 = vsel %vm322, 1, 0
          %v355 = vsel %vm323, 1, 0
          %v356 = vsel %vm324, 1, 0
          %v357 = vsel %vm325, 1, 0
          %v358 = vsel %vm326, 1, 0
          %v359 = vsel %vm327, 1, 0
          %v360 = vsel %vm328, 1, 0
          %v361 = vsel %vm329, 1, 0
          %v362 = vsel %vm330, 1, 0
          %v363 = vsel %vm331, 1, 0
          %v364 = vsel %vm332, 1, 0
          %v365 = vsel %vm333, 1, 0
          %v366 = vsel %vm334, 1, 0
          %v367 = vsel %vm335, 1, 0
          %v368 = vsel %vm336, 1, 0
          %v369 = vsel %vm337, 1, 0
          %v370 = vsel %vm338, 1, 0
          %v371 = vsel %vm339, 1, 0
          %v372 = vsel %vm340, 1, 0
          %v373 = vsel %vm341, 1, 0
          %v374 = vsel %vm342, 1, 0
          %v375 = vsel %vm343, 1, 0
          %v376 = vsel %vm344, 1, 0
          %v377 = vsel %vm345, 1, 0
          %v378 = vcvt.s32.f32 %v346
          %v379 = vcvt.s32.f32 %v347
          %v380 = vcvt.s32.f32 %v348
          %v381 = vcvt.s32.f32 %v349
          %v382 = vcvt.s32.f32 %v350
          %v383 = vcvt.s32.f32 %v351
          %v384 = vcvt.s32.f32 %v352
          %v385 = vcvt.s32.f32 %v353
          %v386 = vcvt.s32.f32 %v354
          %v387 = vcvt.s32.f32 %v355
          %v388 = vcvt.s32.f32 %v356
          %v389 = vcvt.s32.f32 %v357
          %v390 = vcvt.s32.f32 %v358
          %v391 = vcvt.s32.f32 %v359
          %v392 = vcvt.s32.f32 %v360
          %v393 = vcvt.s32.f32 %v361
          %v394 = vcvt.s32.f32 %v362
          %v395 = vcvt.s32.f32 %v363
          %v396 = vcvt.s32.f32 %v364
          %v397 = vcvt.s32.f32 %v365
          %v398 = vcvt.s32.f32 %v366
          %v399 = vcvt.s32.f32 %v367
          %v400 = vcvt.s32.f32 %v368
          %v401 = vcvt.s32.f32 %v369
          %v402 = vcvt.s32.f32 %v370
          %v403 = vcvt.s32.f32 %v371
          %v404 = vcvt.s32.f32 %v372
          %v405 = vcvt.s32.f32 %v373
          %v406 = vcvt.s32.f32 %v374
          %v407 = vcvt.s32.f32 %v375
          %v408 = vcvt.s32.f32 %v376
          %v409 = vcvt.s32.f32 %v377
          %v410 = vsub.f32 %v250, %v282
          %v411 = vsub.f32 %v251, %v283
          %v412 = vsub.f32 %v252, %v284
          %v413 = vsub.f32 %v253, %v285
          %v414 = vsub.f32 %v254, %v286
          %v415 = vsub.f32 %v255, %v287
          %v416 = vsub.f32 %v256, %v288
          %v417 = vsub.f32 %v257, %v289
          %v418 = vsub.f32 %v258, %v290
          %v419 = vsub.f32 %v259, %v291
          %v420 = vsub.f32 %v260, %v292
          %v421 = vsub.f32 %v261, %v293
          %v422 = vsub.f32 %v262, %v294
          %v423 = vsub.f32 %v263, %v295
          %v424 = vsub.f32 %v264, %v296
          %v425 = vsub.f32 %v265, %v297
          %v426 = vsub.f32 %v266, %v298
          %v427 = vsub.f32 %v267, %v299
          %v428 = vsub.f32 %v268, %v300
          %v429 = vsub.f32 %v269, %v301
          %v430 = vsub.f32 %v270, %v302
          %v431 = vsub.f32 %v271, %v303
          %v432 = vsub.f32 %v272, %v304
          %v433 = vsub.f32 %v273, %v305
          %v434 = vsub.f32 %v274, %v306
          %v435 = vsub.f32 %v275, %v307
          %v436 = vsub.f32 %v276, %v308
          %v437 = vsub.f32 %v277, %v309
          %v438 = vsub.f32 %v278, %v310
          %v439 = vsub.f32 %v279, %v311
          %v440 = vsub.f32 %v280, %v312
          %v441 = vsub.f32 %v281, %v313
          %v442 = vmul.f32 %v410, %v410
          %v443 = vmul.f32 %v411, %v411
          %v444 = vmul.f32 %v412, %v412
          %v445 = vmul.f32 %v413, %v413
          %v446 = vmul.f32 %v414, %v414
          %v447 = vmul.f32 %v415, %v415
          %v448 = vmul.f32 %v416, %v416
          %v449 = vmul.f32 %v417, %v417
          %v450 = vmul.f32 %v418, %v418
          %v451 = vmul.f32 %v419, %v419
          %v452 = vmul.f32 %v420, %v420
          %v453 = vmul.f32 %v421, %v421
          %v454 = vmul.f32 %v422, %v422
          %v455 = vmul.f32 %v423, %v423
          %v456 = vmul.f32 %v424, %v424
          %v457 = vmul.f32 %v425, %v425
          %v458 = vmul.f32 %v426, %v426
          %v459 = vmul.f32 %v427, %v427
          %v460 = vmul.f32 %v428, %v428
          %v461 = vmul.f32 %v429, %v429
          %v462 = vmul.f32 %v430, %v430
          %v463 = vmul.f32 %v431, %v431
          %v464 = vmul.f32 %v432, %v432
          %v465 = vmul.f32 %v433, %v433
          %v466 = vmul.f32 %v434, %v434
          %v467 = vmul.f32 %v435, %v435
          %v468 = vmul.f32 %v436, %v436
          %v469 = vmul.f32 %v437, %v437
          %v470 = vmul.f32 %v438, %v438
          %v471 = vmul.f32 %v439, %v439
          %v472 = vmul.f32 %v440, %v440
          %v473 = vmul.f32 %v441, %v441
          %506 = vrot.lane.b32.xlu0 %v442, 127
          %v507 = vpop.permute.xlu0 %506
          %508 = vrot.lane.b32.xlu0 %v443, 127
          %v509 = vpop.permute.xlu0 %508
          %510 = vrot.lane.b32.xlu0 %v444, 127
          %v511 = vpop.permute.xlu0 %510
          %512 = vrot.lane.b32.xlu0 %v445, 127
          %v513 = vpop.permute.xlu0 %512
          %514 = vrot.lane.b32.xlu0 %v446, 127
          %v515 = vpop.permute.xlu0 %514
          %516 = vrot.lane.b32.xlu0 %v447, 127
          %v517 = vpop.permute.xlu0 %516
          %518 = vrot.lane.b32.xlu0 %v448, 127
          %v519 = vpop.permute.xlu0 %518
          %520 = vrot.lane.b32.xlu0 %v449, 127
          %v521 = vpop.permute.xlu0 %520
          %522 = vrot.lane.b32.xlu0 %v450, 127
          %v523 = vpop.permute.xlu0 %522
          %524 = vrot.lane.b32.xlu0 %v451, 127
          %v525 = vpop.permute.xlu0 %524
          %526 = vrot.lane.b32.xlu0 %v452, 127
          %v527 = vpop.permute.xlu0 %526
          %528 = vrot.lane.b32.xlu0 %v453, 127
          %v529 = vpop.permute.xlu0 %528
          %530 = vrot.lane.b32.xlu0 %v454, 127
          %v531 = vpop.permute.xlu0 %530
          %532 = vrot.lane.b32.xlu0 %v455, 127
          %v533 = vpop.permute.xlu0 %532
          %534 = vrot.lane.b32.xlu0 %v456, 127
          %v535 = vpop.permute.xlu0 %534
          %536 = vrot.lane.b32.xlu0 %v457, 127
          %v537 = vpop.permute.xlu0 %536
          %538 = vrot.lane.b32.xlu0 %v458, 127
          %v539 = vpop.permute.xlu0 %538
          %540 = vrot.lane.b32.xlu0 %v459, 127
          %v541 = vpop.permute.xlu0 %540
          %542 = vrot.lane.b32.xlu0 %v460, 127
          %v543 = vpop.permute.xlu0 %542
          %544 = vrot.lane.b32.xlu0 %v461, 127
          %v545 = vpop.permute.xlu0 %544
          %546 = vrot.lane.b32.xlu0 %v462, 127
          %v547 = vpop.permute.xlu0 %546
          %548 = vrot.lane.b32.xlu0 %v463, 127
          %v549 = vpop.permute.xlu0 %548
          %550 = vrot.lane.b32.xlu0 %v464, 127
          %v551 = vpop.permute.xlu0 %550
          %552 = vrot.lane.b32.xlu0 %v465, 127
          %v553 = vpop.permute.xlu0 %552
          %554 = vrot.lane.b32.xlu0 %v466, 127
          %v555 = vpop.permute.xlu0 %554
          %556 = vrot.lane.b32.xlu0 %v467, 127
          %v557 = vpop.permute.xlu0 %556
          %558 = vrot.lane.b32.xlu0 %v468, 127
          %v559 = vpop.permute.xlu0 %558
          %560 = vrot.lane.b32.xlu0 %v469, 127
          %v561 = vpop.permute.xlu0 %560
          %562 = vrot.lane.b32.xlu0 %v470, 127
          %v563 = vpop.permute.xlu0 %562
          %564 = vrot.lane.b32.xlu0 %v471, 127
          %v565 = vpop.permute.xlu0 %564
          %566 = vrot.lane.b32.xlu0 %v472, 127
          %v567 = vpop.permute.xlu0 %566
          %568 = vrot.lane.b32.xlu0 %v473, 127
          %v569 = vpop.permute.xlu0 %568
          %v602 = vadd.f32 %v442, %v507
          %v603 = vadd.f32 %v443, %v509
          %v604 = vadd.f32 %v444, %v511
          %v605 = vadd.f32 %v445, %v513
          %v606 = vadd.f32 %v446, %v515
          %v607 = vadd.f32 %v447, %v517
          %v608 = vadd.f32 %v448, %v519
          %v609 = vadd.f32 %v449, %v521
          %v610 = vadd.f32 %v450, %v523
          %v611 = vadd.f32 %v451, %v525
          %v612 = vadd.f32 %v452, %v527
          %v613 = vadd.f32 %v453, %v529
          %v614 = vadd.f32 %v454, %v531
          %v615 = vadd.f32 %v455, %v533
          %v616 = vadd.f32 %v456, %v535
          %v617 = vadd.f32 %v457, %v537
          %v618 = vadd.f32 %v458, %v539
          %v619 = vadd.f32 %v459, %v541
          %v620 = vadd.f32 %v460, %v543
          %v621 = vadd.f32 %v461, %v545
          %v622 = vadd.f32 %v462, %v547
          %v623 = vadd.f32 %v463, %v549
          %v624 = vadd.f32 %v464, %v551
          %v625 = vadd.f32 %v465, %v553
          %v626 = vadd.f32 %v466, %v555
          %v627 = vadd.f32 %v467, %v557
          %v628 = vadd.f32 %v468, %v559
          %v629 = vadd.f32 %v469, %v561
          %v630 = vadd.f32 %v470, %v563
          %v631 = vadd.f32 %v471, %v565
          %v632 = vadd.f32 %v472, %v567
          %v633 = vadd.f32 %v473, %v569
          %666 = vrot.lane.b32.xlu0 %v602, 3
          %v667 = vpop.permute.xlu0 %666
          %668 = vrot.lane.b32.xlu0 %v603, 3
          %v669 = vpop.permute.xlu0 %668
          %670 = vrot.lane.b32.xlu0 %v604, 3
          %v671 = vpop.permute.xlu0 %670
          %672 = vrot.lane.b32.xlu0 %v605, 3
          %v673 = vpop.permute.xlu0 %672
          %674 = vrot.lane.b32.xlu0 %v606, 3
          %v675 = vpop.permute.xlu0 %674
          %676 = vrot.lane.b32.xlu0 %v607, 3
          %v677 = vpop.permute.xlu0 %676
          %678 = vrot.lane.b32.xlu0 %v608, 3
          %v679 = vpop.permute.xlu0 %678
          %680 = vrot.lane.b32.xlu0 %v609, 3
          %v681 = vpop.permute.xlu0 %680
          %682 = vrot.lane.b32.xlu0 %v610, 3
          %v683 = vpop.permute.xlu0 %682
          %684 = vrot.lane.b32.xlu0 %v611, 3
          %v685 = vpop.permute.xlu0 %684
          %686 = vrot.lane.b32.xlu0 %v612, 3
          %v687 = vpop.permute.xlu0 %686
          %688 = vrot.lane.b32.xlu0 %v613, 3
          %v689 = vpop.permute.xlu0 %688
          %690 = vrot.lane.b32.xlu0 %v614, 3
          %v691 = vpop.permute.xlu0 %690
          %692 = vrot.lane.b32.xlu0 %v615, 3
          %v693 = vpop.permute.xlu0 %692
          %694 = vrot.lane.b32.xlu0 %v616, 3
          %v695 = vpop.permute.xlu0 %694
          %696 = vrot.lane.b32.xlu0 %v617, 3
          %v697 = vpop.permute.xlu0 %696
          %698 = vrot.lane.b32.xlu0 %v618, 3
          %v699 = vpop.permute.xlu0 %698
          %700 = vrot.lane.b32.xlu0 %v619, 3
          %v701 = vpop.permute.xlu0 %700
          %702 = vrot.lane.b32.xlu0 %v620, 3
          %v703 = vpop.permute.xlu0 %702
          %704 = vrot.lane.b32.xlu0 %v621, 3
          %v705 = vpop.permute.xlu0 %704
          %706 = vrot.lane.b32.xlu0 %v622, 3
          %v707 = vpop.permute.xlu0 %706
          %708 = vrot.lane.b32.xlu0 %v623, 3
          %v709 = vpop.permute.xlu0 %708
          %710 = vrot.lane.b32.xlu0 %v624, 3
          %v711 = vpop.permute.xlu0 %710
          %712 = vrot.lane.b32.xlu0 %v625, 3
          %v713 = vpop.permute.xlu0 %712
          %714 = vrot.lane.b32.xlu0 %v626, 3
          %v715 = vpop.permute.xlu0 %714
          %716 = vrot.lane.b32.xlu0 %v627, 3
          %v717 = vpop.permute.xlu0 %716
          %718 = vrot.lane.b32.xlu0 %v628, 3
          %v719 = vpop.permute.xlu0 %718
          %720 = vrot.lane.b32.xlu0 %v629, 3
          %v721 = vpop.permute.xlu0 %720
          %722 = vrot.lane.b32.xlu0 %v630, 3
          %v723 = vpop.permute.xlu0 %722
          %724 = vrot.lane.b32.xlu0 %v631, 3
          %v725 = vpop.permute.xlu0 %724
          %726 = vrot.lane.b32.xlu0 %v632, 3
          %v727 = vpop.permute.xlu0 %726
          %728 = vrot.lane.b32.xlu0 %v633, 3
          %v729 = vpop.permute.xlu0 %728
          %v762 = vmul.f32 %v378, %v667
          %v763 = vmul.f32 %v379, %v669
          %v764 = vmul.f32 %v380, %v671
          %v765 = vmul.f32 %v381, %v673
          %v766 = vmul.f32 %v382, %v675
          %v767 = vmul.f32 %v383, %v677
          %v768 = vmul.f32 %v384, %v679
          %v769 = vmul.f32 %v385, %v681
          %v770 = vmul.f32 %v386, %v683
          %v771 = vmul.f32 %v387, %v685
          %v772 = vmul.f32 %v388, %v687
          %v773 = vmul.f32 %v389, %v689
          %v774 = vmul.f32 %v390, %v691
          %v775 = vmul.f32 %v391, %v693
          %v776 = vmul.f32 %v392, %v695
          %v777 = vmul.f32 %v393, %v697
          %v778 = vmul.f32 %v394, %v699
          %v779 = vmul.f32 %v395, %v701
          %v780 = vmul.f32 %v396, %v703
          %v781 = vmul.f32 %v397, %v705
          %v782 = vmul.f32 %v398, %v707
          %v783 = vmul.f32 %v399, %v709
          %v784 = vmul.f32 %v400, %v711
          %v785 = vmul.f32 %v401, %v713
          %v786 = vmul.f32 %v402, %v715
          %v787 = vmul.f32 %v403, %v717
          %v788 = vmul.f32 %v404, %v719
          %v789 = vmul.f32 %v405, %v721
          %v790 = vmul.f32 %v406, %v723
          %v791 = vmul.f32 %v407, %v725
          %v792 = vmul.f32 %v408, %v727
          %v793 = vmul.f32 %v409, %v729
          %826 = vrot.lane.b32.xlu0 %v762, 125
          %v827 = vpop.permute.xlu0 %826
          %828 = vrot.lane.b32.xlu0 %v763, 125
          %v829 = vpop.permute.xlu0 %828
          %830 = vrot.lane.b32.xlu0 %v764, 125
          %v831 = vpop.permute.xlu0 %830
          %832 = vrot.lane.b32.xlu0 %v765, 125
          %v833 = vpop.permute.xlu0 %832
          %834 = vrot.lane.b32.xlu0 %v766, 125
          %v835 = vpop.permute.xlu0 %834
          %836 = vrot.lane.b32.xlu0 %v767, 125
          %v837 = vpop.permute.xlu0 %836
          %838 = vrot.lane.b32.xlu0 %v768, 125
          %v839 = vpop.permute.xlu0 %838
          %840 = vrot.lane.b32.xlu0 %v769, 125
          %v841 = vpop.permute.xlu0 %840
          %842 = vrot.lane.b32.xlu0 %v770, 125
          %v843 = vpop.permute.xlu0 %842
          %844 = vrot.lane.b32.xlu0 %v771, 125
          %v845 = vpop.permute.xlu0 %844
          %846 = vrot.lane.b32.xlu0 %v772, 125
          %v847 = vpop.permute.xlu0 %846
          %848 = vrot.lane.b32.xlu0 %v773, 125
          %v849 = vpop.permute.xlu0 %848
          %850 = vrot.lane.b32.xlu0 %v774, 125
          %v851 = vpop.permute.xlu0 %850
          %852 = vrot.lane.b32.xlu0 %v775, 125
          %v853 = vpop.permute.xlu0 %852
          %854 = vrot.lane.b32.xlu0 %v776, 125
          %v855 = vpop.permute.xlu0 %854
          %856 = vrot.lane.b32.xlu0 %v777, 125
          %v857 = vpop.permute.xlu0 %856
          %858 = vrot.lane.b32.xlu0 %v778, 125
          %v859 = vpop.permute.xlu0 %858
          %860 = vrot.lane.b32.xlu0 %v779, 125
          %v861 = vpop.permute.xlu0 %860
          %862 = vrot.lane.b32.xlu0 %v780, 125
          %v863 = vpop.permute.xlu0 %862
          %864 = vrot.lane.b32.xlu0 %v781, 125
          %v865 = vpop.permute.xlu0 %864
          %866 = vrot.lane.b32.xlu0 %v782, 125
          %v867 = vpop.permute.xlu0 %866
          %868 = vrot.lane.b32.xlu0 %v783, 125
          %v869 = vpop.permute.xlu0 %868
          %870 = vrot.lane.b32.xlu0 %v784, 125
          %v871 = vpop.permute.xlu0 %870
          %872 = vrot.lane.b32.xlu0 %v785, 125
          %v873 = vpop.permute.xlu0 %872
          %874 = vrot.lane.b32.xlu0 %v786, 125
          %v875 = vpop.permute.xlu0 %874
          %876 = vrot.lane.b32.xlu0 %v787, 125
          %v877 = vpop.permute.xlu0 %876
          %878 = vrot.lane.b32.xlu0 %v788, 125
          %v879 = vpop.permute.xlu0 %878
          %880 = vrot.lane.b32.xlu0 %v789, 125
          %v881 = vpop.permute.xlu0 %880
          %882 = vrot.lane.b32.xlu0 %v790, 125
          %v883 = vpop.permute.xlu0 %882
          %884 = vrot.lane.b32.xlu0 %v791, 125
          %v885 = vpop.permute.xlu0 %884
          %886 = vrot.lane.b32.xlu0 %v792, 125
          %v887 = vpop.permute.xlu0 %886
          %888 = vrot.lane.b32.xlu0 %v793, 125
          %v889 = vpop.permute.xlu0 %888
          %vm922 = vcmask 7168
          %v923 = vsel %vm922, %v827, 0.0
          %v924 = vsel %vm922, %v829, 0.0
          %v925 = vadd.f32 %v923, %v924
          %v926 = vsel %vm922, %v831, 0.0
          %v927 = vadd.f32 %v925, %v926
          %v928 = vsel %vm922, %v833, 0.0
          %v929 = vadd.f32 %v927, %v928
          %v930 = vsel %vm922, %v835, 0.0
          %v931 = vadd.f32 %v929, %v930
          %v932 = vsel %vm922, %v837, 0.0
          %v933 = vadd.f32 %v931, %v932
          %v934 = vsel %vm922, %v839, 0.0
          %v935 = vadd.f32 %v933, %v934
          %v936 = vsel %vm922, %v841, 0.0
          %v937 = vadd.f32 %v935, %v936
          %v938 = vsel %vm922, %v843, 0.0
          %v939 = vadd.f32 %v937, %v938
          %v940 = vsel %vm922, %v845, 0.0
          %v941 = vadd.f32 %v939, %v940
          %v942 = vsel %vm922, %v847, 0.0
          %v943 = vadd.f32 %v941, %v942
          %v944 = vsel %vm922, %v849, 0.0
          %v945 = vadd.f32 %v943, %v944
          %v946 = vsel %vm922, %v851, 0.0
          %v947 = vadd.f32 %v945, %v946
          %v948 = vsel %vm922, %v853, 0.0
          %v949 = vadd.f32 %v947, %v948
          %v950 = vsel %vm922, %v855, 0.0
          %v951 = vadd.f32 %v949, %v950
          %v952 = vsel %vm922, %v857, 0.0
          %v953 = vadd.f32 %v951, %v952
          %v954 = vsel %vm922, %v859, 0.0
          %v955 = vadd.f32 %v953, %v954
          %v956 = vsel %vm922, %v861, 0.0
          %v957 = vadd.f32 %v955, %v956
          %v958 = vsel %vm922, %v863, 0.0
          %v959 = vadd.f32 %v957, %v958
          %v960 = vsel %vm922, %v865, 0.0
          %v961 = vadd.f32 %v959, %v960
          %v962 = vsel %vm922, %v867, 0.0
          %v963 = vadd.f32 %v961, %v962
          %v964 = vsel %vm922, %v869, 0.0
          %v965 = vadd.f32 %v963, %v964
          %v966 = vsel %vm922, %v871, 0.0
          %v967 = vadd.f32 %v965, %v966
          %v968 = vsel %vm922, %v873, 0.0
          %v969 = vadd.f32 %v967, %v968
          %v970 = vsel %vm922, %v875, 0.0
          %v971 = vadd.f32 %v969, %v970
          %v972 = vsel %vm922, %v877, 0.0
          %v973 = vadd.f32 %v971, %v972
          %v974 = vsel %vm922, %v879, 0.0
          %v975 = vadd.f32 %v973, %v974
          %v976 = vsel %vm922, %v881, 0.0
          %v977 = vadd.f32 %v975, %v976
          %v978 = vsel %vm922, %v883, 0.0
          %v979 = vadd.f32 %v977, %v978
          %v980 = vsel %vm922, %v885, 0.0
          %v981 = vadd.f32 %v979, %v980
          %v982 = vsel %vm922, %v887, 0.0
          %v983 = vadd.f32 %v981, %v982
          %v984 = vsel %vm922, %v889, 0.0
          %v985 = vadd.f32 %v983, %v984
          %986 = vadd.xlane.f32.xlu0 %v985
          %v987 = vpop.xlane.xlu0 %986
          %v988 = vrot.slane %v987, 4
          %v989 = vadd.f32 %v987, %v988
          %v990 = vrot.slane %v989, 2
          %v991 = vadd.f32 %v989, %v990
          %v992 = vrot.slane %v991, 1
          %v993 = vadd.f32 %v991, %v992
          %s994 = vtos %v993
          %1027 = vrot.lane.b32.xlu0 %v250, 1
          %v1028 = vpop.permute.xlu0 %1027
          %1029 = vrot.lane.b32.xlu0 %v251, 1
          %v1030 = vpop.permute.xlu0 %1029
          %1031 = vrot.lane.b32.xlu0 %v252, 1
          %v1032 = vpop.permute.xlu0 %1031
          %1033 = vrot.lane.b32.xlu0 %v253, 1
          %v1034 = vpop.permute.xlu0 %1033
          %1035 = vrot.lane.b32.xlu0 %v254, 1
          %v1036 = vpop.permute.xlu0 %1035
          %1037 = vrot.lane.b32.xlu0 %v255, 1
          %v1038 = vpop.permute.xlu0 %1037
          %1039 = vrot.lane.b32.xlu0 %v256, 1
          %v1040 = vpop.permute.xlu0 %1039
          %1041 = vrot.lane.b32.xlu0 %v257, 1
          %v1042 = vpop.permute.xlu0 %1041
          %1043 = vrot.lane.b32.xlu0 %v258, 1
          %v1044 = vpop.permute.xlu0 %1043
          %1045 = vrot.lane.b32.xlu0 %v259, 1
          %v1046 = vpop.permute.xlu0 %1045
          %1047 = vrot.lane.b32.xlu0 %v260, 1
          %v1048 = vpop.permute.xlu0 %1047
          %1049 = vrot.lane.b32.xlu0 %v261, 1
          %v1050 = vpop.permute.xlu0 %1049
          %1051 = vrot.lane.b32.xlu0 %v262, 1
          %v1052 = vpop.permute.xlu0 %1051
          %1053 = vrot.lane.b32.xlu0 %v263, 1
          %v1054 = vpop.permute.xlu0 %1053
          %1055 = vrot.lane.b32.xlu0 %v264, 1
          %v1056 = vpop.permute.xlu0 %1055
          %1057 = vrot.lane.b32.xlu0 %v265, 1
          %v1058 = vpop.permute.xlu0 %1057
          %1059 = vrot.lane.b32.xlu0 %v266, 1
          %v1060 = vpop.permute.xlu0 %1059
          %1061 = vrot.lane.b32.xlu0 %v267, 1
          %v1062 = vpop.permute.xlu0 %1061
          %1063 = vrot.lane.b32.xlu0 %v268, 1
          %v1064 = vpop.permute.xlu0 %1063
          %1065 = vrot.lane.b32.xlu0 %v269, 1
          %v1066 = vpop.permute.xlu0 %1065
          %1067 = vrot.lane.b32.xlu0 %v270, 1
          %v1068 = vpop.permute.xlu0 %1067
          %1069 = vrot.lane.b32.xlu0 %v271, 1
          %v1070 = vpop.permute.xlu0 %1069
          %1071 = vrot.lane.b32.xlu0 %v272, 1
          %v1072 = vpop.permute.xlu0 %1071
          %1073 = vrot.lane.b32.xlu0 %v273, 1
          %v1074 = vpop.permute.xlu0 %1073
          %1075 = vrot.lane.b32.xlu0 %v274, 1
          %v1076 = vpop.permute.xlu0 %1075
          %1077 = vrot.lane.b32.xlu0 %v275, 1
          %v1078 = vpop.permute.xlu0 %1077
          %1079 = vrot.lane.b32.xlu0 %v276, 1
          %v1080 = vpop.permute.xlu0 %1079
          %1081 = vrot.lane.b32.xlu0 %v277, 1
          %v1082 = vpop.permute.xlu0 %1081
          %1083 = vrot.lane.b32.xlu0 %v278, 1
          %v1084 = vpop.permute.xlu0 %1083
          %1085 = vrot.lane.b32.xlu0 %v279, 1
          %v1086 = vpop.permute.xlu0 %1085
          %1087 = vrot.lane.b32.xlu0 %v280, 1
          %v1088 = vpop.permute.xlu0 %1087
          %1089 = vrot.lane.b32.xlu0 %v281, 1
          %v1090 = vpop.permute.xlu0 %1089
          %v1123 = vsel %vm314, %v1028, 0.0
          %v1124 = vsel %vm315, %v1030, 0.0
          %v1125 = vsel %vm316, %v1032, 0.0
          %v1126 = vsel %vm317, %v1034, 0.0
          %v1127 = vsel %vm318, %v1036, 0.0
          %v1128 = vsel %vm319, %v1038, 0.0
          %v1129 = vsel %vm320, %v1040, 0.0
          %v1130 = vsel %vm321, %v1042, 0.0
          %v1131 = vsel %vm322, %v1044, 0.0
          %v1132 = vsel %vm323, %v1046, 0.0
          %v1133 = vsel %vm324, %v1048, 0.0
          %v1134 = vsel %vm325, %v1050, 0.0
          %v1135 = vsel %vm326, %v1052, 0.0
          %v1136 = vsel %vm327, %v1054, 0.0
          %v1137 = vsel %vm328, %v1056, 0.0
          %v1138 = vsel %vm329, %v1058, 0.0
          %v1139 = vsel %vm330, %v1060, 0.0
          %v1140 = vsel %vm331, %v1062, 0.0
          %v1141 = vsel %vm332, %v1064, 0.0
          %v1142 = vsel %vm333, %v1066, 0.0
          %v1143 = vsel %vm334, %v1068, 0.0
          %v1144 = vsel %vm335, %v1070, 0.0
          %v1145 = vsel %vm336, %v1072, 0.0
          %v1146 = vsel %vm337, %v1074, 0.0
          %v1147 = vsel %vm338, %v1076, 0.0
          %v1148 = vsel %vm339, %v1078, 0.0
          %v1149 = vsel %vm340, %v1080, 0.0
          %v1150 = vsel %vm341, %v1082, 0.0
          %v1151 = vsel %vm342, %v1084, 0.0
          %v1152 = vsel %vm343, %v1086, 0.0
          %v1153 = vsel %vm344, %v1088, 0.0
          %v1154 = vsel %vm345, %v1090, 0.0
          %v1155 = vrsqrt.pop %v1123
          %v1156 = vmul.f32 %v1123, %v1155
          %vm1157 = vcmp.eq.f32.partialorder %v1123, inf
          %v1158 = vsel %vm1157, %v1123, %v1156
          %vm1159 = vcmp.eq.f32.partialorder %v1123, 0.0
          %v1160 = vand.u32 %v1123, 2147483648
          %v1161 = vsel %vm1159, %v1160, %v1158
          %v1162 = vrsqrt.pop %v1124
          %v1163 = vmul.f32 %v1124, %v1162
          %vm1164 = vcmp.eq.f32.partialorder %v1124, inf
          %v1165 = vsel %vm1164, %v1124, %v1163
          %vm1166 = vcmp.eq.f32.partialorder %v1124, 0.0
          %v1167 = vand.u32 %v1124, 2147483648
          %v1168 = vsel %vm1166, %v1167, %v1165
          %v1169 = vrsqrt.pop %v1125
          %v1170 = vmul.f32 %v1125, %v1169
          %vm1171 = vcmp.eq.f32.partialorder %v1125, inf
          %v1172 = vsel %vm1171, %v1125, %v1170
          %vm1173 = vcmp.eq.f32.partialorder %v1125, 0.0
          %v1174 = vand.u32 %v1125, 2147483648
          %v1175 = vsel %vm1173, %v1174, %v1172
          %v1176 = vrsqrt.pop %v1126
          %v1177 = vmul.f32 %v1126, %v1176
          %vm1178 = vcmp.eq.f32.partialorder %v1126, inf
          %v1179 = vsel %vm1178, %v1126, %v1177
          %vm1180 = vcmp.eq.f32.partialorder %v1126, 0.0
          %v1181 = vand.u32 %v1126, 2147483648
          %v1182 = vsel %vm1180, %v1181, %v1179
          %v1183 = vrsqrt.pop %v1127
          %v1184 = vmul.f32 %v1127, %v1183
          %vm1185 = vcmp.eq.f32.partialorder %v1127, inf
          %v1186 = vsel %vm1185, %v1127, %v1184
          %vm1187 = vcmp.eq.f32.partialorder %v1127, 0.0
          %v1188 = vand.u32 %v1127, 2147483648
          %v1189 = vsel %vm1187, %v1188, %v1186
          %v1190 = vrsqrt.pop %v1128
          %v1191 = vmul.f32 %v1128, %v1190
          %vm1192 = vcmp.eq.f32.partialorder %v1128, inf
          %v1193 = vsel %vm1192, %v1128, %v1191
          %vm1194 = vcmp.eq.f32.partialorder %v1128, 0.0
          %v1195 = vand.u32 %v1128, 2147483648
          %v1196 = vsel %vm1194, %v1195, %v1193
          %v1197 = vrsqrt.pop %v1129
          %v1198 = vmul.f32 %v1129, %v1197
          %vm1199 = vcmp.eq.f32.partialorder %v1129, inf
          %v1200 = vsel %vm1199, %v1129, %v1198
          %vm1201 = vcmp.eq.f32.partialorder %v1129, 0.0
          %v1202 = vand.u32 %v1129, 2147483648
          %v1203 = vsel %vm1201, %v1202, %v1200
          %v1204 = vrsqrt.pop %v1130
          %v1205 = vmul.f32 %v1130, %v1204
          %vm1206 = vcmp.eq.f32.partialorder %v1130, inf
          %v1207 = vsel %vm1206, %v1130, %v1205
          %vm1208 = vcmp.eq.f32.partialorder %v1130, 0.0
          %v1209 = vand.u32 %v1130, 2147483648
          %v1210 = vsel %vm1208, %v1209, %v1207
          %v1211 = vrsqrt.pop %v1131
          %v1212 = vmul.f32 %v1131, %v1211
          %vm1213 = vcmp.eq.f32.partialorder %v1131, inf
          %v1214 = vsel %vm1213, %v1131, %v1212
          %vm1215 = vcmp.eq.f32.partialorder %v1131, 0.0
          %v1216 = vand.u32 %v1131, 2147483648
          %v1217 = vsel %vm1215, %v1216, %v1214
          %v1218 = vrsqrt.pop %v1132
          %v1219 = vmul.f32 %v1132, %v1218
          %vm1220 = vcmp.eq.f32.partialorder %v1132, inf
          %v1221 = vsel %vm1220, %v1132, %v1219
          %vm1222 = vcmp.eq.f32.partialorder %v1132, 0.0
          %v1223 = vand.u32 %v1132, 2147483648
          %v1224 = vsel %vm1222, %v1223, %v1221
          %v1225 = vrsqrt.pop %v1133
          %v1226 = vmul.f32 %v1133, %v1225
          %vm1227 = vcmp.eq.f32.partialorder %v1133, inf
          %v1228 = vsel %vm1227, %v1133, %v1226
          %vm1229 = vcmp.eq.f32.partialorder %v1133, 0.0
          %v1230 = vand.u32 %v1133, 2147483648
          %v1231 = vsel %vm1229, %v1230, %v1228
          %v1232 = vrsqrt.pop %v1134
          %v1233 = vmul.f32 %v1134, %v1232
          %vm1234 = vcmp.eq.f32.partialorder %v1134, inf
          %v1235 = vsel %vm1234, %v1134, %v1233
          %vm1236 = vcmp.eq.f32.partialorder %v1134, 0.0
          %v1237 = vand.u32 %v1134, 2147483648
          %v1238 = vsel %vm1236, %v1237, %v1235
          %v1239 = vrsqrt.pop %v1135
          %v1240 = vmul.f32 %v1135, %v1239
          %vm1241 = vcmp.eq.f32.partialorder %v1135, inf
          %v1242 = vsel %vm1241, %v1135, %v1240
          %vm1243 = vcmp.eq.f32.partialorder %v1135, 0.0
          %v1244 = vand.u32 %v1135, 2147483648
          %v1245 = vsel %vm1243, %v1244, %v1242
          %v1246 = vrsqrt.pop %v1136
          %v1247 = vmul.f32 %v1136, %v1246
          %vm1248 = vcmp.eq.f32.partialorder %v1136, inf
          %v1249 = vsel %vm1248, %v1136, %v1247
          %vm1250 = vcmp.eq.f32.partialorder %v1136, 0.0
          %v1251 = vand.u32 %v1136, 2147483648
          %v1252 = vsel %vm1250, %v1251, %v1249
          %v1253 = vrsqrt.pop %v1137
          %v1254 = vmul.f32 %v1137, %v1253
          %vm1255 = vcmp.eq.f32.partialorder %v1137, inf
          %v1256 = vsel %vm1255, %v1137, %v1254
          %vm1257 = vcmp.eq.f32.partialorder %v1137, 0.0
          %v1258 = vand.u32 %v1137, 2147483648
          %v1259 = vsel %vm1257, %v1258, %v1256
          %v1260 = vrsqrt.pop %v1138
          %v1261 = vmul.f32 %v1138, %v1260
          %vm1262 = vcmp.eq.f32.partialorder %v1138, inf
          %v1263 = vsel %vm1262, %v1138, %v1261
          %vm1264 = vcmp.eq.f32.partialorder %v1138, 0.0
          %v1265 = vand.u32 %v1138, 2147483648
          %v1266 = vsel %vm1264, %v1265, %v1263
          %v1267 = vrsqrt.pop %v1139
          %v1268 = vmul.f32 %v1139, %v1267
          %vm1269 = vcmp.eq.f32.partialorder %v1139, inf
          %v1270 = vsel %vm1269, %v1139, %v1268
          %vm1271 = vcmp.eq.f32.partialorder %v1139, 0.0
          %v1272 = vand.u32 %v1139, 2147483648
          %v1273 = vsel %vm1271, %v1272, %v1270
          %v1274 = vrsqrt.pop %v1140
          %v1275 = vmul.f32 %v1140, %v1274
          %vm1276 = vcmp.eq.f32.partialorder %v1140, inf
          %v1277 = vsel %vm1276, %v1140, %v1275
          %vm1278 = vcmp.eq.f32.partialorder %v1140, 0.0
          %v1279 = vand.u32 %v1140, 2147483648
          %v1280 = vsel %vm1278, %v1279, %v1277
          %v1281 = vrsqrt.pop %v1141
          %v1282 = vmul.f32 %v1141, %v1281
          %vm1283 = vcmp.eq.f32.partialorder %v1141, inf
          %v1284 = vsel %vm1283, %v1141, %v1282
          %vm1285 = vcmp.eq.f32.partialorder %v1141, 0.0
          %v1286 = vand.u32 %v1141, 2147483648
          %v1287 = vsel %vm1285, %v1286, %v1284
          %v1288 = vrsqrt.pop %v1142
          %v1289 = vmul.f32 %v1142, %v1288
          %vm1290 = vcmp.eq.f32.partialorder %v1142, inf
          %v1291 = vsel %vm1290, %v1142, %v1289
          %vm1292 = vcmp.eq.f32.partialorder %v1142, 0.0
          %v1293 = vand.u32 %v1142, 2147483648
          %v1294 = vsel %vm1292, %v1293, %v1291
          %v1295 = vrsqrt.pop %v1143
          %v1296 = vmul.f32 %v1143, %v1295
          %vm1297 = vcmp.eq.f32.partialorder %v1143, inf
          %v1298 = vsel %vm1297, %v1143, %v1296
          %vm1299 = vcmp.eq.f32.partialorder %v1143, 0.0
          %v1300 = vand.u32 %v1143, 2147483648
          %v1301 = vsel %vm1299, %v1300, %v1298
          %v1302 = vrsqrt.pop %v1144
          %v1303 = vmul.f32 %v1144, %v1302
          %vm1304 = vcmp.eq.f32.partialorder %v1144, inf
          %v1305 = vsel %vm1304, %v1144, %v1303
          %vm1306 = vcmp.eq.f32.partialorder %v1144, 0.0
          %v1307 = vand.u32 %v1144, 2147483648
          %v1308 = vsel %vm1306, %v1307, %v1305
          %v1309 = vrsqrt.pop %v1145
          %v1310 = vmul.f32 %v1145, %v1309
          %vm1311 = vcmp.eq.f32.partialorder %v1145, inf
          %v1312 = vsel %vm1311, %v1145, %v1310
          %vm1313 = vcmp.eq.f32.partialorder %v1145, 0.0
          %v1314 = vand.u32 %v1145, 2147483648
          %v1315 = vsel %vm1313, %v1314, %v1312
          %v1316 = vrsqrt.pop %v1146
          %v1317 = vmul.f32 %v1146, %v1316
          %vm1318 = vcmp.eq.f32.partialorder %v1146, inf
          %v1319 = vsel %vm1318, %v1146, %v1317
          %vm1320 = vcmp.eq.f32.partialorder %v1146, 0.0
          %v1321 = vand.u32 %v1146, 2147483648
          %v1322 = vsel %vm1320, %v1321, %v1319
          %v1323 = vrsqrt.pop %v1147
          %v1324 = vmul.f32 %v1147, %v1323
          %vm1325 = vcmp.eq.f32.partialorder %v1147, inf
          %v1326 = vsel %vm1325, %v1147, %v1324
          %vm1327 = vcmp.eq.f32.partialorder %v1147, 0.0
          %v1328 = vand.u32 %v1147, 2147483648
          %v1329 = vsel %vm1327, %v1328, %v1326
          %v1330 = vrsqrt.pop %v1148
          %v1331 = vmul.f32 %v1148, %v1330
          %vm1332 = vcmp.eq.f32.partialorder %v1148, inf
          %v1333 = vsel %vm1332, %v1148, %v1331
          %vm1334 = vcmp.eq.f32.partialorder %v1148, 0.0
          %v1335 = vand.u32 %v1148, 2147483648
          %v1336 = vsel %vm1334, %v1335, %v1333
          %v1337 = vrsqrt.pop %v1149
          %v1338 = vmul.f32 %v1149, %v1337
          %vm1339 = vcmp.eq.f32.partialorder %v1149, inf
          %v1340 = vsel %vm1339, %v1149, %v1338
          %vm1341 = vcmp.eq.f32.partialorder %v1149, 0.0
          %v1342 = vand.u32 %v1149, 2147483648
          %v1343 = vsel %vm1341, %v1342, %v1340
          %v1344 = vrsqrt.pop %v1150
          %v1345 = vmul.f32 %v1150, %v1344
          %vm1346 = vcmp.eq.f32.partialorder %v1150, inf
          %v1347 = vsel %vm1346, %v1150, %v1345
          %vm1348 = vcmp.eq.f32.partialorder %v1150, 0.0
          %v1349 = vand.u32 %v1150, 2147483648
          %v1350 = vsel %vm1348, %v1349, %v1347
          %v1351 = vrsqrt.pop %v1151
          %v1352 = vmul.f32 %v1151, %v1351
          %vm1353 = vcmp.eq.f32.partialorder %v1151, inf
          %v1354 = vsel %vm1353, %v1151, %v1352
          %vm1355 = vcmp.eq.f32.partialorder %v1151, 0.0
          %v1356 = vand.u32 %v1151, 2147483648
          %v1357 = vsel %vm1355, %v1356, %v1354
          %v1358 = vrsqrt.pop %v1152
          %v1359 = vmul.f32 %v1152, %v1358
          %vm1360 = vcmp.eq.f32.partialorder %v1152, inf
          %v1361 = vsel %vm1360, %v1152, %v1359
          %vm1362 = vcmp.eq.f32.partialorder %v1152, 0.0
          %v1363 = vand.u32 %v1152, 2147483648
          %v1364 = vsel %vm1362, %v1363, %v1361
          %v1365 = vrsqrt.pop %v1153
          %v1366 = vmul.f32 %v1153, %v1365
          %vm1367 = vcmp.eq.f32.partialorder %v1153, inf
          %v1368 = vsel %vm1367, %v1153, %v1366
          %vm1369 = vcmp.eq.f32.partialorder %v1153, 0.0
          %v1370 = vand.u32 %v1153, 2147483648
          %v1371 = vsel %vm1369, %v1370, %v1368
          %v1372 = vrsqrt.pop %v1154
          %v1373 = vmul.f32 %v1154, %v1372
          %vm1374 = vcmp.eq.f32.partialorder %v1154, inf
          %v1375 = vsel %vm1374, %v1154, %v1373
          %vm1376 = vcmp.eq.f32.partialorder %v1154, 0.0
          %v1377 = vand.u32 %v1154, 2147483648
          %v1378 = vsel %vm1376, %v1377, %v1375
          %1411 = vrot.lane.b32.xlu0 %v282, 1
          %v1412 = vpop.permute.xlu0 %1411
          %1413 = vrot.lane.b32.xlu0 %v283, 1
          %v1414 = vpop.permute.xlu0 %1413
          %1415 = vrot.lane.b32.xlu0 %v284, 1
          %v1416 = vpop.permute.xlu0 %1415
          %1417 = vrot.lane.b32.xlu0 %v285, 1
          %v1418 = vpop.permute.xlu0 %1417
          %1419 = vrot.lane.b32.xlu0 %v286, 1
          %v1420 = vpop.permute.xlu0 %1419
          %1421 = vrot.lane.b32.xlu0 %v287, 1
          %v1422 = vpop.permute.xlu0 %1421
          %1423 = vrot.lane.b32.xlu0 %v288, 1
          %v1424 = vpop.permute.xlu0 %1423
          %1425 = vrot.lane.b32.xlu0 %v289, 1
          %v1426 = vpop.permute.xlu0 %1425
          %1427 = vrot.lane.b32.xlu0 %v290, 1
          %v1428 = vpop.permute.xlu0 %1427
          %1429 = vrot.lane.b32.xlu0 %v291, 1
          %v1430 = vpop.permute.xlu0 %1429
          %1431 = vrot.lane.b32.xlu0 %v292, 1
          %v1432 = vpop.permute.xlu0 %1431
          %1433 = vrot.lane.b32.xlu0 %v293, 1
          %v1434 = vpop.permute.xlu0 %1433
          %1435 = vrot.lane.b32.xlu0 %v294, 1
          %v1436 = vpop.permute.xlu0 %1435
          %1437 = vrot.lane.b32.xlu0 %v295, 1
          %v1438 = vpop.permute.xlu0 %1437
          %1439 = vrot.lane.b32.xlu0 %v296, 1
          %v1440 = vpop.permute.xlu0 %1439
          %1441 = vrot.lane.b32.xlu0 %v297, 1
          %v1442 = vpop.permute.xlu0 %1441
          %1443 = vrot.lane.b32.xlu0 %v298, 1
          %v1444 = vpop.permute.xlu0 %1443
          %1445 = vrot.lane.b32.xlu0 %v299, 1
          %v1446 = vpop.permute.xlu0 %1445
          %1447 = vrot.lane.b32.xlu0 %v300, 1
          %v1448 = vpop.permute.xlu0 %1447
          %1449 = vrot.lane.b32.xlu0 %v301, 1
          %v1450 = vpop.permute.xlu0 %1449
          %1451 = vrot.lane.b32.xlu0 %v302, 1
          %v1452 = vpop.permute.xlu0 %1451
          %1453 = vrot.lane.b32.xlu0 %v303, 1
          %v1454 = vpop.permute.xlu0 %1453
          %1455 = vrot.lane.b32.xlu0 %v304, 1
          %v1456 = vpop.permute.xlu0 %1455
          %1457 = vrot.lane.b32.xlu0 %v305, 1
          %v1458 = vpop.permute.xlu0 %1457
          %1459 = vrot.lane.b32.xlu0 %v306, 1
          %v1460 = vpop.permute.xlu0 %1459
          %1461 = vrot.lane.b32.xlu0 %v307, 1
          %v1462 = vpop.permute.xlu0 %1461
          %1463 = vrot.lane.b32.xlu0 %v308, 1
          %v1464 = vpop.permute.xlu0 %1463
          %1465 = vrot.lane.b32.xlu0 %v309, 1
          %v1466 = vpop.permute.xlu0 %1465
          %1467 = vrot.lane.b32.xlu0 %v310, 1
          %v1468 = vpop.permute.xlu0 %1467
          %1469 = vrot.lane.b32.xlu0 %v311, 1
          %v1470 = vpop.permute.xlu0 %1469
          %1471 = vrot.lane.b32.xlu0 %v312, 1
          %v1472 = vpop.permute.xlu0 %1471
          %1473 = vrot.lane.b32.xlu0 %v313, 1
          %v1474 = vpop.permute.xlu0 %1473
          %v1507 = vsel %vm314, %v1412, 0.0
          %v1508 = vsel %vm315, %v1414, 0.0
          %v1509 = vsel %vm316, %v1416, 0.0
          %v1510 = vsel %vm317, %v1418, 0.0
          %v1511 = vsel %vm318, %v1420, 0.0
          %v1512 = vsel %vm319, %v1422, 0.0
          %v1513 = vsel %vm320, %v1424, 0.0
          %v1514 = vsel %vm321, %v1426, 0.0
          %v1515 = vsel %vm322, %v1428, 0.0
          %v1516 = vsel %vm323, %v1430, 0.0
          %v1517 = vsel %vm324, %v1432, 0.0
          %v1518 = vsel %vm325, %v1434, 0.0
          %v1519 = vsel %vm326, %v1436, 0.0
          %v1520 = vsel %vm327, %v1438, 0.0
          %v1521 = vsel %vm328, %v1440, 0.0
          %v1522 = vsel %vm329, %v1442, 0.0
          %v1523 = vsel %vm330, %v1444, 0.0
          %v1524 = vsel %vm331, %v1446, 0.0
          %v1525 = vsel %vm332, %v1448, 0.0
          %v1526 = vsel %vm333, %v1450, 0.0
          %v1527 = vsel %vm334, %v1452, 0.0
          %v1528 = vsel %vm335, %v1454, 0.0
          %v1529 = vsel %vm336, %v1456, 0.0
          %v1530 = vsel %vm337, %v1458, 0.0
          %v1531 = vsel %vm338, %v1460, 0.0
          %v1532 = vsel %vm339, %v1462, 0.0
          %v1533 = vsel %vm340, %v1464, 0.0
          %v1534 = vsel %vm341, %v1466, 0.0
          %v1535 = vsel %vm342, %v1468, 0.0
          %v1536 = vsel %vm343, %v1470, 0.0
          %v1537 = vsel %vm344, %v1472, 0.0
          %v1538 = vsel %vm345, %v1474, 0.0
          %v1539 = vrsqrt.pop %v1507
          %v1540 = vmul.f32 %v1507, %v1539
          %vm1541 = vcmp.eq.f32.partialorder %v1507, inf
          %v1542 = vsel %vm1541, %v1507, %v1540
          %vm1543 = vcmp.eq.f32.partialorder %v1507, 0.0
          %v1544 = vand.u32 %v1507, 2147483648
          %v1545 = vsel %vm1543, %v1544, %v1542
          %v1546 = vrsqrt.pop %v1508
          %v1547 = vmul.f32 %v1508, %v1546
          %vm1548 = vcmp.eq.f32.partialorder %v1508, inf
          %v1549 = vsel %vm1548, %v1508, %v1547
          %vm1550 = vcmp.eq.f32.partialorder %v1508, 0.0
          %v1551 = vand.u32 %v1508, 2147483648
          %v1552 = vsel %vm1550, %v1551, %v1549
          %v1553 = vrsqrt.pop %v1509
          %v1554 = vmul.f32 %v1509, %v1553
          %vm1555 = vcmp.eq.f32.partialorder %v1509, inf
          %v1556 = vsel %vm1555, %v1509, %v1554
          %vm1557 = vcmp.eq.f32.partialorder %v1509, 0.0
          %v1558 = vand.u32 %v1509, 2147483648
          %v1559 = vsel %vm1557, %v1558, %v1556
          %v1560 = vrsqrt.pop %v1510
          %v1561 = vmul.f32 %v1510, %v1560
          %vm1562 = vcmp.eq.f32.partialorder %v1510, inf
          %v1563 = vsel %vm1562, %v1510, %v1561
          %vm1564 = vcmp.eq.f32.partialorder %v1510, 0.0
          %v1565 = vand.u32 %v1510, 2147483648
          %v1566 = vsel %vm1564, %v1565, %v1563
          %v1567 = vrsqrt.pop %v1511
          %v1568 = vmul.f32 %v1511, %v1567
          %vm1569 = vcmp.eq.f32.partialorder %v1511, inf
          %v1570 = vsel %vm1569, %v1511, %v1568
          %vm1571 = vcmp.eq.f32.partialorder %v1511, 0.0
          %v1572 = vand.u32 %v1511, 2147483648
          %v1573 = vsel %vm1571, %v1572, %v1570
          %v1574 = vrsqrt.pop %v1512
          %v1575 = vmul.f32 %v1512, %v1574
          %vm1576 = vcmp.eq.f32.partialorder %v1512, inf
          %v1577 = vsel %vm1576, %v1512, %v1575
          %vm1578 = vcmp.eq.f32.partialorder %v1512, 0.0
          %v1579 = vand.u32 %v1512, 2147483648
          %v1580 = vsel %vm1578, %v1579, %v1577
          %v1581 = vrsqrt.pop %v1513
          %v1582 = vmul.f32 %v1513, %v1581
          %vm1583 = vcmp.eq.f32.partialorder %v1513, inf
          %v1584 = vsel %vm1583, %v1513, %v1582
          %vm1585 = vcmp.eq.f32.partialorder %v1513, 0.0
          %v1586 = vand.u32 %v1513, 2147483648
          %v1587 = vsel %vm1585, %v1586, %v1584
          %v1588 = vrsqrt.pop %v1514
          %v1589 = vmul.f32 %v1514, %v1588
          %vm1590 = vcmp.eq.f32.partialorder %v1514, inf
          %v1591 = vsel %vm1590, %v1514, %v1589
          %vm1592 = vcmp.eq.f32.partialorder %v1514, 0.0
          %v1593 = vand.u32 %v1514, 2147483648
          %v1594 = vsel %vm1592, %v1593, %v1591
          %v1595 = vrsqrt.pop %v1515
          %v1596 = vmul.f32 %v1515, %v1595
          %vm1597 = vcmp.eq.f32.partialorder %v1515, inf
          %v1598 = vsel %vm1597, %v1515, %v1596
          %vm1599 = vcmp.eq.f32.partialorder %v1515, 0.0
          %v1600 = vand.u32 %v1515, 2147483648
          %v1601 = vsel %vm1599, %v1600, %v1598
          %v1602 = vrsqrt.pop %v1516
          %v1603 = vmul.f32 %v1516, %v1602
          %vm1604 = vcmp.eq.f32.partialorder %v1516, inf
          %v1605 = vsel %vm1604, %v1516, %v1603
          %vm1606 = vcmp.eq.f32.partialorder %v1516, 0.0
          %v1607 = vand.u32 %v1516, 2147483648
          %v1608 = vsel %vm1606, %v1607, %v1605
          %v1609 = vrsqrt.pop %v1517
          %v1610 = vmul.f32 %v1517, %v1609
          %vm1611 = vcmp.eq.f32.partialorder %v1517, inf
          %v1612 = vsel %vm1611, %v1517, %v1610
          %vm1613 = vcmp.eq.f32.partialorder %v1517, 0.0
          %v1614 = vand.u32 %v1517, 2147483648
          %v1615 = vsel %vm1613, %v1614, %v1612
          %v1616 = vrsqrt.pop %v1518
          %v1617 = vmul.f32 %v1518, %v1616
          %vm1618 = vcmp.eq.f32.partialorder %v1518, inf
          %v1619 = vsel %vm1618, %v1518, %v1617
          %vm1620 = vcmp.eq.f32.partialorder %v1518, 0.0
          %v1621 = vand.u32 %v1518, 2147483648
          %v1622 = vsel %vm1620, %v1621, %v1619
          %v1623 = vrsqrt.pop %v1519
          %v1624 = vmul.f32 %v1519, %v1623
          %vm1625 = vcmp.eq.f32.partialorder %v1519, inf
          %v1626 = vsel %vm1625, %v1519, %v1624
          %vm1627 = vcmp.eq.f32.partialorder %v1519, 0.0
          %v1628 = vand.u32 %v1519, 2147483648
          %v1629 = vsel %vm1627, %v1628, %v1626
          %v1630 = vrsqrt.pop %v1520
          %v1631 = vmul.f32 %v1520, %v1630
          %vm1632 = vcmp.eq.f32.partialorder %v1520, inf
          %v1633 = vsel %vm1632, %v1520, %v1631
          %vm1634 = vcmp.eq.f32.partialorder %v1520, 0.0
          %v1635 = vand.u32 %v1520, 2147483648
          %v1636 = vsel %vm1634, %v1635, %v1633
          %v1637 = vrsqrt.pop %v1521
          %v1638 = vmul.f32 %v1521, %v1637
          %vm1639 = vcmp.eq.f32.partialorder %v1521, inf
          %v1640 = vsel %vm1639, %v1521, %v1638
          %vm1641 = vcmp.eq.f32.partialorder %v1521, 0.0
          %v1642 = vand.u32 %v1521, 2147483648
          %v1643 = vsel %vm1641, %v1642, %v1640
          %v1644 = vrsqrt.pop %v1522
          %v1645 = vmul.f32 %v1522, %v1644
          %vm1646 = vcmp.eq.f32.partialorder %v1522, inf
          %v1647 = vsel %vm1646, %v1522, %v1645
          %vm1648 = vcmp.eq.f32.partialorder %v1522, 0.0
          %v1649 = vand.u32 %v1522, 2147483648
          %v1650 = vsel %vm1648, %v1649, %v1647
          %v1651 = vrsqrt.pop %v1523
          %v1652 = vmul.f32 %v1523, %v1651
          %vm1653 = vcmp.eq.f32.partialorder %v1523, inf
          %v1654 = vsel %vm1653, %v1523, %v1652
          %vm1655 = vcmp.eq.f32.partialorder %v1523, 0.0
          %v1656 = vand.u32 %v1523, 2147483648
          %v1657 = vsel %vm1655, %v1656, %v1654
          %v1658 = vrsqrt.pop %v1524
          %v1659 = vmul.f32 %v1524, %v1658
          %vm1660 = vcmp.eq.f32.partialorder %v1524, inf
          %v1661 = vsel %vm1660, %v1524, %v1659
          %vm1662 = vcmp.eq.f32.partialorder %v1524, 0.0
          %v1663 = vand.u32 %v1524, 2147483648
          %v1664 = vsel %vm1662, %v1663, %v1661
          %v1665 = vrsqrt.pop %v1525
          %v1666 = vmul.f32 %v1525, %v1665
          %vm1667 = vcmp.eq.f32.partialorder %v1525, inf
          %v1668 = vsel %vm1667, %v1525, %v1666
          %vm1669 = vcmp.eq.f32.partialorder %v1525, 0.0
          %v1670 = vand.u32 %v1525, 2147483648
          %v1671 = vsel %vm1669, %v1670, %v1668
          %v1672 = vrsqrt.pop %v1526
          %v1673 = vmul.f32 %v1526, %v1672
          %vm1674 = vcmp.eq.f32.partialorder %v1526, inf
          %v1675 = vsel %vm1674, %v1526, %v1673
          %vm1676 = vcmp.eq.f32.partialorder %v1526, 0.0
          %v1677 = vand.u32 %v1526, 2147483648
          %v1678 = vsel %vm1676, %v1677, %v1675
          %v1679 = vrsqrt.pop %v1527
          %v1680 = vmul.f32 %v1527, %v1679
          %vm1681 = vcmp.eq.f32.partialorder %v1527, inf
          %v1682 = vsel %vm1681, %v1527, %v1680
          %vm1683 = vcmp.eq.f32.partialorder %v1527, 0.0
          %v1684 = vand.u32 %v1527, 2147483648
          %v1685 = vsel %vm1683, %v1684, %v1682
          %v1686 = vrsqrt.pop %v1528
          %v1687 = vmul.f32 %v1528, %v1686
          %vm1688 = vcmp.eq.f32.partialorder %v1528, inf
          %v1689 = vsel %vm1688, %v1528, %v1687
          %vm1690 = vcmp.eq.f32.partialorder %v1528, 0.0
          %v1691 = vand.u32 %v1528, 2147483648
          %v1692 = vsel %vm1690, %v1691, %v1689
          %v1693 = vrsqrt.pop %v1529
          %v1694 = vmul.f32 %v1529, %v1693
          %vm1695 = vcmp.eq.f32.partialorder %v1529, inf
          %v1696 = vsel %vm1695, %v1529, %v1694
          %vm1697 = vcmp.eq.f32.partialorder %v1529, 0.0
          %v1698 = vand.u32 %v1529, 2147483648
          %v1699 = vsel %vm1697, %v1698, %v1696
          %v1700 = vrsqrt.pop %v1530
          %v1701 = vmul.f32 %v1530, %v1700
          %vm1702 = vcmp.eq.f32.partialorder %v1530, inf
          %v1703 = vsel %vm1702, %v1530, %v1701
          %vm1704 = vcmp.eq.f32.partialorder %v1530, 0.0
          %v1705 = vand.u32 %v1530, 2147483648
          %v1706 = vsel %vm1704, %v1705, %v1703
          %v1707 = vrsqrt.pop %v1531
          %v1708 = vmul.f32 %v1531, %v1707
          %vm1709 = vcmp.eq.f32.partialorder %v1531, inf
          %v1710 = vsel %vm1709, %v1531, %v1708
          %vm1711 = vcmp.eq.f32.partialorder %v1531, 0.0
          %v1712 = vand.u32 %v1531, 2147483648
          %v1713 = vsel %vm1711, %v1712, %v1710
          %v1714 = vrsqrt.pop %v1532
          %v1715 = vmul.f32 %v1532, %v1714
          %vm1716 = vcmp.eq.f32.partialorder %v1532, inf
          %v1717 = vsel %vm1716, %v1532, %v1715
          %vm1718 = vcmp.eq.f32.partialorder %v1532, 0.0
          %v1719 = vand.u32 %v1532, 2147483648
          %v1720 = vsel %vm1718, %v1719, %v1717
          %v1721 = vrsqrt.pop %v1533
          %v1722 = vmul.f32 %v1533, %v1721
          %vm1723 = vcmp.eq.f32.partialorder %v1533, inf
          %v1724 = vsel %vm1723, %v1533, %v1722
          %vm1725 = vcmp.eq.f32.partialorder %v1533, 0.0
          %v1726 = vand.u32 %v1533, 2147483648
          %v1727 = vsel %vm1725, %v1726, %v1724
          %v1728 = vrsqrt.pop %v1534
          %v1729 = vmul.f32 %v1534, %v1728
          %vm1730 = vcmp.eq.f32.partialorder %v1534, inf
          %v1731 = vsel %vm1730, %v1534, %v1729
          %vm1732 = vcmp.eq.f32.partialorder %v1534, 0.0
          %v1733 = vand.u32 %v1534, 2147483648
          %v1734 = vsel %vm1732, %v1733, %v1731
          %v1735 = vrsqrt.pop %v1535
          %v1736 = vmul.f32 %v1535, %v1735
          %vm1737 = vcmp.eq.f32.partialorder %v1535, inf
          %v1738 = vsel %vm1737, %v1535, %v1736
          %vm1739 = vcmp.eq.f32.partialorder %v1535, 0.0
          %v1740 = vand.u32 %v1535, 2147483648
          %v1741 = vsel %vm1739, %v1740, %v1738
          %v1742 = vrsqrt.pop %v1536
          %v1743 = vmul.f32 %v1536, %v1742
          %vm1744 = vcmp.eq.f32.partialorder %v1536, inf
          %v1745 = vsel %vm1744, %v1536, %v1743
          %vm1746 = vcmp.eq.f32.partialorder %v1536, 0.0
          %v1747 = vand.u32 %v1536, 2147483648
          %v1748 = vsel %vm1746, %v1747, %v1745
          %v1749 = vrsqrt.pop %v1537
          %v1750 = vmul.f32 %v1537, %v1749
          %vm1751 = vcmp.eq.f32.partialorder %v1537, inf
          %v1752 = vsel %vm1751, %v1537, %v1750
          %vm1753 = vcmp.eq.f32.partialorder %v1537, 0.0
          %v1754 = vand.u32 %v1537, 2147483648
          %v1755 = vsel %vm1753, %v1754, %v1752
          %v1756 = vrsqrt.pop %v1538
          %v1757 = vmul.f32 %v1538, %v1756
          %vm1758 = vcmp.eq.f32.partialorder %v1538, inf
          %v1759 = vsel %vm1758, %v1538, %v1757
          %vm1760 = vcmp.eq.f32.partialorder %v1538, 0.0
          %v1761 = vand.u32 %v1538, 2147483648
          %v1762 = vsel %vm1760, %v1761, %v1759
          %v1763 = vsub.f32 %v1161, %v1545
          %v1764 = vsub.f32 %v1168, %v1552
          %v1765 = vsub.f32 %v1175, %v1559
          %v1766 = vsub.f32 %v1182, %v1566
          %v1767 = vsub.f32 %v1189, %v1573
          %v1768 = vsub.f32 %v1196, %v1580
          %v1769 = vsub.f32 %v1203, %v1587
          %v1770 = vsub.f32 %v1210, %v1594
          %v1771 = vsub.f32 %v1217, %v1601
          %v1772 = vsub.f32 %v1224, %v1608
          %v1773 = vsub.f32 %v1231, %v1615
          %v1774 = vsub.f32 %v1238, %v1622
          %v1775 = vsub.f32 %v1245, %v1629
          %v1776 = vsub.f32 %v1252, %v1636
          %v1777 = vsub.f32 %v1259, %v1643
          %v1778 = vsub.f32 %v1266, %v1650
          %v1779 = vsub.f32 %v1273, %v1657
          %v1780 = vsub.f32 %v1280, %v1664
          %v1781 = vsub.f32 %v1287, %v1671
          %v1782 = vsub.f32 %v1294, %v1678
          %v1783 = vsub.f32 %v1301, %v1685
          %v1784 = vsub.f32 %v1308, %v1692
          %v1785 = vsub.f32 %v1315, %v1699
          %v1786 = vsub.f32 %v1322, %v1706
          %v1787 = vsub.f32 %v1329, %v1713
          %v1788 = vsub.f32 %v1336, %v1720
          %v1789 = vsub.f32 %v1343, %v1727
          %v1790 = vsub.f32 %v1350, %v1734
          %v1791 = vsub.f32 %v1357, %v1741
          %v1792 = vsub.f32 %v1364, %v1748
          %v1793 = vsub.f32 %v1371, %v1755
          %v1794 = vsub.f32 %v1378, %v1762
          %v1795 = vsel %vm314, %v250, 0.0
          %v1796 = vsel %vm315, %v251, 0.0
          %v1797 = vsel %vm316, %v252, 0.0
          %v1798 = vsel %vm317, %v253, 0.0
          %v1799 = vsel %vm318, %v254, 0.0
          %v1800 = vsel %vm319, %v255, 0.0
          %v1801 = vsel %vm320, %v256, 0.0
          %v1802 = vsel %vm321, %v257, 0.0
          %v1803 = vsel %vm322, %v258, 0.0
          %v1804 = vsel %vm323, %v259, 0.0
          %v1805 = vsel %vm324, %v260, 0.0
          %v1806 = vsel %vm325, %v261, 0.0
          %v1807 = vsel %vm326, %v262, 0.0
          %v1808 = vsel %vm327, %v263, 0.0
          %v1809 = vsel %vm328, %v264, 0.0
          %v1810 = vsel %vm329, %v265, 0.0
          %v1811 = vsel %vm330, %v266, 0.0
          %v1812 = vsel %vm331, %v267, 0.0
          %v1813 = vsel %vm332, %v268, 0.0
          %v1814 = vsel %vm333, %v269, 0.0
          %v1815 = vsel %vm334, %v270, 0.0
          %v1816 = vsel %vm335, %v271, 0.0
          %v1817 = vsel %vm336, %v272, 0.0
          %v1818 = vsel %vm337, %v273, 0.0
          %v1819 = vsel %vm338, %v274, 0.0
          %v1820 = vsel %vm339, %v275, 0.0
          %v1821 = vsel %vm340, %v276, 0.0
          %v1822 = vsel %vm341, %v277, 0.0
          %v1823 = vsel %vm342, %v278, 0.0
          %v1824 = vsel %vm343, %v279, 0.0
          %v1825 = vsel %vm344, %v280, 0.0
          %v1826 = vsel %vm345, %v281, 0.0
          %v1827 = vrsqrt.pop %v1795
          %v1828 = vmul.f32 %v1795, %v1827
          %vm1829 = vcmp.eq.f32.partialorder %v1795, inf
          %v1830 = vsel %vm1829, %v1795, %v1828
          %vm1831 = vcmp.eq.f32.partialorder %v1795, 0.0
          %v1832 = vand.u32 %v1795, 2147483648
          %v1833 = vsel %vm1831, %v1832, %v1830
          %v1834 = vrsqrt.pop %v1796
          %v1835 = vmul.f32 %v1796, %v1834
          %vm1836 = vcmp.eq.f32.partialorder %v1796, inf
          %v1837 = vsel %vm1836, %v1796, %v1835
          %vm1838 = vcmp.eq.f32.partialorder %v1796, 0.0
          %v1839 = vand.u32 %v1796, 2147483648
          %v1840 = vsel %vm1838, %v1839, %v1837
          %v1841 = vrsqrt.pop %v1797
          %v1842 = vmul.f32 %v1797, %v1841
          %vm1843 = vcmp.eq.f32.partialorder %v1797, inf
          %v1844 = vsel %vm1843, %v1797, %v1842
          %vm1845 = vcmp.eq.f32.partialorder %v1797, 0.0
          %v1846 = vand.u32 %v1797, 2147483648
          %v1847 = vsel %vm1845, %v1846, %v1844
          %v1848 = vrsqrt.pop %v1798
          %v1849 = vmul.f32 %v1798, %v1848
          %vm1850 = vcmp.eq.f32.partialorder %v1798, inf
          %v1851 = vsel %vm1850, %v1798, %v1849
          %vm1852 = vcmp.eq.f32.partialorder %v1798, 0.0
          %v1853 = vand.u32 %v1798, 2147483648
          %v1854 = vsel %vm1852, %v1853, %v1851
          %v1855 = vrsqrt.pop %v1799
          %v1856 = vmul.f32 %v1799, %v1855
          %vm1857 = vcmp.eq.f32.partialorder %v1799, inf
          %v1858 = vsel %vm1857, %v1799, %v1856
          %vm1859 = vcmp.eq.f32.partialorder %v1799, 0.0
          %v1860 = vand.u32 %v1799, 2147483648
          %v1861 = vsel %vm1859, %v1860, %v1858
          %v1862 = vrsqrt.pop %v1800
          %v1863 = vmul.f32 %v1800, %v1862
          %vm1864 = vcmp.eq.f32.partialorder %v1800, inf
          %v1865 = vsel %vm1864, %v1800, %v1863
          %vm1866 = vcmp.eq.f32.partialorder %v1800, 0.0
          %v1867 = vand.u32 %v1800, 2147483648
          %v1868 = vsel %vm1866, %v1867, %v1865
          %v1869 = vrsqrt.pop %v1801
          %v1870 = vmul.f32 %v1801, %v1869
          %vm1871 = vcmp.eq.f32.partialorder %v1801, inf
          %v1872 = vsel %vm1871, %v1801, %v1870
          %vm1873 = vcmp.eq.f32.partialorder %v1801, 0.0
          %v1874 = vand.u32 %v1801, 2147483648
          %v1875 = vsel %vm1873, %v1874, %v1872
          %v1876 = vrsqrt.pop %v1802
          %v1877 = vmul.f32 %v1802, %v1876
          %vm1878 = vcmp.eq.f32.partialorder %v1802, inf
          %v1879 = vsel %vm1878, %v1802, %v1877
          %vm1880 = vcmp.eq.f32.partialorder %v1802, 0.0
          %v1881 = vand.u32 %v1802, 2147483648
          %v1882 = vsel %vm1880, %v1881, %v1879
          %v1883 = vrsqrt.pop %v1803
          %v1884 = vmul.f32 %v1803, %v1883
          %vm1885 = vcmp.eq.f32.partialorder %v1803, inf
          %v1886 = vsel %vm1885, %v1803, %v1884
          %vm1887 = vcmp.eq.f32.partialorder %v1803, 0.0
          %v1888 = vand.u32 %v1803, 2147483648
          %v1889 = vsel %vm1887, %v1888, %v1886
          %v1890 = vrsqrt.pop %v1804
          %v1891 = vmul.f32 %v1804, %v1890
          %vm1892 = vcmp.eq.f32.partialorder %v1804, inf
          %v1893 = vsel %vm1892, %v1804, %v1891
          %vm1894 = vcmp.eq.f32.partialorder %v1804, 0.0
          %v1895 = vand.u32 %v1804, 2147483648
          %v1896 = vsel %vm1894, %v1895, %v1893
          %v1897 = vrsqrt.pop %v1805
          %v1898 = vmul.f32 %v1805, %v1897
          %vm1899 = vcmp.eq.f32.partialorder %v1805, inf
          %v1900 = vsel %vm1899, %v1805, %v1898
          %vm1901 = vcmp.eq.f32.partialorder %v1805, 0.0
          %v1902 = vand.u32 %v1805, 2147483648
          %v1903 = vsel %vm1901, %v1902, %v1900
          %v1904 = vrsqrt.pop %v1806
          %v1905 = vmul.f32 %v1806, %v1904
          %vm1906 = vcmp.eq.f32.partialorder %v1806, inf
          %v1907 = vsel %vm1906, %v1806, %v1905
          %vm1908 = vcmp.eq.f32.partialorder %v1806, 0.0
          %v1909 = vand.u32 %v1806, 2147483648
          %v1910 = vsel %vm1908, %v1909, %v1907
          %v1911 = vrsqrt.pop %v1807
          %v1912 = vmul.f32 %v1807, %v1911
          %vm1913 = vcmp.eq.f32.partialorder %v1807, inf
          %v1914 = vsel %vm1913, %v1807, %v1912
          %vm1915 = vcmp.eq.f32.partialorder %v1807, 0.0
          %v1916 = vand.u32 %v1807, 2147483648
          %v1917 = vsel %vm1915, %v1916, %v1914
          %v1918 = vrsqrt.pop %v1808
          %v1919 = vmul.f32 %v1808, %v1918
          %vm1920 = vcmp.eq.f32.partialorder %v1808, inf
          %v1921 = vsel %vm1920, %v1808, %v1919
          %vm1922 = vcmp.eq.f32.partialorder %v1808, 0.0
          %v1923 = vand.u32 %v1808, 2147483648
          %v1924 = vsel %vm1922, %v1923, %v1921
          %v1925 = vrsqrt.pop %v1809
          %v1926 = vmul.f32 %v1809, %v1925
          %vm1927 = vcmp.eq.f32.partialorder %v1809, inf
          %v1928 = vsel %vm1927, %v1809, %v1926
          %vm1929 = vcmp.eq.f32.partialorder %v1809, 0.0
          %v1930 = vand.u32 %v1809, 2147483648
          %v1931 = vsel %vm1929, %v1930, %v1928
          %v1932 = vrsqrt.pop %v1810
          %v1933 = vmul.f32 %v1810, %v1932
          %vm1934 = vcmp.eq.f32.partialorder %v1810, inf
          %v1935 = vsel %vm1934, %v1810, %v1933
          %vm1936 = vcmp.eq.f32.partialorder %v1810, 0.0
          %v1937 = vand.u32 %v1810, 2147483648
          %v1938 = vsel %vm1936, %v1937, %v1935
          %v1939 = vrsqrt.pop %v1811
          %v1940 = vmul.f32 %v1811, %v1939
          %vm1941 = vcmp.eq.f32.partialorder %v1811, inf
          %v1942 = vsel %vm1941, %v1811, %v1940
          %vm1943 = vcmp.eq.f32.partialorder %v1811, 0.0
          %v1944 = vand.u32 %v1811, 2147483648
          %v1945 = vsel %vm1943, %v1944, %v1942
          %v1946 = vrsqrt.pop %v1812
          %v1947 = vmul.f32 %v1812, %v1946
          %vm1948 = vcmp.eq.f32.partialorder %v1812, inf
          %v1949 = vsel %vm1948, %v1812, %v1947
          %vm1950 = vcmp.eq.f32.partialorder %v1812, 0.0
          %v1951 = vand.u32 %v1812, 2147483648
          %v1952 = vsel %vm1950, %v1951, %v1949
          %v1953 = vrsqrt.pop %v1813
          %v1954 = vmul.f32 %v1813, %v1953
          %vm1955 = vcmp.eq.f32.partialorder %v1813, inf
          %v1956 = vsel %vm1955, %v1813, %v1954
          %vm1957 = vcmp.eq.f32.partialorder %v1813, 0.0
          %v1958 = vand.u32 %v1813, 2147483648
          %v1959 = vsel %vm1957, %v1958, %v1956
          %v1960 = vrsqrt.pop %v1814
          %v1961 = vmul.f32 %v1814, %v1960
          %vm1962 = vcmp.eq.f32.partialorder %v1814, inf
          %v1963 = vsel %vm1962, %v1814, %v1961
          %vm1964 = vcmp.eq.f32.partialorder %v1814, 0.0
          %v1965 = vand.u32 %v1814, 2147483648
          %v1966 = vsel %vm1964, %v1965, %v1963
          %v1967 = vrsqrt.pop %v1815
          %v1968 = vmul.f32 %v1815, %v1967
          %vm1969 = vcmp.eq.f32.partialorder %v1815, inf
          %v1970 = vsel %vm1969, %v1815, %v1968
          %vm1971 = vcmp.eq.f32.partialorder %v1815, 0.0
          %v1972 = vand.u32 %v1815, 2147483648
          %v1973 = vsel %vm1971, %v1972, %v1970
          %v1974 = vrsqrt.pop %v1816
          %v1975 = vmul.f32 %v1816, %v1974
          %vm1976 = vcmp.eq.f32.partialorder %v1816, inf
          %v1977 = vsel %vm1976, %v1816, %v1975
          %vm1978 = vcmp.eq.f32.partialorder %v1816, 0.0
          %v1979 = vand.u32 %v1816, 2147483648
          %v1980 = vsel %vm1978, %v1979, %v1977
          %v1981 = vrsqrt.pop %v1817
          %v1982 = vmul.f32 %v1817, %v1981
          %vm1983 = vcmp.eq.f32.partialorder %v1817, inf
          %v1984 = vsel %vm1983, %v1817, %v1982
          %vm1985 = vcmp.eq.f32.partialorder %v1817, 0.0
          %v1986 = vand.u32 %v1817, 2147483648
          %v1987 = vsel %vm1985, %v1986, %v1984
          %v1988 = vrsqrt.pop %v1818
          %v1989 = vmul.f32 %v1818, %v1988
          %vm1990 = vcmp.eq.f32.partialorder %v1818, inf
          %v1991 = vsel %vm1990, %v1818, %v1989
          %vm1992 = vcmp.eq.f32.partialorder %v1818, 0.0
          %v1993 = vand.u32 %v1818, 2147483648
          %v1994 = vsel %vm1992, %v1993, %v1991
          %v1995 = vrsqrt.pop %v1819
          %v1996 = vmul.f32 %v1819, %v1995
          %vm1997 = vcmp.eq.f32.partialorder %v1819, inf
          %v1998 = vsel %vm1997, %v1819, %v1996
          %vm1999 = vcmp.eq.f32.partialorder %v1819, 0.0
          %v2000 = vand.u32 %v1819, 2147483648
          %v2001 = vsel %vm1999, %v2000, %v1998
          %v2002 = vrsqrt.pop %v1820
          %v2003 = vmul.f32 %v1820, %v2002
          %vm2004 = vcmp.eq.f32.partialorder %v1820, inf
          %v2005 = vsel %vm2004, %v1820, %v2003
          %vm2006 = vcmp.eq.f32.partialorder %v1820, 0.0
          %v2007 = vand.u32 %v1820, 2147483648
          %v2008 = vsel %vm2006, %v2007, %v2005
          %v2009 = vrsqrt.pop %v1821
          %v2010 = vmul.f32 %v1821, %v2009
          %vm2011 = vcmp.eq.f32.partialorder %v1821, inf
          %v2012 = vsel %vm2011, %v1821, %v2010
          %vm2013 = vcmp.eq.f32.partialorder %v1821, 0.0
          %v2014 = vand.u32 %v1821, 2147483648
          %v2015 = vsel %vm2013, %v2014, %v2012
          %v2016 = vrsqrt.pop %v1822
          %v2017 = vmul.f32 %v1822, %v2016
          %vm2018 = vcmp.eq.f32.partialorder %v1822, inf
          %v2019 = vsel %vm2018, %v1822, %v2017
          %vm2020 = vcmp.eq.f32.partialorder %v1822, 0.0
          %v2021 = vand.u32 %v1822, 2147483648
          %v2022 = vsel %vm2020, %v2021, %v2019
          %v2023 = vrsqrt.pop %v1823
          %v2024 = vmul.f32 %v1823, %v2023
          %vm2025 = vcmp.eq.f32.partialorder %v1823, inf
          %v2026 = vsel %vm2025, %v1823, %v2024
          %vm2027 = vcmp.eq.f32.partialorder %v1823, 0.0
          %v2028 = vand.u32 %v1823, 2147483648
          %v2029 = vsel %vm2027, %v2028, %v2026
          %v2030 = vrsqrt.pop %v1824
          %v2031 = vmul.f32 %v1824, %v2030
          %vm2032 = vcmp.eq.f32.partialorder %v1824, inf
          %v2033 = vsel %vm2032, %v1824, %v2031
          %vm2034 = vcmp.eq.f32.partialorder %v1824, 0.0
          %v2035 = vand.u32 %v1824, 2147483648
          %v2036 = vsel %vm2034, %v2035, %v2033
          %v2037 = vrsqrt.pop %v1825
          %v2038 = vmul.f32 %v1825, %v2037
          %vm2039 = vcmp.eq.f32.partialorder %v1825, inf
          %v2040 = vsel %vm2039, %v1825, %v2038
          %vm2041 = vcmp.eq.f32.partialorder %v1825, 0.0
          %v2042 = vand.u32 %v1825, 2147483648
          %v2043 = vsel %vm2041, %v2042, %v2040
          %v2044 = vrsqrt.pop %v1826
          %v2045 = vmul.f32 %v1826, %v2044
          %vm2046 = vcmp.eq.f32.partialorder %v1826, inf
          %v2047 = vsel %vm2046, %v1826, %v2045
          %vm2048 = vcmp.eq.f32.partialorder %v1826, 0.0
          %v2049 = vand.u32 %v1826, 2147483648
          %v2050 = vsel %vm2048, %v2049, %v2047
          %v2051 = vsel %vm314, %v282, 0.0
          %v2052 = vsel %vm315, %v283, 0.0
          %v2053 = vsel %vm316, %v284, 0.0
          %v2054 = vsel %vm317, %v285, 0.0
          %v2055 = vsel %vm318, %v286, 0.0
          %v2056 = vsel %vm319, %v287, 0.0
          %v2057 = vsel %vm320, %v288, 0.0
          %v2058 = vsel %vm321, %v289, 0.0
          %v2059 = vsel %vm322, %v290, 0.0
          %v2060 = vsel %vm323, %v291, 0.0
          %v2061 = vsel %vm324, %v292, 0.0
          %v2062 = vsel %vm325, %v293, 0.0
          %v2063 = vsel %vm326, %v294, 0.0
          %v2064 = vsel %vm327, %v295, 0.0
          %v2065 = vsel %vm328, %v296, 0.0
          %v2066 = vsel %vm329, %v297, 0.0
          %v2067 = vsel %vm330, %v298, 0.0
          %v2068 = vsel %vm331, %v299, 0.0
          %v2069 = vsel %vm332, %v300, 0.0
          %v2070 = vsel %vm333, %v301, 0.0
          %v2071 = vsel %vm334, %v302, 0.0
          %v2072 = vsel %vm335, %v303, 0.0
          %v2073 = vsel %vm336, %v304, 0.0
          %v2074 = vsel %vm337, %v305, 0.0
          %v2075 = vsel %vm338, %v306, 0.0
          %v2076 = vsel %vm339, %v307, 0.0
          %v2077 = vsel %vm340, %v308, 0.0
          %v2078 = vsel %vm341, %v309, 0.0
          %v2079 = vsel %vm342, %v310, 0.0
          %v2080 = vsel %vm343, %v311, 0.0
          %v2081 = vsel %vm344, %v312, 0.0
          %v2082 = vsel %vm345, %v313, 0.0
          %v2083 = vrsqrt.pop %v2051
          %v2084 = vmul.f32 %v2051, %v2083
          %vm2085 = vcmp.eq.f32.partialorder %v2051, inf
          %v2086 = vsel %vm2085, %v2051, %v2084
          %vm2087 = vcmp.eq.f32.partialorder %v2051, 0.0
          %v2088 = vand.u32 %v2051, 2147483648
          %v2089 = vsel %vm2087, %v2088, %v2086
          %v2090 = vrsqrt.pop %v2052
          %v2091 = vmul.f32 %v2052, %v2090
          %vm2092 = vcmp.eq.f32.partialorder %v2052, inf
          %v2093 = vsel %vm2092, %v2052, %v2091
          %vm2094 = vcmp.eq.f32.partialorder %v2052, 0.0
          %v2095 = vand.u32 %v2052, 2147483648
          %v2096 = vsel %vm2094, %v2095, %v2093
          %v2097 = vrsqrt.pop %v2053
          %v2098 = vmul.f32 %v2053, %v2097
          %vm2099 = vcmp.eq.f32.partialorder %v2053, inf
          %v2100 = vsel %vm2099, %v2053, %v2098
          %vm2101 = vcmp.eq.f32.partialorder %v2053, 0.0
          %v2102 = vand.u32 %v2053, 2147483648
          %v2103 = vsel %vm2101, %v2102, %v2100
          %v2104 = vrsqrt.pop %v2054
          %v2105 = vmul.f32 %v2054, %v2104
          %vm2106 = vcmp.eq.f32.partialorder %v2054, inf
          %v2107 = vsel %vm2106, %v2054, %v2105
          %vm2108 = vcmp.eq.f32.partialorder %v2054, 0.0
          %v2109 = vand.u32 %v2054, 2147483648
          %v2110 = vsel %vm2108, %v2109, %v2107
          %v2111 = vrsqrt.pop %v2055
          %v2112 = vmul.f32 %v2055, %v2111
          %vm2113 = vcmp.eq.f32.partialorder %v2055, inf
          %v2114 = vsel %vm2113, %v2055, %v2112
          %vm2115 = vcmp.eq.f32.partialorder %v2055, 0.0
          %v2116 = vand.u32 %v2055, 2147483648
          %v2117 = vsel %vm2115, %v2116, %v2114
          %v2118 = vrsqrt.pop %v2056
          %v2119 = vmul.f32 %v2056, %v2118
          %vm2120 = vcmp.eq.f32.partialorder %v2056, inf
          %v2121 = vsel %vm2120, %v2056, %v2119
          %vm2122 = vcmp.eq.f32.partialorder %v2056, 0.0
          %v2123 = vand.u32 %v2056, 2147483648
          %v2124 = vsel %vm2122, %v2123, %v2121
          %v2125 = vrsqrt.pop %v2057
          %v2126 = vmul.f32 %v2057, %v2125
          %vm2127 = vcmp.eq.f32.partialorder %v2057, inf
          %v2128 = vsel %vm2127, %v2057, %v2126
          %vm2129 = vcmp.eq.f32.partialorder %v2057, 0.0
          %v2130 = vand.u32 %v2057, 2147483648
          %v2131 = vsel %vm2129, %v2130, %v2128
          %v2132 = vrsqrt.pop %v2058
          %v2133 = vmul.f32 %v2058, %v2132
          %vm2134 = vcmp.eq.f32.partialorder %v2058, inf
          %v2135 = vsel %vm2134, %v2058, %v2133
          %vm2136 = vcmp.eq.f32.partialorder %v2058, 0.0
          %v2137 = vand.u32 %v2058, 2147483648
          %v2138 = vsel %vm2136, %v2137, %v2135
          %v2139 = vrsqrt.pop %v2059
          %v2140 = vmul.f32 %v2059, %v2139
          %vm2141 = vcmp.eq.f32.partialorder %v2059, inf
          %v2142 = vsel %vm2141, %v2059, %v2140
          %vm2143 = vcmp.eq.f32.partialorder %v2059, 0.0
          %v2144 = vand.u32 %v2059, 2147483648
          %v2145 = vsel %vm2143, %v2144, %v2142
          %v2146 = vrsqrt.pop %v2060
          %v2147 = vmul.f32 %v2060, %v2146
          %vm2148 = vcmp.eq.f32.partialorder %v2060, inf
          %v2149 = vsel %vm2148, %v2060, %v2147
          %vm2150 = vcmp.eq.f32.partialorder %v2060, 0.0
          %v2151 = vand.u32 %v2060, 2147483648
          %v2152 = vsel %vm2150, %v2151, %v2149
          %v2153 = vrsqrt.pop %v2061
          %v2154 = vmul.f32 %v2061, %v2153
          %vm2155 = vcmp.eq.f32.partialorder %v2061, inf
          %v2156 = vsel %vm2155, %v2061, %v2154
          %vm2157 = vcmp.eq.f32.partialorder %v2061, 0.0
          %v2158 = vand.u32 %v2061, 2147483648
          %v2159 = vsel %vm2157, %v2158, %v2156
          %v2160 = vrsqrt.pop %v2062
          %v2161 = vmul.f32 %v2062, %v2160
          %vm2162 = vcmp.eq.f32.partialorder %v2062, inf
          %v2163 = vsel %vm2162, %v2062, %v2161
          %vm2164 = vcmp.eq.f32.partialorder %v2062, 0.0
          %v2165 = vand.u32 %v2062, 2147483648
          %v2166 = vsel %vm2164, %v2165, %v2163
          %v2167 = vrsqrt.pop %v2063
          %v2168 = vmul.f32 %v2063, %v2167
          %vm2169 = vcmp.eq.f32.partialorder %v2063, inf
          %v2170 = vsel %vm2169, %v2063, %v2168
          %vm2171 = vcmp.eq.f32.partialorder %v2063, 0.0
          %v2172 = vand.u32 %v2063, 2147483648
          %v2173 = vsel %vm2171, %v2172, %v2170
          %v2174 = vrsqrt.pop %v2064
          %v2175 = vmul.f32 %v2064, %v2174
          %vm2176 = vcmp.eq.f32.partialorder %v2064, inf
          %v2177 = vsel %vm2176, %v2064, %v2175
          %vm2178 = vcmp.eq.f32.partialorder %v2064, 0.0
          %v2179 = vand.u32 %v2064, 2147483648
          %v2180 = vsel %vm2178, %v2179, %v2177
          %v2181 = vrsqrt.pop %v2065
          %v2182 = vmul.f32 %v2065, %v2181
          %vm2183 = vcmp.eq.f32.partialorder %v2065, inf
          %v2184 = vsel %vm2183, %v2065, %v2182
          %vm2185 = vcmp.eq.f32.partialorder %v2065, 0.0
          %v2186 = vand.u32 %v2065, 2147483648
          %v2187 = vsel %vm2185, %v2186, %v2184
          %v2188 = vrsqrt.pop %v2066
          %v2189 = vmul.f32 %v2066, %v2188
          %vm2190 = vcmp.eq.f32.partialorder %v2066, inf
          %v2191 = vsel %vm2190, %v2066, %v2189
          %vm2192 = vcmp.eq.f32.partialorder %v2066, 0.0
          %v2193 = vand.u32 %v2066, 2147483648
          %v2194 = vsel %vm2192, %v2193, %v2191
          %v2195 = vrsqrt.pop %v2067
          %v2196 = vmul.f32 %v2067, %v2195
          %vm2197 = vcmp.eq.f32.partialorder %v2067, inf
          %v2198 = vsel %vm2197, %v2067, %v2196
          %vm2199 = vcmp.eq.f32.partialorder %v2067, 0.0
          %v2200 = vand.u32 %v2067, 2147483648
          %v2201 = vsel %vm2199, %v2200, %v2198
          %v2202 = vrsqrt.pop %v2068
          %v2203 = vmul.f32 %v2068, %v2202
          %vm2204 = vcmp.eq.f32.partialorder %v2068, inf
          %v2205 = vsel %vm2204, %v2068, %v2203
          %vm2206 = vcmp.eq.f32.partialorder %v2068, 0.0
          %v2207 = vand.u32 %v2068, 2147483648
          %v2208 = vsel %vm2206, %v2207, %v2205
          %v2209 = vrsqrt.pop %v2069
          %v2210 = vmul.f32 %v2069, %v2209
          %vm2211 = vcmp.eq.f32.partialorder %v2069, inf
          %v2212 = vsel %vm2211, %v2069, %v2210
          %vm2213 = vcmp.eq.f32.partialorder %v2069, 0.0
          %v2214 = vand.u32 %v2069, 2147483648
          %v2215 = vsel %vm2213, %v2214, %v2212
          %v2216 = vrsqrt.pop %v2070
          %v2217 = vmul.f32 %v2070, %v2216
          %vm2218 = vcmp.eq.f32.partialorder %v2070, inf
          %v2219 = vsel %vm2218, %v2070, %v2217
          %vm2220 = vcmp.eq.f32.partialorder %v2070, 0.0
          %v2221 = vand.u32 %v2070, 2147483648
          %v2222 = vsel %vm2220, %v2221, %v2219
          %v2223 = vrsqrt.pop %v2071
          %v2224 = vmul.f32 %v2071, %v2223
          %vm2225 = vcmp.eq.f32.partialorder %v2071, inf
          %v2226 = vsel %vm2225, %v2071, %v2224
          %vm2227 = vcmp.eq.f32.partialorder %v2071, 0.0
          %v2228 = vand.u32 %v2071, 2147483648
          %v2229 = vsel %vm2227, %v2228, %v2226
          %v2230 = vrsqrt.pop %v2072
          %v2231 = vmul.f32 %v2072, %v2230
          %vm2232 = vcmp.eq.f32.partialorder %v2072, inf
          %v2233 = vsel %vm2232, %v2072, %v2231
          %vm2234 = vcmp.eq.f32.partialorder %v2072, 0.0
          %v2235 = vand.u32 %v2072, 2147483648
          %v2236 = vsel %vm2234, %v2235, %v2233
          %v2237 = vrsqrt.pop %v2073
          %v2238 = vmul.f32 %v2073, %v2237
          %vm2239 = vcmp.eq.f32.partialorder %v2073, inf
          %v2240 = vsel %vm2239, %v2073, %v2238
          %vm2241 = vcmp.eq.f32.partialorder %v2073, 0.0
          %v2242 = vand.u32 %v2073, 2147483648
          %v2243 = vsel %vm2241, %v2242, %v2240
          %v2244 = vrsqrt.pop %v2074
          %v2245 = vmul.f32 %v2074, %v2244
          %vm2246 = vcmp.eq.f32.partialorder %v2074, inf
          %v2247 = vsel %vm2246, %v2074, %v2245
          %vm2248 = vcmp.eq.f32.partialorder %v2074, 0.0
          %v2249 = vand.u32 %v2074, 2147483648
          %v2250 = vsel %vm2248, %v2249, %v2247
          %v2251 = vrsqrt.pop %v2075
          %v2252 = vmul.f32 %v2075, %v2251
          %vm2253 = vcmp.eq.f32.partialorder %v2075, inf
          %v2254 = vsel %vm2253, %v2075, %v2252
          %vm2255 = vcmp.eq.f32.partialorder %v2075, 0.0
          %v2256 = vand.u32 %v2075, 2147483648
          %v2257 = vsel %vm2255, %v2256, %v2254
          %v2258 = vrsqrt.pop %v2076
          %v2259 = vmul.f32 %v2076, %v2258
          %vm2260 = vcmp.eq.f32.partialorder %v2076, inf
          %v2261 = vsel %vm2260, %v2076, %v2259
          %vm2262 = vcmp.eq.f32.partialorder %v2076, 0.0
          %v2263 = vand.u32 %v2076, 2147483648
          %v2264 = vsel %vm2262, %v2263, %v2261
          %v2265 = vrsqrt.pop %v2077
          %v2266 = vmul.f32 %v2077, %v2265
          %vm2267 = vcmp.eq.f32.partialorder %v2077, inf
          %v2268 = vsel %vm2267, %v2077, %v2266
          %vm2269 = vcmp.eq.f32.partialorder %v2077, 0.0
          %v2270 = vand.u32 %v2077, 2147483648
          %v2271 = vsel %vm2269, %v2270, %v2268
          %v2272 = vrsqrt.pop %v2078
          %v2273 = vmul.f32 %v2078, %v2272
          %vm2274 = vcmp.eq.f32.partialorder %v2078, inf
          %v2275 = vsel %vm2274, %v2078, %v2273
          %vm2276 = vcmp.eq.f32.partialorder %v2078, 0.0
          %v2277 = vand.u32 %v2078, 2147483648
          %v2278 = vsel %vm2276, %v2277, %v2275
          %v2279 = vrsqrt.pop %v2079
          %v2280 = vmul.f32 %v2079, %v2279
          %vm2281 = vcmp.eq.f32.partialorder %v2079, inf
          %v2282 = vsel %vm2281, %v2079, %v2280
          %vm2283 = vcmp.eq.f32.partialorder %v2079, 0.0
          %v2284 = vand.u32 %v2079, 2147483648
          %v2285 = vsel %vm2283, %v2284, %v2282
          %v2286 = vrsqrt.pop %v2080
          %v2287 = vmul.f32 %v2080, %v2286
          %vm2288 = vcmp.eq.f32.partialorder %v2080, inf
          %v2289 = vsel %vm2288, %v2080, %v2287
          %vm2290 = vcmp.eq.f32.partialorder %v2080, 0.0
          %v2291 = vand.u32 %v2080, 2147483648
          %v2292 = vsel %vm2290, %v2291, %v2289
          %v2293 = vrsqrt.pop %v2081
          %v2294 = vmul.f32 %v2081, %v2293
          %vm2295 = vcmp.eq.f32.partialorder %v2081, inf
          %v2296 = vsel %vm2295, %v2081, %v2294
          %vm2297 = vcmp.eq.f32.partialorder %v2081, 0.0
          %v2298 = vand.u32 %v2081, 2147483648
          %v2299 = vsel %vm2297, %v2298, %v2296
          %v2300 = vrsqrt.pop %v2082
          %v2301 = vmul.f32 %v2082, %v2300
          %vm2302 = vcmp.eq.f32.partialorder %v2082, inf
          %v2303 = vsel %vm2302, %v2082, %v2301
          %vm2304 = vcmp.eq.f32.partialorder %v2082, 0.0
          %v2305 = vand.u32 %v2082, 2147483648
          %v2306 = vsel %vm2304, %v2305, %v2303
          %v2307 = vsub.f32 %v1833, %v2089
          %v2308 = vsub.f32 %v1840, %v2096
          %v2309 = vsub.f32 %v1847, %v2103
          %v2310 = vsub.f32 %v1854, %v2110
          %v2311 = vsub.f32 %v1861, %v2117
          %v2312 = vsub.f32 %v1868, %v2124
          %v2313 = vsub.f32 %v1875, %v2131
          %v2314 = vsub.f32 %v1882, %v2138
          %v2315 = vsub.f32 %v1889, %v2145
          %v2316 = vsub.f32 %v1896, %v2152
          %v2317 = vsub.f32 %v1903, %v2159
          %v2318 = vsub.f32 %v1910, %v2166
          %v2319 = vsub.f32 %v1917, %v2173
          %v2320 = vsub.f32 %v1924, %v2180
          %v2321 = vsub.f32 %v1931, %v2187
          %v2322 = vsub.f32 %v1938, %v2194
          %v2323 = vsub.f32 %v1945, %v2201
          %v2324 = vsub.f32 %v1952, %v2208
          %v2325 = vsub.f32 %v1959, %v2215
          %v2326 = vsub.f32 %v1966, %v2222
          %v2327 = vsub.f32 %v1973, %v2229
          %v2328 = vsub.f32 %v1980, %v2236
          %v2329 = vsub.f32 %v1987, %v2243
          %v2330 = vsub.f32 %v1994, %v2250
          %v2331 = vsub.f32 %v2001, %v2257
          %v2332 = vsub.f32 %v2008, %v2264
          %v2333 = vsub.f32 %v2015, %v2271
          %v2334 = vsub.f32 %v2022, %v2278
          %v2335 = vsub.f32 %v2029, %v2285
          %v2336 = vsub.f32 %v2036, %v2292
          %v2337 = vsub.f32 %v2043, %v2299
          %v2338 = vsub.f32 %v2050, %v2306
          %v2339 = vmul.f32 %v1763, %v1763
          %v2340 = vmul.f32 %v1764, %v1764
          %v2341 = vmul.f32 %v1765, %v1765
          %v2342 = vmul.f32 %v1766, %v1766
          %v2343 = vmul.f32 %v1767, %v1767
          %v2344 = vmul.f32 %v1768, %v1768
          %v2345 = vmul.f32 %v1769, %v1769
          %v2346 = vmul.f32 %v1770, %v1770
          %v2347 = vmul.f32 %v1771, %v1771
          %v2348 = vmul.f32 %v1772, %v1772
          %v2349 = vmul.f32 %v1773, %v1773
          %v2350 = vmul.f32 %v1774, %v1774
          %v2351 = vmul.f32 %v1775, %v1775
          %v2352 = vmul.f32 %v1776, %v1776
          %v2353 = vmul.f32 %v1777, %v1777
          %v2354 = vmul.f32 %v1778, %v1778
          %v2355 = vmul.f32 %v1779, %v1779
          %v2356 = vmul.f32 %v1780, %v1780
          %v2357 = vmul.f32 %v1781, %v1781
          %v2358 = vmul.f32 %v1782, %v1782
          %v2359 = vmul.f32 %v1783, %v1783
          %v2360 = vmul.f32 %v1784, %v1784
          %v2361 = vmul.f32 %v1785, %v1785
          %v2362 = vmul.f32 %v1786, %v1786
          %v2363 = vmul.f32 %v1787, %v1787
          %v2364 = vmul.f32 %v1788, %v1788
          %v2365 = vmul.f32 %v1789, %v1789
          %v2366 = vmul.f32 %v1790, %v1790
          %v2367 = vmul.f32 %v1791, %v1791
          %v2368 = vmul.f32 %v1792, %v1792
          %v2369 = vmul.f32 %v1793, %v1793
          %v2370 = vmul.f32 %v1794, %v1794
          %v2371 = vmul.f32 %v2307, %v2307
          %v2372 = vmul.f32 %v2308, %v2308
          %v2373 = vmul.f32 %v2309, %v2309
          %v2374 = vmul.f32 %v2310, %v2310
          %v2375 = vmul.f32 %v2311, %v2311
          %v2376 = vmul.f32 %v2312, %v2312
          %v2377 = vmul.f32 %v2313, %v2313
          %v2378 = vmul.f32 %v2314, %v2314
          %v2379 = vmul.f32 %v2315, %v2315
          %v2380 = vmul.f32 %v2316, %v2316
          %v2381 = vmul.f32 %v2317, %v2317
          %v2382 = vmul.f32 %v2318, %v2318
          %v2383 = vmul.f32 %v2319, %v2319
          %v2384 = vmul.f32 %v2320, %v2320
          %v2385 = vmul.f32 %v2321, %v2321
          %v2386 = vmul.f32 %v2322, %v2322
          %v2387 = vmul.f32 %v2323, %v2323
          %v2388 = vmul.f32 %v2324, %v2324
          %v2389 = vmul.f32 %v2325, %v2325
          %v2390 = vmul.f32 %v2326, %v2326
          %v2391 = vmul.f32 %v2327, %v2327
          %v2392 = vmul.f32 %v2328, %v2328
          %v2393 = vmul.f32 %v2329, %v2329
          %v2394 = vmul.f32 %v2330, %v2330
          %v2395 = vmul.f32 %v2331, %v2331
          %v2396 = vmul.f32 %v2332, %v2332
          %v2397 = vmul.f32 %v2333, %v2333
          %v2398 = vmul.f32 %v2334, %v2334
          %v2399 = vmul.f32 %v2335, %v2335
          %v2400 = vmul.f32 %v2336, %v2336
          %v2401 = vmul.f32 %v2337, %v2337
          %v2402 = vmul.f32 %v2338, %v2338
          %v2403 = vadd.f32 %v2339, %v2371
          %v2404 = vadd.f32 %v2340, %v2372
          %v2405 = vadd.f32 %v2341, %v2373
          %v2406 = vadd.f32 %v2342, %v2374
          %v2407 = vadd.f32 %v2343, %v2375
          %v2408 = vadd.f32 %v2344, %v2376
          %v2409 = vadd.f32 %v2345, %v2377
          %v2410 = vadd.f32 %v2346, %v2378
          %v2411 = vadd.f32 %v2347, %v2379
          %v2412 = vadd.f32 %v2348, %v2380
          %v2413 = vadd.f32 %v2349, %v2381
          %v2414 = vadd.f32 %v2350, %v2382
          %v2415 = vadd.f32 %v2351, %v2383
          %v2416 = vadd.f32 %v2352, %v2384
          %v2417 = vadd.f32 %v2353, %v2385
          %v2418 = vadd.f32 %v2354, %v2386
          %v2419 = vadd.f32 %v2355, %v2387
          %v2420 = vadd.f32 %v2356, %v2388
          %v2421 = vadd.f32 %v2357, %v2389
          %v2422 = vadd.f32 %v2358, %v2390
          %v2423 = vadd.f32 %v2359, %v2391
          %v2424 = vadd.f32 %v2360, %v2392
          %v2425 = vadd.f32 %v2361, %v2393
          %v2426 = vadd.f32 %v2362, %v2394
          %v2427 = vadd.f32 %v2363, %v2395
          %v2428 = vadd.f32 %v2364, %v2396
          %v2429 = vadd.f32 %v2365, %v2397
          %v2430 = vadd.f32 %v2366, %v2398
          %v2431 = vadd.f32 %v2367, %v2399
          %v2432 = vadd.f32 %v2368, %v2400
          %v2433 = vadd.f32 %v2369, %v2401
          %v2434 = vadd.f32 %v2370, %v2402
          %2467 = vrot.lane.b32.xlu0 %v2403, 125
          %v2468 = vpop.permute.xlu0 %2467
          %2469 = vrot.lane.b32.xlu0 %v2404, 125
          %v2470 = vpop.permute.xlu0 %2469
          %2471 = vrot.lane.b32.xlu0 %v2405, 125
          %v2472 = vpop.permute.xlu0 %2471
          %2473 = vrot.lane.b32.xlu0 %v2406, 125
          %v2474 = vpop.permute.xlu0 %2473
          %2475 = vrot.lane.b32.xlu0 %v2407, 125
          %v2476 = vpop.permute.xlu0 %2475
          %2477 = vrot.lane.b32.xlu0 %v2408, 125
          %v2478 = vpop.permute.xlu0 %2477
          %2479 = vrot.lane.b32.xlu0 %v2409, 125
          %v2480 = vpop.permute.xlu0 %2479
          %2481 = vrot.lane.b32.xlu0 %v2410, 125
          %v2482 = vpop.permute.xlu0 %2481
          %2483 = vrot.lane.b32.xlu0 %v2411, 125
          %v2484 = vpop.permute.xlu0 %2483
          %2485 = vrot.lane.b32.xlu0 %v2412, 125
          %v2486 = vpop.permute.xlu0 %2485
          %2487 = vrot.lane.b32.xlu0 %v2413, 125
          %v2488 = vpop.permute.xlu0 %2487
          %2489 = vrot.lane.b32.xlu0 %v2414, 125
          %v2490 = vpop.permute.xlu0 %2489
          %2491 = vrot.lane.b32.xlu0 %v2415, 125
          %v2492 = vpop.permute.xlu0 %2491
          %2493 = vrot.lane.b32.xlu0 %v2416, 125
          %v2494 = vpop.permute.xlu0 %2493
          %2495 = vrot.lane.b32.xlu0 %v2417, 125
          %v2496 = vpop.permute.xlu0 %2495
          %2497 = vrot.lane.b32.xlu0 %v2418, 125
          %v2498 = vpop.permute.xlu0 %2497
          %2499 = vrot.lane.b32.xlu0 %v2419, 125
          %v2500 = vpop.permute.xlu0 %2499
          %2501 = vrot.lane.b32.xlu0 %v2420, 125
          %v2502 = vpop.permute.xlu0 %2501
          %2503 = vrot.lane.b32.xlu0 %v2421, 125
          %v2504 = vpop.permute.xlu0 %2503
          %2505 = vrot.lane.b32.xlu0 %v2422, 125
          %v2506 = vpop.permute.xlu0 %2505
          %2507 = vrot.lane.b32.xlu0 %v2423, 125
          %v2508 = vpop.permute.xlu0 %2507
          %2509 = vrot.lane.b32.xlu0 %v2424, 125
          %v2510 = vpop.permute.xlu0 %2509
          %2511 = vrot.lane.b32.xlu0 %v2425, 125
          %v2512 = vpop.permute.xlu0 %2511
          %2513 = vrot.lane.b32.xlu0 %v2426, 125
          %v2514 = vpop.permute.xlu0 %2513
          %2515 = vrot.lane.b32.xlu0 %v2427, 125
          %v2516 = vpop.permute.xlu0 %2515
          %2517 = vrot.lane.b32.xlu0 %v2428, 125
          %v2518 = vpop.permute.xlu0 %2517
          %2519 = vrot.lane.b32.xlu0 %v2429, 125
          %v2520 = vpop.permute.xlu0 %2519
          %2521 = vrot.lane.b32.xlu0 %v2430, 125
          %v2522 = vpop.permute.xlu0 %2521
          %2523 = vrot.lane.b32.xlu0 %v2431, 125
          %v2524 = vpop.permute.xlu0 %2523
          %2525 = vrot.lane.b32.xlu0 %v2432, 125
          %v2526 = vpop.permute.xlu0 %2525
          %2527 = vrot.lane.b32.xlu0 %v2433, 125
          %v2528 = vpop.permute.xlu0 %2527
          %2529 = vrot.lane.b32.xlu0 %v2434, 125
          %v2530 = vpop.permute.xlu0 %2529
          %v2563 = vsel %vm922, %v2468, 0.0
          %v2564 = vsel %vm922, %v2470, 0.0
          %v2565 = vadd.f32 %v2563, %v2564
          %v2566 = vsel %vm922, %v2472, 0.0
          %v2567 = vadd.f32 %v2565, %v2566
          %v2568 = vsel %vm922, %v2474, 0.0
          %v2569 = vadd.f32 %v2567, %v2568
          %v2570 = vsel %vm922, %v2476, 0.0
          %v2571 = vadd.f32 %v2569, %v2570
          %v2572 = vsel %vm922, %v2478, 0.0
          %v2573 = vadd.f32 %v2571, %v2572
          %v2574 = vsel %vm922, %v2480, 0.0
          %v2575 = vadd.f32 %v2573, %v2574
          %v2576 = vsel %vm922, %v2482, 0.0
          %v2577 = vadd.f32 %v2575, %v2576
          %v2578 = vsel %vm922, %v2484, 0.0
          %v2579 = vadd.f32 %v2577, %v2578
          %v2580 = vsel %vm922, %v2486, 0.0
          %v2581 = vadd.f32 %v2579, %v2580
          %v2582 = vsel %vm922, %v2488, 0.0
          %v2583 = vadd.f32 %v2581, %v2582
          %v2584 = vsel %vm922, %v2490, 0.0
          %v2585 = vadd.f32 %v2583, %v2584
          %v2586 = vsel %vm922, %v2492, 0.0
          %v2587 = vadd.f32 %v2585, %v2586
          %v2588 = vsel %vm922, %v2494, 0.0
          %v2589 = vadd.f32 %v2587, %v2588
          %v2590 = vsel %vm922, %v2496, 0.0
          %v2591 = vadd.f32 %v2589, %v2590
          %v2592 = vsel %vm922, %v2498, 0.0
          %v2593 = vadd.f32 %v2591, %v2592
          %v2594 = vsel %vm922, %v2500, 0.0
          %v2595 = vadd.f32 %v2593, %v2594
          %v2596 = vsel %vm922, %v2502, 0.0
          %v2597 = vadd.f32 %v2595, %v2596
          %v2598 = vsel %vm922, %v2504, 0.0
          %v2599 = vadd.f32 %v2597, %v2598
          %v2600 = vsel %vm922, %v2506, 0.0
          %v2601 = vadd.f32 %v2599, %v2600
          %v2602 = vsel %vm922, %v2508, 0.0
          %v2603 = vadd.f32 %v2601, %v2602
          %v2604 = vsel %vm922, %v2510, 0.0
          %v2605 = vadd.f32 %v2603, %v2604
          %v2606 = vsel %vm922, %v2512, 0.0
          %v2607 = vadd.f32 %v2605, %v2606
          %v2608 = vsel %vm922, %v2514, 0.0
          %v2609 = vadd.f32 %v2607, %v2608
          %v2610 = vsel %vm922, %v2516, 0.0
          %v2611 = vadd.f32 %v2609, %v2610
          %v2612 = vsel %vm922, %v2518, 0.0
          %v2613 = vadd.f32 %v2611, %v2612
          %v2614 = vsel %vm922, %v2520, 0.0
          %v2615 = vadd.f32 %v2613, %v2614
          %v2616 = vsel %vm922, %v2522, 0.0
          %v2617 = vadd.f32 %v2615, %v2616
          %v2618 = vsel %vm922, %v2524, 0.0
          %v2619 = vadd.f32 %v2617, %v2618
          %v2620 = vsel %vm922, %v2526, 0.0
          %v2621 = vadd.f32 %v2619, %v2620
          %v2622 = vsel %vm922, %v2528, 0.0
          %v2623 = vadd.f32 %v2621, %v2622
          %v2624 = vsel %vm922, %v2530, 0.0
          %v2625 = vadd.f32 %v2623, %v2624
          %2626 = vadd.xlane.f32.xlu0 %v2625
          %v2627 = vpop.xlane.xlu0 %2626
          %v2628 = vrot.slane %v2627, 4
          %v2629 = vadd.f32 %v2627, %v2628
          %v2630 = vrot.slane %v2629, 2
          %v2631 = vadd.f32 %v2629, %v2630
          %v2632 = vrot.slane %v2631, 1
          %v2633 = vadd.f32 %v2631, %v2632
          %s2634 = vtos %v2633
          %s2635 = scalar_lea.smem [#allocation2], 1
          %2636 = sst [smem:[%s2635]] %s994
          %s2637 = scalar_lea.smem [#allocation2], 2
          %2638 = sst [smem:[%s2637]] %s2634
        $region40: #{tpu_custom_call.1} parent=31 // pred_fallthru
          _
        %p2639 = pnand %p231, %p233
        %p2640 = pneg %p2639
        // Predicated region
        $region41: #{tpu_custom_call.1} parent=31 // pred_check
          _
        $region42: #{tpu_custom_call.1} parent=31 // pred_check_branch
          %2642 = sbr.rel (%p2639) target = $region44
        $region43: #{tpu_custom_call.1} parent=31 // pred_region
          %v2643 = vld [vmem:[%s215] sm:$0xff]
          %v2644 = vld [vmem:[%s215 + $0x8] sm:$0xff]
          %v2645 = vld [vmem:[%s215 + $0x10] sm:$0xff]
          %v2646 = vld [vmem:[%s215 + $0x18] sm:$0xff]
          %v2647 = vld [vmem:[%s215 + $0x20] sm:$0xff]
          %v2648 = vld [vmem:[%s215 + $0x28] sm:$0xff]
          %v2649 = vld [vmem:[%s215 + $0x30] sm:$0xff]
          %v2650 = vld [vmem:[%s215 + $0x38] sm:$0xff]
          %v2651 = vld [vmem:[%s215 + $0x40] sm:$0xff]
          %v2652 = vld [vmem:[%s215 + $0x48] sm:$0xff]
          %v2653 = vld [vmem:[%s215 + $0x50] sm:$0xff]
          %v2654 = vld [vmem:[%s215 + $0x58] sm:$0xff]
          %v2655 = vld [vmem:[%s215 + $0x60] sm:$0xff]
          %v2656 = vld [vmem:[%s215 + $0x68] sm:$0xff]
          %v2657 = vld [vmem:[%s215 + $0x70] sm:$0xff]
          %v2658 = vld [vmem:[%s215 + $0x78] sm:$0xff]
          %v2659 = vld [vmem:[%s215 + $0x80] sm:$0xff]
          %v2660 = vld [vmem:[%s215 + $0x88] sm:$0xff]
          %v2661 = vld [vmem:[%s215 + $0x90] sm:$0xff]
          %v2662 = vld [vmem:[%s215 + $0x98] sm:$0xff]
          %v2663 = vld [vmem:[%s215 + $0xa0] sm:$0xff]
          %v2664 = vld [vmem:[%s215 + $0xa8] sm:$0xff]
          %v2665 = vld [vmem:[%s215 + $0xb0] sm:$0xff]
          %v2666 = vld [vmem:[%s215 + $0xb8] sm:$0xff]
          %v2667 = vld [vmem:[%s215 + $0xc0] sm:$0xff]
          %v2668 = vld [vmem:[%s215 + $0xc8] sm:$0xff]
          %v2669 = vld [vmem:[%s215 + $0xd0] sm:$0xff]
          %v2670 = vld [vmem:[%s215 + $0xd8] sm:$0xff]
          %v2671 = vld [vmem:[%s215 + $0xe0] sm:$0xff]
          %v2672 = vld [vmem:[%s215 + $0xe8] sm:$0xff]
          %v2673 = vld [vmem:[%s215 + $0xf0] sm:$0xff]
          %v2674 = vld [vmem:[%s215 + $0xf8] sm:$0xff]
          %v2675 = vld [vmem:[%s221] sm:$0xff]
          %v2676 = vld [vmem:[%s221 + $0x8] sm:$0xff]
          %v2677 = vld [vmem:[%s221 + $0x10] sm:$0xff]
          %v2678 = vld [vmem:[%s221 + $0x18] sm:$0xff]
          %v2679 = vld [vmem:[%s221 + $0x20] sm:$0xff]
          %v2680 = vld [vmem:[%s221 + $0x28] sm:$0xff]
          %v2681 = vld [vmem:[%s221 + $0x30] sm:$0xff]
          %v2682 = vld [vmem:[%s221 + $0x38] sm:$0xff]
          %v2683 = vld [vmem:[%s221 + $0x40] sm:$0xff]
          %v2684 = vld [vmem:[%s221 + $0x48] sm:$0xff]
          %v2685 = vld [vmem:[%s221 + $0x50] sm:$0xff]
          %v2686 = vld [vmem:[%s221 + $0x58] sm:$0xff]
          %v2687 = vld [vmem:[%s221 + $0x60] sm:$0xff]
          %v2688 = vld [vmem:[%s221 + $0x68] sm:$0xff]
          %v2689 = vld [vmem:[%s221 + $0x70] sm:$0xff]
          %v2690 = vld [vmem:[%s221 + $0x78] sm:$0xff]
          %v2691 = vld [vmem:[%s221 + $0x80] sm:$0xff]
          %v2692 = vld [vmem:[%s221 + $0x88] sm:$0xff]
          %v2693 = vld [vmem:[%s221 + $0x90] sm:$0xff]
          %v2694 = vld [vmem:[%s221 + $0x98] sm:$0xff]
          %v2695 = vld [vmem:[%s221 + $0xa0] sm:$0xff]
          %v2696 = vld [vmem:[%s221 + $0xa8] sm:$0xff]
          %v2697 = vld [vmem:[%s221 + $0xb0] sm:$0xff]
          %v2698 = vld [vmem:[%s221 + $0xb8] sm:$0xff]
          %v2699 = vld [vmem:[%s221 + $0xc0] sm:$0xff]
          %v2700 = vld [vmem:[%s221 + $0xc8] sm:$0xff]
          %v2701 = vld [vmem:[%s221 + $0xd0] sm:$0xff]
          %v2702 = vld [vmem:[%s221 + $0xd8] sm:$0xff]
          %v2703 = vld [vmem:[%s221 + $0xe0] sm:$0xff]
          %v2704 = vld [vmem:[%s221 + $0xe8] sm:$0xff]
          %v2705 = vld [vmem:[%s221 + $0xf0] sm:$0xff]
          %v2706 = vld [vmem:[%s221 + $0xf8] sm:$0xff]
          %v2707 = vld [vmem:[%s227] sm:$0xff]
          %v2708 = vld [vmem:[%s227 + $0x8] sm:$0xff]
          %vm2709 = vcmp.gt.f32.partialorder %v2675, 0.0
          %vm2710 = vcmp.gt.f32.partialorder %v2676, 0.0
          %vm2711 = vcmp.gt.f32.partialorder %v2677, 0.0
          %vm2712 = vcmp.gt.f32.partialorder %v2678, 0.0
          %vm2713 = vcmp.gt.f32.partialorder %v2679, 0.0
          %vm2714 = vcmp.gt.f32.partialorder %v2680, 0.0
          %vm2715 = vcmp.gt.f32.partialorder %v2681, 0.0
          %vm2716 = vcmp.gt.f32.partialorder %v2682, 0.0
          %vm2717 = vcmp.gt.f32.partialorder %v2683, 0.0
          %vm2718 = vcmp.gt.f32.partialorder %v2684, 0.0
          %vm2719 = vcmp.gt.f32.partialorder %v2685, 0.0
          %vm2720 = vcmp.gt.f32.partialorder %v2686, 0.0
          %vm2721 = vcmp.gt.f32.partialorder %v2687, 0.0
          %vm2722 = vcmp.gt.f32.partialorder %v2688, 0.0
          %vm2723 = vcmp.gt.f32.partialorder %v2689, 0.0
          %vm2724 = vcmp.gt.f32.partialorder %v2690, 0.0
          %vm2725 = vcmp.gt.f32.partialorder %v2691, 0.0
          %vm2726 = vcmp.gt.f32.partialorder %v2692, 0.0
          %vm2727 = vcmp.gt.f32.partialorder %v2693, 0.0
          %vm2728 = vcmp.gt.f32.partialorder %v2694, 0.0
          %vm2729 = vcmp.gt.f32.partialorder %v2695, 0.0
          %vm2730 = vcmp.gt.f32.partialorder %v2696, 0.0
          %vm2731 = vcmp.gt.f32.partialorder %v2697, 0.0
          %vm2732 = vcmp.gt.f32.partialorder %v2698, 0.0
          %vm2733 = vcmp.gt.f32.partialorder %v2699, 0.0
          %vm2734 = vcmp.gt.f32.partialorder %v2700, 0.0
          %vm2735 = vcmp.gt.f32.partialorder %v2701, 0.0
          %vm2736 = vcmp.gt.f32.partialorder %v2702, 0.0
          %vm2737 = vcmp.gt.f32.partialorder %v2703, 0.0
          %vm2738 = vcmp.gt.f32.partialorder %v2704, 0.0
          %vm2739 = vcmp.gt.f32.partialorder %v2705, 0.0
          %vm2740 = vcmp.gt.f32.partialorder %v2706, 0.0
          %vm2741 = vcmp.gt.f32.partialorder %v2707, 0.0
          %vm2742 = vcmp.gt.f32.partialorder %v2708, 0.0
          %v2743 = vsel %vm2709, 1, 0
          %v2744 = vsel %vm2710, 1, 0
          %v2745 = vsel %vm2711, 1, 0
          %v2746 = vsel %vm2712, 1, 0
          %v2747 = vsel %vm2713, 1, 0
          %v2748 = vsel %vm2714, 1, 0
          %v2749 = vsel %vm2715, 1, 0
          %v2750 = vsel %vm2716, 1, 0
          %v2751 = vsel %vm2717, 1, 0
          %v2752 = vsel %vm2718, 1, 0
          %v2753 = vsel %vm2719, 1, 0
          %v2754 = vsel %vm2720, 1, 0
          %v2755 = vsel %vm2721, 1, 0
          %v2756 = vsel %vm2722, 1, 0
          %v2757 = vsel %vm2723, 1, 0
          %v2758 = vsel %vm2724, 1, 0
          %v2759 = vsel %vm2725, 1, 0
          %v2760 = vsel %vm2726, 1, 0
          %v2761 = vsel %vm2727, 1, 0
          %v2762 = vsel %vm2728, 1, 0
          %v2763 = vsel %vm2729, 1, 0
          %v2764 = vsel %vm2730, 1, 0
          %v2765 = vsel %vm2731, 1, 0
          %v2766 = vsel %vm2732, 1, 0
          %v2767 = vsel %vm2733, 1, 0
          %v2768 = vsel %vm2734, 1, 0
          %v2769 = vsel %vm2735, 1, 0
          %v2770 = vsel %vm2736, 1, 0
          %v2771 = vsel %vm2737, 1, 0
          %v2772 = vsel %vm2738, 1, 0
          %v2773 = vsel %vm2739, 1, 0
          %v2774 = vsel %vm2740, 1, 0
          %2775 = vset.pattern.permute.xlu0 3
          %2776 = vperm.xlu0 %2775, %v2743
          %v2777 = vpop.permute.xlu0 %2776
          %2778 = vset.pattern.permute.xlu0 3
          %2779 = vperm.xlu0 %2778, %v2744
          %v2780 = vpop.permute.xlu0 %2779
          %2781 = vset.pattern.permute.xlu0 3
          %2782 = vperm.xlu0 %2781, %v2745
          %v2783 = vpop.permute.xlu0 %2782
          %2784 = vset.pattern.permute.xlu0 3
          %2785 = vperm.xlu0 %2784, %v2746
          %v2786 = vpop.permute.xlu0 %2785
          %2787 = vset.pattern.permute.xlu0 3
          %2788 = vperm.xlu0 %2787, %v2747
          %v2789 = vpop.permute.xlu0 %2788
          %2790 = vset.pattern.permute.xlu0 3
          %2791 = vperm.xlu0 %2790, %v2748
          %v2792 = vpop.permute.xlu0 %2791
          %2793 = vset.pattern.permute.xlu0 3
          %2794 = vperm.xlu0 %2793, %v2749
          %v2795 = vpop.permute.xlu0 %2794
          %2796 = vset.pattern.permute.xlu0 3
          %2797 = vperm.xlu0 %2796, %v2750
          %v2798 = vpop.permute.xlu0 %2797
          %2799 = vset.pattern.permute.xlu0 3
          %2800 = vperm.xlu0 %2799, %v2751
          %v2801 = vpop.permute.xlu0 %2800
          %2802 = vset.pattern.permute.xlu0 3
          %2803 = vperm.xlu0 %2802, %v2752
          %v2804 = vpop.permute.xlu0 %2803
          %2805 = vset.pattern.permute.xlu0 3
          %2806 = vperm.xlu0 %2805, %v2753
          %v2807 = vpop.permute.xlu0 %2806
          %2808 = vset.pattern.permute.xlu0 3
          %2809 = vperm.xlu0 %2808, %v2754
          %v2810 = vpop.permute.xlu0 %2809
          %2811 = vset.pattern.permute.xlu0 3
          %2812 = vperm.xlu0 %2811, %v2755
          %v2813 = vpop.permute.xlu0 %2812
          %2814 = vset.pattern.permute.xlu0 3
          %2815 = vperm.xlu0 %2814, %v2756
          %v2816 = vpop.permute.xlu0 %2815
          %2817 = vset.pattern.permute.xlu0 3
          %2818 = vperm.xlu0 %2817, %v2757
          %v2819 = vpop.permute.xlu0 %2818
          %2820 = vset.pattern.permute.xlu0 3
          %2821 = vperm.xlu0 %2820, %v2758
          %v2822 = vpop.permute.xlu0 %2821
          %2823 = vset.pattern.permute.xlu0 3
          %2824 = vperm.xlu0 %2823, %v2759
          %v2825 = vpop.permute.xlu0 %2824
          %2826 = vset.pattern.permute.xlu0 3
          %2827 = vperm.xlu0 %2826, %v2760
          %v2828 = vpop.permute.xlu0 %2827
          %2829 = vset.pattern.permute.xlu0 3
          %2830 = vperm.xlu0 %2829, %v2761
          %v2831 = vpop.permute.xlu0 %2830
          %2832 = vset.pattern.permute.xlu0 3
          %2833 = vperm.xlu0 %2832, %v2762
          %v2834 = vpop.permute.xlu0 %2833
          %2835 = vset.pattern.permute.xlu0 3
          %2836 = vperm.xlu0 %2835, %v2763
          %v2837 = vpop.permute.xlu0 %2836
          %2838 = vset.pattern.permute.xlu0 3
          %2839 = vperm.xlu0 %2838, %v2764
          %v2840 = vpop.permute.xlu0 %2839
          %2841 = vset.pattern.permute.xlu0 3
          %2842 = vperm.xlu0 %2841, %v2765
          %v2843 = vpop.permute.xlu0 %2842
          %2844 = vset.pattern.permute.xlu0 3
          %2845 = vperm.xlu0 %2844, %v2766
          %v2846 = vpop.permute.xlu0 %2845
          %2847 = vset.pattern.permute.xlu0 3
          %2848 = vperm.xlu0 %2847, %v2767
          %v2849 = vpop.permute.xlu0 %2848
          %2850 = vset.pattern.permute.xlu0 3
          %2851 = vperm.xlu0 %2850, %v2768
          %v2852 = vpop.permute.xlu0 %2851
          %2853 = vset.pattern.permute.xlu0 3
          %2854 = vperm.xlu0 %2853, %v2769
          %v2855 = vpop.permute.xlu0 %2854
          %2856 = vset.pattern.permute.xlu0 3
          %2857 = vperm.xlu0 %2856, %v2770
          %v2858 = vpop.permute.xlu0 %2857
          %2859 = vset.pattern.permute.xlu0 3
          %2860 = vperm.xlu0 %2859, %v2771
          %v2861 = vpop.permute.xlu0 %2860
          %2862 = vset.pattern.permute.xlu0 3
          %2863 = vperm.xlu0 %2862, %v2772
          %v2864 = vpop.permute.xlu0 %2863
          %2865 = vset.pattern.permute.xlu0 3
          %2866 = vperm.xlu0 %2865, %v2773
          %v2867 = vpop.permute.xlu0 %2866
          %2868 = vset.pattern.permute.xlu0 3
          %2869 = vperm.xlu0 %2868, %v2774
          %v2870 = vpop.permute.xlu0 %2869
          %vm2871 = vcmp.eq.s32.totalorder %v2777, 1
          %vm2872 = vcmp.eq.s32.totalorder %v2780, 1
          %vm2873 = vcmp.eq.s32.totalorder %v2783, 1
          %vm2874 = vcmp.eq.s32.totalorder %v2786, 1
          %vm2875 = vcmp.eq.s32.totalorder %v2789, 1
          %vm2876 = vcmp.eq.s32.totalorder %v2792, 1
          %vm2877 = vcmp.eq.s32.totalorder %v2795, 1
          %vm2878 = vcmp.eq.s32.totalorder %v2798, 1
          %vm2879 = vcmp.eq.s32.totalorder %v2801, 1
          %vm2880 = vcmp.eq.s32.totalorder %v2804, 1
          %vm2881 = vcmp.eq.s32.totalorder %v2807, 1
          %vm2882 = vcmp.eq.s32.totalorder %v2810, 1
          %vm2883 = vcmp.eq.s32.totalorder %v2813, 1
          %vm2884 = vcmp.eq.s32.totalorder %v2816, 1
          %vm2885 = vcmp.eq.s32.totalorder %v2819, 1
          %vm2886 = vcmp.eq.s32.totalorder %v2822, 1
          %vm2887 = vcmp.eq.s32.totalorder %v2825, 1
          %vm2888 = vcmp.eq.s32.totalorder %v2828, 1
          %vm2889 = vcmp.eq.s32.totalorder %v2831, 1
          %vm2890 = vcmp.eq.s32.totalorder %v2834, 1
          %vm2891 = vcmp.eq.s32.totalorder %v2837, 1
          %vm2892 = vcmp.eq.s32.totalorder %v2840, 1
          %vm2893 = vcmp.eq.s32.totalorder %v2843, 1
          %vm2894 = vcmp.eq.s32.totalorder %v2846, 1
          %vm2895 = vcmp.eq.s32.totalorder %v2849, 1
          %vm2896 = vcmp.eq.s32.totalorder %v2852, 1
          %vm2897 = vcmp.eq.s32.totalorder %v2855, 1
          %vm2898 = vcmp.eq.s32.totalorder %v2858, 1
          %vm2899 = vcmp.eq.s32.totalorder %v2861, 1
          %vm2900 = vcmp.eq.s32.totalorder %v2864, 1
          %vm2901 = vcmp.eq.s32.totalorder %v2867, 1
          %vm2902 = vcmp.eq.s32.totalorder %v2870, 1
          %v2903 = vsel %vm2741, 1, 0
          %v2904 = vsel %vm2742, 1, 0
          %v2905 = vlaneseq
          %v2906 = vshrl.u32 %v2905, 7
          %v2907 = vsub.s32 3, %v2906
          %v2908 = vrot.slane %v2903, %v2907
          %v2909 = vlaneseq
          %v2910 = vshrl.u32 %v2909, 7
          %v2911 = vsub.s32 7, %v2910
          %v2912 = vrot.slane %v2903, %v2911
          %v2913 = vlaneseq
          %v2914 = vshrl.u32 %v2913, 7
          %v2915 = vsub.s32 3, %v2914
          %v2916 = vrot.slane %v2904, %v2915
          %v2917 = vlaneseq
          %v2918 = vshrl.u32 %v2917, 7
          %v2919 = vsub.s32 7, %v2918
          %v2920 = vrot.slane %v2904, %v2919
          %v2921 = vlaneseq
          %v2922 = vshrl.u32 %v2921, 7
          %v2923 = vsub.s32 3, %v2922
          %v2924 = vrot.slane %v2908, %v2923
          %v2925 = vlaneseq
          %v2926 = vshrl.u32 %v2925, 7
          %v2927 = vsub.s32 3, %v2926
          %v2928 = vrot.slane %v2912, %v2927
          %v2929 = vlaneseq
          %v2930 = vshrl.u32 %v2929, 7
          %v2931 = vsub.s32 3, %v2930
          %v2932 = vrot.slane %v2916, %v2931
          %v2933 = vlaneseq
          %v2934 = vshrl.u32 %v2933, 7
          %v2935 = vsub.s32 3, %v2934
          %v2936 = vrot.slane %v2920, %v2935
          %vm2937 = vcmp.eq.s32.totalorder %v2924, 1
          %vm2938 = vcmp.eq.s32.totalorder %v2928, 1
          %vm2939 = vcmp.eq.s32.totalorder %v2932, 1
          %vm2940 = vcmp.eq.s32.totalorder %v2936, 1
          %vm2941 = vmand %vm2871, %vm2937
          %vm2942 = vmand %vm2871, %vm2938
          %vm2943 = vmand %vm2871, %vm2939
          %vm2944 = vmand %vm2871, %vm2940
          %vm2945 = vmand %vm2872, %vm2937
          %vm2946 = vmand %vm2872, %vm2938
          %vm2947 = vmand %vm2872, %vm2939
          %vm2948 = vmand %vm2872, %vm2940
          %vm2949 = vmand %vm2873, %vm2937
          %vm2950 = vmand %vm2873, %vm2938
          %vm2951 = vmand %vm2873, %vm2939
          %vm2952 = vmand %vm2873, %vm2940
          %vm2953 = vmand %vm2874, %vm2937
          %vm2954 = vmand %vm2874, %vm2938
          %vm2955 = vmand %vm2874, %vm2939
          %vm2956 = vmand %vm2874, %vm2940
          %vm2957 = vmand %vm2875, %vm2937
          %vm2958 = vmand %vm2875, %vm2938
          %vm2959 = vmand %vm2875, %vm2939
          %vm2960 = vmand %vm2875, %vm2940
          %vm2961 = vmand %vm2876, %vm2937
          %vm2962 = vmand %vm2876, %vm2938
          %vm2963 = vmand %vm2876, %vm2939
          %vm2964 = vmand %vm2876, %vm2940
          %vm2965 = vmand %vm2877, %vm2937
          %vm2966 = vmand %vm2877, %vm2938
          %vm2967 = vmand %vm2877, %vm2939
          %vm2968 = vmand %vm2877, %vm2940
          %vm2969 = vmand %vm2878, %vm2937
          %vm2970 = vmand %vm2878, %vm2938
          %vm2971 = vmand %vm2878, %vm2939
          %vm2972 = vmand %vm2878, %vm2940
          %vm2973 = vmand %vm2879, %vm2937
          %vm2974 = vmand %vm2879, %vm2938
          %vm2975 = vmand %vm2879, %vm2939
          %vm2976 = vmand %vm2879, %vm2940
          %vm2977 = vmand %vm2880, %vm2937
          %vm2978 = vmand %vm2880, %vm2938
          %vm2979 = vmand %vm2880, %vm2939
          %vm2980 = vmand %vm2880, %vm2940
          %vm2981 = vmand %vm2881, %vm2937
          %vm2982 = vmand %vm2881, %vm2938
          %vm2983 = vmand %vm2881, %vm2939
          %vm2984 = vmand %vm2881, %vm2940
          %vm2985 = vmand %vm2882, %vm2937
          %vm2986 = vmand %vm2882, %vm2938
          %vm2987 = vmand %vm2882, %vm2939
          %vm2988 = vmand %vm2882, %vm2940
          %vm2989 = vmand %vm2883, %vm2937
          %vm2990 = vmand %vm2883, %vm2938
          %vm2991 = vmand %vm2883, %vm2939
          %vm2992 = vmand %vm2883, %vm2940
          %vm2993 = vmand %vm2884, %vm2937
          %vm2994 = vmand %vm2884, %vm2938
          %vm2995 = vmand %vm2884, %vm2939
          %vm2996 = vmand %vm2884, %vm2940
          %vm2997 = vmand %vm2885, %vm2937
          %vm2998 = vmand %vm2885, %vm2938
          %vm2999 = vmand %vm2885, %vm2939
          %vm3000 = vmand %vm2885, %vm2940
          %vm3001 = vmand %vm2886, %vm2937
          %vm3002 = vmand %vm2886, %vm2938
          %vm3003 = vmand %vm2886, %vm2939
          %vm3004 = vmand %vm2886, %vm2940
          %vm3005 = vmand %vm2887, %vm2937
          %vm3006 = vmand %vm2887, %vm2938
          %vm3007 = vmand %vm2887, %vm2939
          %vm3008 = vmand %vm2887, %vm2940
          %vm3009 = vmand %vm2888, %vm2937
          %vm3010 = vmand %vm2888, %vm2938
          %vm3011 = vmand %vm2888, %vm2939
          %vm3012 = vmand %vm2888, %vm2940
          %vm3013 = vmand %vm2889, %vm2937
          %vm3014 = vmand %vm2889, %vm2938
          %vm3015 = vmand %vm2889, %vm2939
          %vm3016 = vmand %vm2889, %vm2940
          %vm3017 = vmand %vm2890, %vm2937
          %vm3018 = vmand %vm2890, %vm2938
          %vm3019 = vmand %vm2890, %vm2939
          %vm3020 = vmand %vm2890, %vm2940
          %vm3021 = vmand %vm2891, %vm2937
          %vm3022 = vmand %vm2891, %vm2938
          %vm3023 = vmand %vm2891, %vm2939
          %vm3024 = vmand %vm2891, %vm2940
          %vm3025 = vmand %vm2892, %vm2937
          %vm3026 = vmand %vm2892, %vm2938
          %vm3027 = vmand %vm2892, %vm2939
          %vm3028 = vmand %vm2892, %vm2940
          %vm3029 = vmand %vm2893, %vm2937
          %vm3030 = vmand %vm2893, %vm2938
          %vm3031 = vmand %vm2893, %vm2939
          %vm3032 = vmand %vm2893, %vm2940
          %vm3033 = vmand %vm2894, %vm2937
          %vm3034 = vmand %vm2894, %vm2938
          %vm3035 = vmand %vm2894, %vm2939
          %vm3036 = vmand %vm2894, %vm2940
          %vm3037 = vmand %vm2895, %vm2937
          %vm3038 = vmand %vm2895, %vm2938
          %vm3039 = vmand %vm2895, %vm2939
          %vm3040 = vmand %vm2895, %vm2940
          %vm3041 = vmand %vm2896, %vm2937
          %vm3042 = vmand %vm2896, %vm2938
          %vm3043 = vmand %vm2896, %vm2939
          %vm3044 = vmand %vm2896, %vm2940
          %vm3045 = vmand %vm2897, %vm2937
          %vm3046 = vmand %vm2897, %vm2938
          %vm3047 = vmand %vm2897, %vm2939
          %vm3048 = vmand %vm2897, %vm2940
          %vm3049 = vmand %vm2898, %vm2937
          %vm3050 = vmand %vm2898, %vm2938
          %vm3051 = vmand %vm2898, %vm2939
          %vm3052 = vmand %vm2898, %vm2940
          %vm3053 = vmand %vm2899, %vm2937
          %vm3054 = vmand %vm2899, %vm2938
          %vm3055 = vmand %vm2899, %vm2939
          %vm3056 = vmand %vm2899, %vm2940
          %vm3057 = vmand %vm2900, %vm2937
          %vm3058 = vmand %vm2900, %vm2938
          %vm3059 = vmand %vm2900, %vm2939
          %vm3060 = vmand %vm2900, %vm2940
          %vm3061 = vmand %vm2901, %vm2937
          %vm3062 = vmand %vm2901, %vm2938
          %vm3063 = vmand %vm2901, %vm2939
          %vm3064 = vmand %vm2901, %vm2940
          %vm3065 = vmand %vm2902, %vm2937
          %vm3066 = vmand %vm2902, %vm2938
          %vm3067 = vmand %vm2902, %vm2939
          %vm3068 = vmand %vm2902, %vm2940
          %v3069 = vmul.f32 %v2643, 0.5
          %v3070 = vmul.f32 %v2644, 0.5
          %v3071 = vmul.f32 %v2645, 0.5
          %v3072 = vmul.f32 %v2646, 0.5
          %v3073 = vmul.f32 %v2647, 0.5
          %v3074 = vmul.f32 %v2648, 0.5
          %v3075 = vmul.f32 %v2649, 0.5
          %v3076 = vmul.f32 %v2650, 0.5
          %v3077 = vmul.f32 %v2651, 0.5
          %v3078 = vmul.f32 %v2652, 0.5
          %v3079 = vmul.f32 %v2653, 0.5
          %v3080 = vmul.f32 %v2654, 0.5
          %v3081 = vmul.f32 %v2655, 0.5
          %v3082 = vmul.f32 %v2656, 0.5
          %v3083 = vmul.f32 %v2657, 0.5
          %v3084 = vmul.f32 %v2658, 0.5
          %v3085 = vmul.f32 %v2659, 0.5
          %v3086 = vmul.f32 %v2660, 0.5
          %v3087 = vmul.f32 %v2661, 0.5
          %v3088 = vmul.f32 %v2662, 0.5
          %v3089 = vmul.f32 %v2663, 0.5
          %v3090 = vmul.f32 %v2664, 0.5
          %v3091 = vmul.f32 %v2665, 0.5
          %v3092 = vmul.f32 %v2666, 0.5
          %v3093 = vmul.f32 %v2667, 0.5
          %v3094 = vmul.f32 %v2668, 0.5
          %v3095 = vmul.f32 %v2669, 0.5
          %v3096 = vmul.f32 %v2670, 0.5
          %v3097 = vmul.f32 %v2671, 0.5
          %v3098 = vmul.f32 %v2672, 0.5
          %v3099 = vmul.f32 %v2673, 0.5
          %v3100 = vmul.f32 %v2674, 0.5
          %3133 = vrot.lane.b32.xlu0 %v3069, 126
          %v3134 = vpop.permute.xlu0 %3133
          %3135 = vrot.lane.b32.xlu0 %v3070, 126
          %v3136 = vpop.permute.xlu0 %3135
          %3137 = vrot.lane.b32.xlu0 %v3071, 126
          %v3138 = vpop.permute.xlu0 %3137
          %3139 = vrot.lane.b32.xlu0 %v3072, 126
          %v3140 = vpop.permute.xlu0 %3139
          %3141 = vrot.lane.b32.xlu0 %v3073, 126
          %v3142 = vpop.permute.xlu0 %3141
          %3143 = vrot.lane.b32.xlu0 %v3074, 126
          %v3144 = vpop.permute.xlu0 %3143
          %3145 = vrot.lane.b32.xlu0 %v3075, 126
          %v3146 = vpop.permute.xlu0 %3145
          %3147 = vrot.lane.b32.xlu0 %v3076, 126
          %v3148 = vpop.permute.xlu0 %3147
          %3149 = vrot.lane.b32.xlu0 %v3077, 126
          %v3150 = vpop.permute.xlu0 %3149
          %3151 = vrot.lane.b32.xlu0 %v3078, 126
          %v3152 = vpop.permute.xlu0 %3151
          %3153 = vrot.lane.b32.xlu0 %v3079, 126
          %v3154 = vpop.permute.xlu0 %3153
          %3155 = vrot.lane.b32.xlu0 %v3080, 126
          %v3156 = vpop.permute.xlu0 %3155
          %3157 = vrot.lane.b32.xlu0 %v3081, 126
          %v3158 = vpop.permute.xlu0 %3157
          %3159 = vrot.lane.b32.xlu0 %v3082, 126
          %v3160 = vpop.permute.xlu0 %3159
          %3161 = vrot.lane.b32.xlu0 %v3083, 126
          %v3162 = vpop.permute.xlu0 %3161
          %3163 = vrot.lane.b32.xlu0 %v3084, 126
          %v3164 = vpop.permute.xlu0 %3163
          %3165 = vrot.lane.b32.xlu0 %v3085, 126
          %v3166 = vpop.permute.xlu0 %3165
          %3167 = vrot.lane.b32.xlu0 %v3086, 126
          %v3168 = vpop.permute.xlu0 %3167
          %3169 = vrot.lane.b32.xlu0 %v3087, 126
          %v3170 = vpop.permute.xlu0 %3169
          %3171 = vrot.lane.b32.xlu0 %v3088, 126
          %v3172 = vpop.permute.xlu0 %3171
          %3173 = vrot.lane.b32.xlu0 %v3089, 126
          %v3174 = vpop.permute.xlu0 %3173
          %3175 = vrot.lane.b32.xlu0 %v3090, 126
          %v3176 = vpop.permute.xlu0 %3175
          %3177 = vrot.lane.b32.xlu0 %v3091, 126
          %v3178 = vpop.permute.xlu0 %3177
          %3179 = vrot.lane.b32.xlu0 %v3092, 126
          %v3180 = vpop.permute.xlu0 %3179
          %3181 = vrot.lane.b32.xlu0 %v3093, 126
          %v3182 = vpop.permute.xlu0 %3181
          %3183 = vrot.lane.b32.xlu0 %v3094, 126
          %v3184 = vpop.permute.xlu0 %3183
          %3185 = vrot.lane.b32.xlu0 %v3095, 126
          %v3186 = vpop.permute.xlu0 %3185
          %3187 = vrot.lane.b32.xlu0 %v3096, 126
          %v3188 = vpop.permute.xlu0 %3187
          %3189 = vrot.lane.b32.xlu0 %v3097, 126
          %v3190 = vpop.permute.xlu0 %3189
          %3191 = vrot.lane.b32.xlu0 %v3098, 126
          %v3192 = vpop.permute.xlu0 %3191
          %3193 = vrot.lane.b32.xlu0 %v3099, 126
          %v3194 = vpop.permute.xlu0 %3193
          %3195 = vrot.lane.b32.xlu0 %v3100, 126
          %v3196 = vpop.permute.xlu0 %3195
          %v3229 = vsub.f32 %v2643, %v3134
          %v3230 = vsub.f32 %v2644, %v3136
          %v3231 = vsub.f32 %v2645, %v3138
          %v3232 = vsub.f32 %v2646, %v3140
          %v3233 = vsub.f32 %v2647, %v3142
          %v3234 = vsub.f32 %v2648, %v3144
          %v3235 = vsub.f32 %v2649, %v3146
          %v3236 = vsub.f32 %v2650, %v3148
          %v3237 = vsub.f32 %v2651, %v3150
          %v3238 = vsub.f32 %v2652, %v3152
          %v3239 = vsub.f32 %v2653, %v3154
          %v3240 = vsub.f32 %v2654, %v3156
          %v3241 = vsub.f32 %v2655, %v3158
          %v3242 = vsub.f32 %v2656, %v3160
          %v3243 = vsub.f32 %v2657, %v3162
          %v3244 = vsub.f32 %v2658, %v3164
          %v3245 = vsub.f32 %v2659, %v3166
          %v3246 = vsub.f32 %v2660, %v3168
          %v3247 = vsub.f32 %v2661, %v3170
          %v3248 = vsub.f32 %v2662, %v3172
          %v3249 = vsub.f32 %v2663, %v3174
          %v3250 = vsub.f32 %v2664, %v3176
          %v3251 = vsub.f32 %v2665, %v3178
          %v3252 = vsub.f32 %v2666, %v3180
          %v3253 = vsub.f32 %v2667, %v3182
          %v3254 = vsub.f32 %v2668, %v3184
          %v3255 = vsub.f32 %v2669, %v3186
          %v3256 = vsub.f32 %v2670, %v3188
          %v3257 = vsub.f32 %v2671, %v3190
          %v3258 = vsub.f32 %v2672, %v3192
          %v3259 = vsub.f32 %v2673, %v3194
          %v3260 = vsub.f32 %v2674, %v3196
          %v3261 = vadd.f32 %v2643, %v3134
          %v3262 = vadd.f32 %v2644, %v3136
          %v3263 = vadd.f32 %v2645, %v3138
          %v3264 = vadd.f32 %v2646, %v3140
          %v3265 = vadd.f32 %v2647, %v3142
          %v3266 = vadd.f32 %v2648, %v3144
          %v3267 = vadd.f32 %v2649, %v3146
          %v3268 = vadd.f32 %v2650, %v3148
          %v3269 = vadd.f32 %v2651, %v3150
          %v3270 = vadd.f32 %v2652, %v3152
          %v3271 = vadd.f32 %v2653, %v3154
          %v3272 = vadd.f32 %v2654, %v3156
          %v3273 = vadd.f32 %v2655, %v3158
          %v3274 = vadd.f32 %v2656, %v3160
          %v3275 = vadd.f32 %v2657, %v3162
          %v3276 = vadd.f32 %v2658, %v3164
          %v3277 = vadd.f32 %v2659, %v3166
          %v3278 = vadd.f32 %v2660, %v3168
          %v3279 = vadd.f32 %v2661, %v3170
          %v3280 = vadd.f32 %v2662, %v3172
          %v3281 = vadd.f32 %v2663, %v3174
          %v3282 = vadd.f32 %v2664, %v3176
          %v3283 = vadd.f32 %v2665, %v3178
          %v3284 = vadd.f32 %v2666, %v3180
          %v3285 = vadd.f32 %v2667, %v3182
          %v3286 = vadd.f32 %v2668, %v3184
          %v3287 = vadd.f32 %v2669, %v3186
          %v3288 = vadd.f32 %v2670, %v3188
          %v3289 = vadd.f32 %v2671, %v3190
          %v3290 = vadd.f32 %v2672, %v3192
          %v3291 = vadd.f32 %v2673, %v3194
          %v3292 = vadd.f32 %v2674, %v3196
          %v3293 = vmul.f32 %v2707, 0.5
          %v3294 = vmul.f32 %v2708, 0.5
          %v3297 = vrot.slane %v3293, 6
          %v3298 = vrot.slane %v3297, 4
          %v3299 = vrot.slane %v3294, 6
          %v3300 = vrot.slane %v3299, 4
          %v3303 = vsub.f32 %v2707, %v3298
          %v3304 = vsub.f32 %v2708, %v3300
          %v3305 = vadd.f32 %v2707, %v3298
          %v3306 = vadd.f32 %v2708, %v3300
          %3308 = vset.pattern.permute.xlu0 0
          %3309 = vperm.xlu0 %3308, %v3261
          %v3310 = vpop.permute.xlu0 %3309
          %3313 = vset.pattern.permute.xlu0 0
          %3314 = vperm.xlu0 %3313, %v3262
          %v3315 = vpop.permute.xlu0 %3314
          %3318 = vset.pattern.permute.xlu0 0
          %3319 = vperm.xlu0 %3318, %v3263
          %v3320 = vpop.permute.xlu0 %3319
          %3323 = vset.pattern.permute.xlu0 0
          %3324 = vperm.xlu0 %3323, %v3264
          %v3325 = vpop.permute.xlu0 %3324
          %3328 = vset.pattern.permute.xlu0 0
          %3329 = vperm.xlu0 %3328, %v3265
          %v3330 = vpop.permute.xlu0 %3329
          %3333 = vset.pattern.permute.xlu0 0
          %3334 = vperm.xlu0 %3333, %v3266
          %v3335 = vpop.permute.xlu0 %3334
          %3338 = vset.pattern.permute.xlu0 0
          %3339 = vperm.xlu0 %3338, %v3267
          %v3340 = vpop.permute.xlu0 %3339
          %3343 = vset.pattern.permute.xlu0 0
          %3344 = vperm.xlu0 %3343, %v3268
          %v3345 = vpop.permute.xlu0 %3344
          %3348 = vset.pattern.permute.xlu0 0
          %3349 = vperm.xlu0 %3348, %v3269
          %v3350 = vpop.permute.xlu0 %3349
          %3353 = vset.pattern.permute.xlu0 0
          %3354 = vperm.xlu0 %3353, %v3270
          %v3355 = vpop.permute.xlu0 %3354
          %3358 = vset.pattern.permute.xlu0 0
          %3359 = vperm.xlu0 %3358, %v3271
          %v3360 = vpop.permute.xlu0 %3359
          %3363 = vset.pattern.permute.xlu0 0
          %3364 = vperm.xlu0 %3363, %v3272
          %v3365 = vpop.permute.xlu0 %3364
          %3368 = vset.pattern.permute.xlu0 0
          %3369 = vperm.xlu0 %3368, %v3273
          %v3370 = vpop.permute.xlu0 %3369
          %3373 = vset.pattern.permute.xlu0 0
          %3374 = vperm.xlu0 %3373, %v3274
          %v3375 = vpop.permute.xlu0 %3374
          %3378 = vset.pattern.permute.xlu0 0
          %3379 = vperm.xlu0 %3378, %v3275
          %v3380 = vpop.permute.xlu0 %3379
          %3383 = vset.pattern.permute.xlu0 0
          %3384 = vperm.xlu0 %3383, %v3276
          %v3385 = vpop.permute.xlu0 %3384
          %3388 = vset.pattern.permute.xlu0 0
          %3389 = vperm.xlu0 %3388, %v3277
          %v3390 = vpop.permute.xlu0 %3389
          %3393 = vset.pattern.permute.xlu0 0
          %3394 = vperm.xlu0 %3393, %v3278
          %v3395 = vpop.permute.xlu0 %3394
          %3398 = vset.pattern.permute.xlu0 0
          %3399 = vperm.xlu0 %3398, %v3279
          %v3400 = vpop.permute.xlu0 %3399
          %3403 = vset.pattern.permute.xlu0 0
          %3404 = vperm.xlu0 %3403, %v3280
          %v3405 = vpop.permute.xlu0 %3404
          %3408 = vset.pattern.permute.xlu0 0
          %3409 = vperm.xlu0 %3408, %v3281
          %v3410 = vpop.permute.xlu0 %3409
          %3413 = vset.pattern.permute.xlu0 0
          %3414 = vperm.xlu0 %3413, %v3282
          %v3415 = vpop.permute.xlu0 %3414
          %3418 = vset.pattern.permute.xlu0 0
          %3419 = vperm.xlu0 %3418, %v3283
          %v3420 = vpop.permute.xlu0 %3419
          %3423 = vset.pattern.permute.xlu0 0
          %3424 = vperm.xlu0 %3423, %v3284
          %v3425 = vpop.permute.xlu0 %3424
          %3428 = vset.pattern.permute.xlu0 0
          %3429 = vperm.xlu0 %3428, %v3285
          %v3430 = vpop.permute.xlu0 %3429
          %3433 = vset.pattern.permute.xlu0 0
          %3434 = vperm.xlu0 %3433, %v3286
          %v3435 = vpop.permute.xlu0 %3434
          %3438 = vset.pattern.permute.xlu0 0
          %3439 = vperm.xlu0 %3438, %v3287
          %v3440 = vpop.permute.xlu0 %3439
          %3443 = vset.pattern.permute.xlu0 0
          %3444 = vperm.xlu0 %3443, %v3288
          %v3445 = vpop.permute.xlu0 %3444
          %3448 = vset.pattern.permute.xlu0 0
          %3449 = vperm.xlu0 %3448, %v3289
          %v3450 = vpop.permute.xlu0 %3449
          %3453 = vset.pattern.permute.xlu0 0
          %3454 = vperm.xlu0 %3453, %v3290
          %v3455 = vpop.permute.xlu0 %3454
          %3458 = vset.pattern.permute.xlu0 0
          %3459 = vperm.xlu0 %3458, %v3291
          %v3460 = vpop.permute.xlu0 %3459
          %3463 = vset.pattern.permute.xlu0 0
          %3464 = vperm.xlu0 %3463, %v3292
          %v3465 = vpop.permute.xlu0 %3464
          %v3469 = vlaneseq
          %v3470 = vshrl.u32 %v3469, 7
          %v3471 = vsub.s32 0, %v3470
          %v3472 = vrot.slane %v3305, %v3471
          %v3473 = vlaneseq
          %v3474 = vshrl.u32 %v3473, 7
          %v3475 = vsub.s32 4, %v3474
          %v3476 = vrot.slane %v3305, %v3475
          %v3477 = vlaneseq
          %v3478 = vshrl.u32 %v3477, 7
          %v3479 = vsub.s32 0, %v3478
          %v3480 = vrot.slane %v3306, %v3479
          %v3481 = vlaneseq
          %v3482 = vshrl.u32 %v3481, 7
          %v3483 = vsub.s32 4, %v3482
          %v3484 = vrot.slane %v3306, %v3483
          %v3489 = vlaneseq
          %v3490 = vshrl.u32 %v3489, 7
          %v3491 = vsub.s32 0, %v3490
          %v3492 = vrot.slane %v3472, %v3491
          %v3493 = vlaneseq
          %v3494 = vshrl.u32 %v3493, 7
          %v3495 = vsub.s32 0, %v3494
          %v3496 = vrot.slane %v3476, %v3495
          %v3497 = vlaneseq
          %v3498 = vshrl.u32 %v3497, 7
          %v3499 = vsub.s32 0, %v3498
          %v3500 = vrot.slane %v3480, %v3499
          %v3501 = vlaneseq
          %v3502 = vshrl.u32 %v3501, 7
          %v3503 = vsub.s32 0, %v3502
          %v3504 = vrot.slane %v3484, %v3503
          %v3505 = vmin.f32 %v3310, %v3492
          %v3506 = vmin.f32 %v3310, %v3496
          %v3507 = vmin.f32 %v3310, %v3500
          %v3508 = vmin.f32 %v3310, %v3504
          %v3509 = vmin.f32 %v3315, %v3492
          %v3510 = vmin.f32 %v3315, %v3496
          %v3511 = vmin.f32 %v3315, %v3500
          %v3512 = vmin.f32 %v3315, %v3504
          %v3513 = vmin.f32 %v3320, %v3492
          %v3514 = vmin.f32 %v3320, %v3496
          %v3515 = vmin.f32 %v3320, %v3500
          %v3516 = vmin.f32 %v3320, %v3504
          %v3517 = vmin.f32 %v3325, %v3492
          %v3518 = vmin.f32 %v3325, %v3496
          %v3519 = vmin.f32 %v3325, %v3500
          %v3520 = vmin.f32 %v3325, %v3504
          %v3521 = vmin.f32 %v3330, %v3492
          %v3522 = vmin.f32 %v3330, %v3496
          %v3523 = vmin.f32 %v3330, %v3500
          %v3524 = vmin.f32 %v3330, %v3504
          %v3525 = vmin.f32 %v3335, %v3492
          %v3526 = vmin.f32 %v3335, %v3496
          %v3527 = vmin.f32 %v3335, %v3500
          %v3528 = vmin.f32 %v3335, %v3504
          %v3529 = vmin.f32 %v3340, %v3492
          %v3530 = vmin.f32 %v3340, %v3496
          %v3531 = vmin.f32 %v3340, %v3500
          %v3532 = vmin.f32 %v3340, %v3504
          %v3533 = vmin.f32 %v3345, %v3492
          %v3534 = vmin.f32 %v3345, %v3496
          %v3535 = vmin.f32 %v3345, %v3500
          %v3536 = vmin.f32 %v3345, %v3504
          %v3537 = vmin.f32 %v3350, %v3492
          %v3538 = vmin.f32 %v3350, %v3496
          %v3539 = vmin.f32 %v3350, %v3500
          %v3540 = vmin.f32 %v3350, %v3504
          %v3541 = vmin.f32 %v3355, %v3492
          %v3542 = vmin.f32 %v3355, %v3496
          %v3543 = vmin.f32 %v3355, %v3500
          %v3544 = vmin.f32 %v3355, %v3504
          %v3545 = vmin.f32 %v3360, %v3492
          %v3546 = vmin.f32 %v3360, %v3496
          %v3547 = vmin.f32 %v3360, %v3500
          %v3548 = vmin.f32 %v3360, %v3504
          %v3549 = vmin.f32 %v3365, %v3492
          %v3550 = vmin.f32 %v3365, %v3496
          %v3551 = vmin.f32 %v3365, %v3500
          %v3552 = vmin.f32 %v3365, %v3504
          %v3553 = vmin.f32 %v3370, %v3492
          %v3554 = vmin.f32 %v3370, %v3496
          %v3555 = vmin.f32 %v3370, %v3500
          %v3556 = vmin.f32 %v3370, %v3504
          %v3557 = vmin.f32 %v3375, %v3492
          %v3558 = vmin.f32 %v3375, %v3496
          %v3559 = vmin.f32 %v3375, %v3500
          %v3560 = vmin.f32 %v3375, %v3504
          %v3561 = vmin.f32 %v3380, %v3492
          %v3562 = vmin.f32 %v3380, %v3496
          %v3563 = vmin.f32 %v3380, %v3500
          %v3564 = vmin.f32 %v3380, %v3504
          %v3565 = vmin.f32 %v3385, %v3492
          %v3566 = vmin.f32 %v3385, %v3496
          %v3567 = vmin.f32 %v3385, %v3500
          %v3568 = vmin.f32 %v3385, %v3504
          %v3569 = vmin.f32 %v3390, %v3492
          %v3570 = vmin.f32 %v3390, %v3496
          %v3571 = vmin.f32 %v3390, %v3500
          %v3572 = vmin.f32 %v3390, %v3504
          %v3573 = vmin.f32 %v3395, %v3492
          %v3574 = vmin.f32 %v3395, %v3496
          %v3575 = vmin.f32 %v3395, %v3500
          %v3576 = vmin.f32 %v3395, %v3504
          %v3577 = vmin.f32 %v3400, %v3492
          %v3578 = vmin.f32 %v3400, %v3496
          %v3579 = vmin.f32 %v3400, %v3500
          %v3580 = vmin.f32 %v3400, %v3504
          %v3581 = vmin.f32 %v3405, %v3492
          %v3582 = vmin.f32 %v3405, %v3496
          %v3583 = vmin.f32 %v3405, %v3500
          %v3584 = vmin.f32 %v3405, %v3504
          %v3585 = vmin.f32 %v3410, %v3492
          %v3586 = vmin.f32 %v3410, %v3496
          %v3587 = vmin.f32 %v3410, %v3500
          %v3588 = vmin.f32 %v3410, %v3504
          %v3589 = vmin.f32 %v3415, %v3492
          %v3590 = vmin.f32 %v3415, %v3496
          %v3591 = vmin.f32 %v3415, %v3500
          %v3592 = vmin.f32 %v3415, %v3504
          %v3593 = vmin.f32 %v3420, %v3492
          %v3594 = vmin.f32 %v3420, %v3496
          %v3595 = vmin.f32 %v3420, %v3500
          %v3596 = vmin.f32 %v3420, %v3504
          %v3597 = vmin.f32 %v3425, %v3492
          %v3598 = vmin.f32 %v3425, %v3496
          %v3599 = vmin.f32 %v3425, %v3500
          %v3600 = vmin.f32 %v3425, %v3504
          %v3601 = vmin.f32 %v3430, %v3492
          %v3602 = vmin.f32 %v3430, %v3496
          %v3603 = vmin.f32 %v3430, %v3500
          %v3604 = vmin.f32 %v3430, %v3504
          %v3605 = vmin.f32 %v3435, %v3492
          %v3606 = vmin.f32 %v3435, %v3496
          %v3607 = vmin.f32 %v3435, %v3500
          %v3608 = vmin.f32 %v3435, %v3504
          %v3609 = vmin.f32 %v3440, %v3492
          %v3610 = vmin.f32 %v3440, %v3496
          %v3611 = vmin.f32 %v3440, %v3500
          %v3612 = vmin.f32 %v3440, %v3504
          %v3613 = vmin.f32 %v3445, %v3492
          %v3614 = vmin.f32 %v3445, %v3496
          %v3615 = vmin.f32 %v3445, %v3500
          %v3616 = vmin.f32 %v3445, %v3504
          %v3617 = vmin.f32 %v3450, %v3492
          %v3618 = vmin.f32 %v3450, %v3496
          %v3619 = vmin.f32 %v3450, %v3500
          %v3620 = vmin.f32 %v3450, %v3504
          %v3621 = vmin.f32 %v3455, %v3492
          %v3622 = vmin.f32 %v3455, %v3496
          %v3623 = vmin.f32 %v3455, %v3500
          %v3624 = vmin.f32 %v3455, %v3504
          %v3625 = vmin.f32 %v3460, %v3492
          %v3626 = vmin.f32 %v3460, %v3496
          %v3627 = vmin.f32 %v3460, %v3500
          %v3628 = vmin.f32 %v3460, %v3504
          %v3629 = vmin.f32 %v3465, %v3492
          %v3630 = vmin.f32 %v3465, %v3496
          %v3631 = vmin.f32 %v3465, %v3500
          %v3632 = vmin.f32 %v3465, %v3504
          %3634 = vset.pattern.permute.xlu0 0
          %3635 = vperm.xlu0 %3634, %v3229
          %v3636 = vpop.permute.xlu0 %3635
          %3639 = vset.pattern.permute.xlu0 0
          %3640 = vperm.xlu0 %3639, %v3230
          %v3641 = vpop.permute.xlu0 %3640
          %3644 = vset.pattern.permute.xlu0 0
          %3645 = vperm.xlu0 %3644, %v3231
          %v3646 = vpop.permute.xlu0 %3645
          %3649 = vset.pattern.permute.xlu0 0
          %3650 = vperm.xlu0 %3649, %v3232
          %v3651 = vpop.permute.xlu0 %3650
          %3654 = vset.pattern.permute.xlu0 0
          %3655 = vperm.xlu0 %3654, %v3233
          %v3656 = vpop.permute.xlu0 %3655
          %3659 = vset.pattern.permute.xlu0 0
          %3660 = vperm.xlu0 %3659, %v3234
          %v3661 = vpop.permute.xlu0 %3660
          %3664 = vset.pattern.permute.xlu0 0
          %3665 = vperm.xlu0 %3664, %v3235
          %v3666 = vpop.permute.xlu0 %3665
          %3669 = vset.pattern.permute.xlu0 0
          %3670 = vperm.xlu0 %3669, %v3236
          %v3671 = vpop.permute.xlu0 %3670
          %3674 = vset.pattern.permute.xlu0 0
          %3675 = vperm.xlu0 %3674, %v3237
          %v3676 = vpop.permute.xlu0 %3675
          %3679 = vset.pattern.permute.xlu0 0
          %3680 = vperm.xlu0 %3679, %v3238
          %v3681 = vpop.permute.xlu0 %3680
          %3684 = vset.pattern.permute.xlu0 0
          %3685 = vperm.xlu0 %3684, %v3239
          %v3686 = vpop.permute.xlu0 %3685
          %3689 = vset.pattern.permute.xlu0 0
          %3690 = vperm.xlu0 %3689, %v3240
          %v3691 = vpop.permute.xlu0 %3690
          %3694 = vset.pattern.permute.xlu0 0
          %3695 = vperm.xlu0 %3694, %v3241
          %v3696 = vpop.permute.xlu0 %3695
          %3699 = vset.pattern.permute.xlu0 0
          %3700 = vperm.xlu0 %3699, %v3242
          %v3701 = vpop.permute.xlu0 %3700
          %3704 = vset.pattern.permute.xlu0 0
          %3705 = vperm.xlu0 %3704, %v3243
          %v3706 = vpop.permute.xlu0 %3705
          %3709 = vset.pattern.permute.xlu0 0
          %3710 = vperm.xlu0 %3709, %v3244
          %v3711 = vpop.permute.xlu0 %3710
          %3714 = vset.pattern.permute.xlu0 0
          %3715 = vperm.xlu0 %3714, %v3245
          %v3716 = vpop.permute.xlu0 %3715
          %3719 = vset.pattern.permute.xlu0 0
          %3720 = vperm.xlu0 %3719, %v3246
          %v3721 = vpop.permute.xlu0 %3720
          %3724 = vset.pattern.permute.xlu0 0
          %3725 = vperm.xlu0 %3724, %v3247
          %v3726 = vpop.permute.xlu0 %3725
          %3729 = vset.pattern.permute.xlu0 0
          %3730 = vperm.xlu0 %3729, %v3248
          %v3731 = vpop.permute.xlu0 %3730
          %3734 = vset.pattern.permute.xlu0 0
          %3735 = vperm.xlu0 %3734, %v3249
          %v3736 = vpop.permute.xlu0 %3735
          %3739 = vset.pattern.permute.xlu0 0
          %3740 = vperm.xlu0 %3739, %v3250
          %v3741 = vpop.permute.xlu0 %3740
          %3744 = vset.pattern.permute.xlu0 0
          %3745 = vperm.xlu0 %3744, %v3251
          %v3746 = vpop.permute.xlu0 %3745
          %3749 = vset.pattern.permute.xlu0 0
          %3750 = vperm.xlu0 %3749, %v3252
          %v3751 = vpop.permute.xlu0 %3750
          %3754 = vset.pattern.permute.xlu0 0
          %3755 = vperm.xlu0 %3754, %v3253
          %v3756 = vpop.permute.xlu0 %3755
          %3759 = vset.pattern.permute.xlu0 0
          %3760 = vperm.xlu0 %3759, %v3254
          %v3761 = vpop.permute.xlu0 %3760
          %3764 = vset.pattern.permute.xlu0 0
          %3765 = vperm.xlu0 %3764, %v3255
          %v3766 = vpop.permute.xlu0 %3765
          %3769 = vset.pattern.permute.xlu0 0
          %3770 = vperm.xlu0 %3769, %v3256
          %v3771 = vpop.permute.xlu0 %3770
          %3774 = vset.pattern.permute.xlu0 0
          %3775 = vperm.xlu0 %3774, %v3257
          %v3776 = vpop.permute.xlu0 %3775
          %3779 = vset.pattern.permute.xlu0 0
          %3780 = vperm.xlu0 %3779, %v3258
          %v3781 = vpop.permute.xlu0 %3780
          %3784 = vset.pattern.permute.xlu0 0
          %3785 = vperm.xlu0 %3784, %v3259
          %v3786 = vpop.permute.xlu0 %3785
          %3789 = vset.pattern.permute.xlu0 0
          %3790 = vperm.xlu0 %3789, %v3260
          %v3791 = vpop.permute.xlu0 %3790
          %v3795 = vlaneseq
          %v3796 = vshrl.u32 %v3795, 7
          %v3797 = vsub.s32 0, %v3796
          %v3798 = vrot.slane %v3303, %v3797
          %v3799 = vlaneseq
          %v3800 = vshrl.u32 %v3799, 7
          %v3801 = vsub.s32 4, %v3800
          %v3802 = vrot.slane %v3303, %v3801
          %v3803 = vlaneseq
          %v3804 = vshrl.u32 %v3803, 7
          %v3805 = vsub.s32 0, %v3804
          %v3806 = vrot.slane %v3304, %v3805
          %v3807 = vlaneseq
          %v3808 = vshrl.u32 %v3807, 7
          %v3809 = vsub.s32 4, %v3808
          %v3810 = vrot.slane %v3304, %v3809
          %v3815 = vlaneseq
          %v3816 = vshrl.u32 %v3815, 7
          %v3817 = vsub.s32 0, %v3816
          %v3818 = vrot.slane %v3798, %v3817
          %v3819 = vlaneseq
          %v3820 = vshrl.u32 %v3819, 7
          %v3821 = vsub.s32 0, %v3820
          %v3822 = vrot.slane %v3802, %v3821
          %v3823 = vlaneseq
          %v3824 = vshrl.u32 %v3823, 7
          %v3825 = vsub.s32 0, %v3824
          %v3826 = vrot.slane %v3806, %v3825
          %v3827 = vlaneseq
          %v3828 = vshrl.u32 %v3827, 7
          %v3829 = vsub.s32 0, %v3828
          %v3830 = vrot.slane %v3810, %v3829
          %v3831 = vmax.f32 %v3636, %v3818
          %v3832 = vmax.f32 %v3636, %v3822
          %v3833 = vmax.f32 %v3636, %v3826
          %v3834 = vmax.f32 %v3636, %v3830
          %v3835 = vmax.f32 %v3641, %v3818
          %v3836 = vmax.f32 %v3641, %v3822
          %v3837 = vmax.f32 %v3641, %v3826
          %v3838 = vmax.f32 %v3641, %v3830
          %v3839 = vmax.f32 %v3646, %v3818
          %v3840 = vmax.f32 %v3646, %v3822
          %v3841 = vmax.f32 %v3646, %v3826
          %v3842 = vmax.f32 %v3646, %v3830
          %v3843 = vmax.f32 %v3651, %v3818
          %v3844 = vmax.f32 %v3651, %v3822
          %v3845 = vmax.f32 %v3651, %v3826
          %v3846 = vmax.f32 %v3651, %v3830
          %v3847 = vmax.f32 %v3656, %v3818
          %v3848 = vmax.f32 %v3656, %v3822
          %v3849 = vmax.f32 %v3656, %v3826
          %v3850 = vmax.f32 %v3656, %v3830
          %v3851 = vmax.f32 %v3661, %v3818
          %v3852 = vmax.f32 %v3661, %v3822
          %v3853 = vmax.f32 %v3661, %v3826
          %v3854 = vmax.f32 %v3661, %v3830
          %v3855 = vmax.f32 %v3666, %v3818
          %v3856 = vmax.f32 %v3666, %v3822
          %v3857 = vmax.f32 %v3666, %v3826
          %v3858 = vmax.f32 %v3666, %v3830
          %v3859 = vmax.f32 %v3671, %v3818
          %v3860 = vmax.f32 %v3671, %v3822
          %v3861 = vmax.f32 %v3671, %v3826
          %v3862 = vmax.f32 %v3671, %v3830
          %v3863 = vmax.f32 %v3676, %v3818
          %v3864 = vmax.f32 %v3676, %v3822
          %v3865 = vmax.f32 %v3676, %v3826
          %v3866 = vmax.f32 %v3676, %v3830
          %v3867 = vmax.f32 %v3681, %v3818
          %v3868 = vmax.f32 %v3681, %v3822
          %v3869 = vmax.f32 %v3681, %v3826
          %v3870 = vmax.f32 %v3681, %v3830
          %v3871 = vmax.f32 %v3686, %v3818
          %v3872 = vmax.f32 %v3686, %v3822
          %v3873 = vmax.f32 %v3686, %v3826
          %v3874 = vmax.f32 %v3686, %v3830
          %v3875 = vmax.f32 %v3691, %v3818
          %v3876 = vmax.f32 %v3691, %v3822
          %v3877 = vmax.f32 %v3691, %v3826
          %v3878 = vmax.f32 %v3691, %v3830
          %v3879 = vmax.f32 %v3696, %v3818
          %v3880 = vmax.f32 %v3696, %v3822
          %v3881 = vmax.f32 %v3696, %v3826
          %v3882 = vmax.f32 %v3696, %v3830
          %v3883 = vmax.f32 %v3701, %v3818
          %v3884 = vmax.f32 %v3701, %v3822
          %v3885 = vmax.f32 %v3701, %v3826
          %v3886 = vmax.f32 %v3701, %v3830
          %v3887 = vmax.f32 %v3706, %v3818
          %v3888 = vmax.f32 %v3706, %v3822
          %v3889 = vmax.f32 %v3706, %v3826
          %v3890 = vmax.f32 %v3706, %v3830
          %v3891 = vmax.f32 %v3711, %v3818
          %v3892 = vmax.f32 %v3711, %v3822
          %v3893 = vmax.f32 %v3711, %v3826
          %v3894 = vmax.f32 %v3711, %v3830
          %v3895 = vmax.f32 %v3716, %v3818
          %v3896 = vmax.f32 %v3716, %v3822
          %v3897 = vmax.f32 %v3716, %v3826
          %v3898 = vmax.f32 %v3716, %v3830
          %v3899 = vmax.f32 %v3721, %v3818
          %v3900 = vmax.f32 %v3721, %v3822
          %v3901 = vmax.f32 %v3721, %v3826
          %v3902 = vmax.f32 %v3721, %v3830
          %v3903 = vmax.f32 %v3726, %v3818
          %v3904 = vmax.f32 %v3726, %v3822
          %v3905 = vmax.f32 %v3726, %v3826
          %v3906 = vmax.f32 %v3726, %v3830
          %v3907 = vmax.f32 %v3731, %v3818
          %v3908 = vmax.f32 %v3731, %v3822
          %v3909 = vmax.f32 %v3731, %v3826
          %v3910 = vmax.f32 %v3731, %v3830
          %v3911 = vmax.f32 %v3736, %v3818
          %v3912 = vmax.f32 %v3736, %v3822
          %v3913 = vmax.f32 %v3736, %v3826
          %v3914 = vmax.f32 %v3736, %v3830
          %v3915 = vmax.f32 %v3741, %v3818
          %v3916 = vmax.f32 %v3741, %v3822
          %v3917 = vmax.f32 %v3741, %v3826
          %v3918 = vmax.f32 %v3741, %v3830
          %v3919 = vmax.f32 %v3746, %v3818
          %v3920 = vmax.f32 %v3746, %v3822
          %v3921 = vmax.f32 %v3746, %v3826
          %v3922 = vmax.f32 %v3746, %v3830
          %v3923 = vmax.f32 %v3751, %v3818
          %v3924 = vmax.f32 %v3751, %v3822
          %v3925 = vmax.f32 %v3751, %v3826
          %v3926 = vmax.f32 %v3751, %v3830
          %v3927 = vmax.f32 %v3756, %v3818
          %v3928 = vmax.f32 %v3756, %v3822
          %v3929 = vmax.f32 %v3756, %v3826
          %v3930 = vmax.f32 %v3756, %v3830
          %v3931 = vmax.f32 %v3761, %v3818
          %v3932 = vmax.f32 %v3761, %v3822
          %v3933 = vmax.f32 %v3761, %v3826
          %v3934 = vmax.f32 %v3761, %v3830
          %v3935 = vmax.f32 %v3766, %v3818
          %v3936 = vmax.f32 %v3766, %v3822
          %v3937 = vmax.f32 %v3766, %v3826
          %v3938 = vmax.f32 %v3766, %v3830
          %v3939 = vmax.f32 %v3771, %v3818
          %v3940 = vmax.f32 %v3771, %v3822
          %v3941 = vmax.f32 %v3771, %v3826
          %v3942 = vmax.f32 %v3771, %v3830
          %v3943 = vmax.f32 %v3776, %v3818
          %v3944 = vmax.f32 %v3776, %v3822
          %v3945 = vmax.f32 %v3776, %v3826
          %v3946 = vmax.f32 %v3776, %v3830
          %v3947 = vmax.f32 %v3781, %v3818
          %v3948 = vmax.f32 %v3781, %v3822
          %v3949 = vmax.f32 %v3781, %v3826
          %v3950 = vmax.f32 %v3781, %v3830
          %v3951 = vmax.f32 %v3786, %v3818
          %v3952 = vmax.f32 %v3786, %v3822
          %v3953 = vmax.f32 %v3786, %v3826
          %v3954 = vmax.f32 %v3786, %v3830
          %v3955 = vmax.f32 %v3791, %v3818
          %v3956 = vmax.f32 %v3791, %v3822
          %v3957 = vmax.f32 %v3791, %v3826
          %v3958 = vmax.f32 %v3791, %v3830
          %v3959 = vsub.f32 %v3505, %v3831
          %v3960 = vsub.f32 %v3506, %v3832
          %v3961 = vsub.f32 %v3507, %v3833
          %v3962 = vsub.f32 %v3508, %v3834
          %v3963 = vsub.f32 %v3509, %v3835
          %v3964 = vsub.f32 %v3510, %v3836
          %v3965 = vsub.f32 %v3511, %v3837
          %v3966 = vsub.f32 %v3512, %v3838
          %v3967 = vsub.f32 %v3513, %v3839
          %v3968 = vsub.f32 %v3514, %v3840
          %v3969 = vsub.f32 %v3515, %v3841
          %v3970 = vsub.f32 %v3516, %v3842
          %v3971 = vsub.f32 %v3517, %v3843
          %v3972 = vsub.f32 %v3518, %v3844
          %v3973 = vsub.f32 %v3519, %v3845
          %v3974 = vsub.f32 %v3520, %v3846
          %v3975 = vsub.f32 %v3521, %v3847
          %v3976 = vsub.f32 %v3522, %v3848
          %v3977 = vsub.f32 %v3523, %v3849
          %v3978 = vsub.f32 %v3524, %v3850
          %v3979 = vsub.f32 %v3525, %v3851
          %v3980 = vsub.f32 %v3526, %v3852
          %v3981 = vsub.f32 %v3527, %v3853
          %v3982 = vsub.f32 %v3528, %v3854
          %v3983 = vsub.f32 %v3529, %v3855
          %v3984 = vsub.f32 %v3530, %v3856
          %v3985 = vsub.f32 %v3531, %v3857
          %v3986 = vsub.f32 %v3532, %v3858
          %v3987 = vsub.f32 %v3533, %v3859
          %v3988 = vsub.f32 %v3534, %v3860
          %v3989 = vsub.f32 %v3535, %v3861
          %v3990 = vsub.f32 %v3536, %v3862
          %v3991 = vsub.f32 %v3537, %v3863
          %v3992 = vsub.f32 %v3538, %v3864
          %v3993 = vsub.f32 %v3539, %v3865
          %v3994 = vsub.f32 %v3540, %v3866
          %v3995 = vsub.f32 %v3541, %v3867
          %v3996 = vsub.f32 %v3542, %v3868
          %v3997 = vsub.f32 %v3543, %v3869
          %v3998 = vsub.f32 %v3544, %v3870
          %v3999 = vsub.f32 %v3545, %v3871
          %v4000 = vsub.f32 %v3546, %v3872
          %v4001 = vsub.f32 %v3547, %v3873
          %v4002 = vsub.f32 %v3548, %v3874
          %v4003 = vsub.f32 %v3549, %v3875
          %v4004 = vsub.f32 %v3550, %v3876
          %v4005 = vsub.f32 %v3551, %v3877
          %v4006 = vsub.f32 %v3552, %v3878
          %v4007 = vsub.f32 %v3553, %v3879
          %v4008 = vsub.f32 %v3554, %v3880
          %v4009 = vsub.f32 %v3555, %v3881
          %v4010 = vsub.f32 %v3556, %v3882
          %v4011 = vsub.f32 %v3557, %v3883
          %v4012 = vsub.f32 %v3558, %v3884
          %v4013 = vsub.f32 %v3559, %v3885
          %v4014 = vsub.f32 %v3560, %v3886
          %v4015 = vsub.f32 %v3561, %v3887
          %v4016 = vsub.f32 %v3562, %v3888
          %v4017 = vsub.f32 %v3563, %v3889
          %v4018 = vsub.f32 %v3564, %v3890
          %v4019 = vsub.f32 %v3565, %v3891
          %v4020 = vsub.f32 %v3566, %v3892
          %v4021 = vsub.f32 %v3567, %v3893
          %v4022 = vsub.f32 %v3568, %v3894
          %v4023 = vsub.f32 %v3569, %v3895
          %v4024 = vsub.f32 %v3570, %v3896
          %v4025 = vsub.f32 %v3571, %v3897
          %v4026 = vsub.f32 %v3572, %v3898
          %v4027 = vsub.f32 %v3573, %v3899
          %v4028 = vsub.f32 %v3574, %v3900
          %v4029 = vsub.f32 %v3575, %v3901
          %v4030 = vsub.f32 %v3576, %v3902
          %v4031 = vsub.f32 %v3577, %v3903
          %v4032 = vsub.f32 %v3578, %v3904
          %v4033 = vsub.f32 %v3579, %v3905
          %v4034 = vsub.f32 %v3580, %v3906
          %v4035 = vsub.f32 %v3581, %v3907
          %v4036 = vsub.f32 %v3582, %v3908
          %v4037 = vsub.f32 %v3583, %v3909
          %v4038 = vsub.f32 %v3584, %v3910
          %v4039 = vsub.f32 %v3585, %v3911
          %v4040 = vsub.f32 %v3586, %v3912
          %v4041 = vsub.f32 %v3587, %v3913
          %v4042 = vsub.f32 %v3588, %v3914
          %v4043 = vsub.f32 %v3589, %v3915
          %v4044 = vsub.f32 %v3590, %v3916
          %v4045 = vsub.f32 %v3591, %v3917
          %v4046 = vsub.f32 %v3592, %v3918
          %v4047 = vsub.f32 %v3593, %v3919
          %v4048 = vsub.f32 %v3594, %v3920
          %v4049 = vsub.f32 %v3595, %v3921
          %v4050 = vsub.f32 %v3596, %v3922
          %v4051 = vsub.f32 %v3597, %v3923
          %v4052 = vsub.f32 %v3598, %v3924
          %v4053 = vsub.f32 %v3599, %v3925
          %v4054 = vsub.f32 %v3600, %v3926
          %v4055 = vsub.f32 %v3601, %v3927
          %v4056 = vsub.f32 %v3602, %v3928
          %v4057 = vsub.f32 %v3603, %v3929
          %v4058 = vsub.f32 %v3604, %v3930
          %v4059 = vsub.f32 %v3605, %v3931
          %v4060 = vsub.f32 %v3606, %v3932
          %v4061 = vsub.f32 %v3607, %v3933
          %v4062 = vsub.f32 %v3608, %v3934
          %v4063 = vsub.f32 %v3609, %v3935
          %v4064 = vsub.f32 %v3610, %v3936
          %v4065 = vsub.f32 %v3611, %v3937
          %v4066 = vsub.f32 %v3612, %v3938
          %v4067 = vsub.f32 %v3613, %v3939
          %v4068 = vsub.f32 %v3614, %v3940
          %v4069 = vsub.f32 %v3615, %v3941
          %v4070 = vsub.f32 %v3616, %v3942
          %v4071 = vsub.f32 %v3617, %v3943
          %v4072 = vsub.f32 %v3618, %v3944
          %v4073 = vsub.f32 %v3619, %v3945
          %v4074 = vsub.f32 %v3620, %v3946
          %v4075 = vsub.f32 %v3621, %v3947
          %v4076 = vsub.f32 %v3622, %v3948
          %v4077 = vsub.f32 %v3623, %v3949
          %v4078 = vsub.f32 %v3624, %v3950
          %v4079 = vsub.f32 %v3625, %v3951
          %v4080 = vsub.f32 %v3626, %v3952
          %v4081 = vsub.f32 %v3627, %v3953
          %v4082 = vsub.f32 %v3628, %v3954
          %v4083 = vsub.f32 %v3629, %v3955
          %v4084 = vsub.f32 %v3630, %v3956
          %v4085 = vsub.f32 %v3631, %v3957
          %v4086 = vsub.f32 %v3632, %v3958
          %v4087 = vmax.f32 %v3959, 0.0
          %v4088 = vmax.f32 %v3960, 0.0
          %v4089 = vmax.f32 %v3961, 0.0
          %v4090 = vmax.f32 %v3962, 0.0
          %v4091 = vmax.f32 %v3963, 0.0
          %v4092 = vmax.f32 %v3964, 0.0
          %v4093 = vmax.f32 %v3965, 0.0
          %v4094 = vmax.f32 %v3966, 0.0
          %v4095 = vmax.f32 %v3967, 0.0
          %v4096 = vmax.f32 %v3968, 0.0
          %v4097 = vmax.f32 %v3969, 0.0
          %v4098 = vmax.f32 %v3970, 0.0
          %v4099 = vmax.f32 %v3971, 0.0
          %v4100 = vmax.f32 %v3972, 0.0
          %v4101 = vmax.f32 %v3973, 0.0
          %v4102 = vmax.f32 %v3974, 0.0
          %v4103 = vmax.f32 %v3975, 0.0
          %v4104 = vmax.f32 %v3976, 0.0
          %v4105 = vmax.f32 %v3977, 0.0
          %v4106 = vmax.f32 %v3978, 0.0
          %v4107 = vmax.f32 %v3979, 0.0
          %v4108 = vmax.f32 %v3980, 0.0
          %v4109 = vmax.f32 %v3981, 0.0
          %v4110 = vmax.f32 %v3982, 0.0
          %v4111 = vmax.f32 %v3983, 0.0
          %v4112 = vmax.f32 %v3984, 0.0
          %v4113 = vmax.f32 %v3985, 0.0
          %v4114 = vmax.f32 %v3986, 0.0
          %v4115 = vmax.f32 %v3987, 0.0
          %v4116 = vmax.f32 %v3988, 0.0
          %v4117 = vmax.f32 %v3989, 0.0
          %v4118 = vmax.f32 %v3990, 0.0
          %v4119 = vmax.f32 %v3991, 0.0
          %v4120 = vmax.f32 %v3992, 0.0
          %v4121 = vmax.f32 %v3993, 0.0
          %v4122 = vmax.f32 %v3994, 0.0
          %v4123 = vmax.f32 %v3995, 0.0
          %v4124 = vmax.f32 %v3996, 0.0
          %v4125 = vmax.f32 %v3997, 0.0
          %v4126 = vmax.f32 %v3998, 0.0
          %v4127 = vmax.f32 %v3999, 0.0
          %v4128 = vmax.f32 %v4000, 0.0
          %v4129 = vmax.f32 %v4001, 0.0
          %v4130 = vmax.f32 %v4002, 0.0
          %v4131 = vmax.f32 %v4003, 0.0
          %v4132 = vmax.f32 %v4004, 0.0
          %v4133 = vmax.f32 %v4005, 0.0
          %v4134 = vmax.f32 %v4006, 0.0
          %v4135 = vmax.f32 %v4007, 0.0
          %v4136 = vmax.f32 %v4008, 0.0
          %v4137 = vmax.f32 %v4009, 0.0
          %v4138 = vmax.f32 %v4010, 0.0
          %v4139 = vmax.f32 %v4011, 0.0
          %v4140 = vmax.f32 %v4012, 0.0
          %v4141 = vmax.f32 %v4013, 0.0
          %v4142 = vmax.f32 %v4014, 0.0
          %v4143 = vmax.f32 %v4015, 0.0
          %v4144 = vmax.f32 %v4016, 0.0
          %v4145 = vmax.f32 %v4017, 0.0
          %v4146 = vmax.f32 %v4018, 0.0
          %v4147 = vmax.f32 %v4019, 0.0
          %v4148 = vmax.f32 %v4020, 0.0
          %v4149 = vmax.f32 %v4021, 0.0
          %v4150 = vmax.f32 %v4022, 0.0
          %v4151 = vmax.f32 %v4023, 0.0
          %v4152 = vmax.f32 %v4024, 0.0
          %v4153 = vmax.f32 %v4025, 0.0
          %v4154 = vmax.f32 %v4026, 0.0
          %v4155 = vmax.f32 %v4027, 0.0
          %v4156 = vmax.f32 %v4028, 0.0
          %v4157 = vmax.f32 %v4029, 0.0
          %v4158 = vmax.f32 %v4030, 0.0
          %v4159 = vmax.f32 %v4031, 0.0
          %v4160 = vmax.f32 %v4032, 0.0
          %v4161 = vmax.f32 %v4033, 0.0
          %v4162 = vmax.f32 %v4034, 0.0
          %v4163 = vmax.f32 %v4035, 0.0
          %v4164 = vmax.f32 %v4036, 0.0
          %v4165 = vmax.f32 %v4037, 0.0
          %v4166 = vmax.f32 %v4038, 0.0
          %v4167 = vmax.f32 %v4039, 0.0
          %v4168 = vmax.f32 %v4040, 0.0
          %v4169 = vmax.f32 %v4041, 0.0
          %v4170 = vmax.f32 %v4042, 0.0
          %v4171 = vmax.f32 %v4043, 0.0
          %v4172 = vmax.f32 %v4044, 0.0
          %v4173 = vmax.f32 %v4045, 0.0
          %v4174 = vmax.f32 %v4046, 0.0
          %v4175 = vmax.f32 %v4047, 0.0
          %v4176 = vmax.f32 %v4048, 0.0
          %v4177 = vmax.f32 %v4049, 0.0
          %v4178 = vmax.f32 %v4050, 0.0
          %v4179 = vmax.f32 %v4051, 0.0
          %v4180 = vmax.f32 %v4052, 0.0
          %v4181 = vmax.f32 %v4053, 0.0
          %v4182 = vmax.f32 %v4054, 0.0
          %v4183 = vmax.f32 %v4055, 0.0
          %v4184 = vmax.f32 %v4056, 0.0
          %v4185 = vmax.f32 %v4057, 0.0
          %v4186 = vmax.f32 %v4058, 0.0
          %v4187 = vmax.f32 %v4059, 0.0
          %v4188 = vmax.f32 %v4060, 0.0
          %v4189 = vmax.f32 %v4061, 0.0
          %v4190 = vmax.f32 %v4062, 0.0
          %v4191 = vmax.f32 %v4063, 0.0
          %v4192 = vmax.f32 %v4064, 0.0
          %v4193 = vmax.f32 %v4065, 0.0
          %v4194 = vmax.f32 %v4066, 0.0
          %v4195 = vmax.f32 %v4067, 0.0
          %v4196 = vmax.f32 %v4068, 0.0
          %v4197 = vmax.f32 %v4069, 0.0
          %v4198 = vmax.f32 %v4070, 0.0
          %v4199 = vmax.f32 %v4071, 0.0
          %v4200 = vmax.f32 %v4072, 0.0
          %v4201 = vmax.f32 %v4073, 0.0
          %v4202 = vmax.f32 %v4074, 0.0
          %v4203 = vmax.f32 %v4075, 0.0
          %v4204 = vmax.f32 %v4076, 0.0
          %v4205 = vmax.f32 %v4077, 0.0
          %v4206 = vmax.f32 %v4078, 0.0
          %v4207 = vmax.f32 %v4079, 0.0
          %v4208 = vmax.f32 %v4080, 0.0
          %v4209 = vmax.f32 %v4081, 0.0
          %v4210 = vmax.f32 %v4082, 0.0
          %v4211 = vmax.f32 %v4083, 0.0
          %v4212 = vmax.f32 %v4084, 0.0
          %v4213 = vmax.f32 %v4085, 0.0
          %v4214 = vmax.f32 %v4086, 0.0
          %4215 = vset.pattern.permute.xlu0 1
          %4216 = vperm.xlu0 %4215, %v3261
          %v4217 = vpop.permute.xlu0 %4216
          %4219 = vset.pattern.permute.xlu0 1
          %4220 = vperm.xlu0 %4219, %v3262
          %v4221 = vpop.permute.xlu0 %4220
          %4223 = vset.pattern.permute.xlu0 1
          %4224 = vperm.xlu0 %4223, %v3263
          %v4225 = vpop.permute.xlu0 %4224
          %4227 = vset.pattern.permute.xlu0 1
          %4228 = vperm.xlu0 %4227, %v3264
          %v4229 = vpop.permute.xlu0 %4228
          %4231 = vset.pattern.permute.xlu0 1
          %4232 = vperm.xlu0 %4231, %v3265
          %v4233 = vpop.permute.xlu0 %4232
          %4235 = vset.pattern.permute.xlu0 1
          %4236 = vperm.xlu0 %4235, %v3266
          %v4237 = vpop.permute.xlu0 %4236
          %4239 = vset.pattern.permute.xlu0 1
          %4240 = vperm.xlu0 %4239, %v3267
          %v4241 = vpop.permute.xlu0 %4240
          %4243 = vset.pattern.permute.xlu0 1
          %4244 = vperm.xlu0 %4243, %v3268
          %v4245 = vpop.permute.xlu0 %4244
          %4247 = vset.pattern.permute.xlu0 1
          %4248 = vperm.xlu0 %4247, %v3269
          %v4249 = vpop.permute.xlu0 %4248
          %4251 = vset.pattern.permute.xlu0 1
          %4252 = vperm.xlu0 %4251, %v3270
          %v4253 = vpop.permute.xlu0 %4252
          %4255 = vset.pattern.permute.xlu0 1
          %4256 = vperm.xlu0 %4255, %v3271
          %v4257 = vpop.permute.xlu0 %4256
          %4259 = vset.pattern.permute.xlu0 1
          %4260 = vperm.xlu0 %4259, %v3272
          %v4261 = vpop.permute.xlu0 %4260
          %4263 = vset.pattern.permute.xlu0 1
          %4264 = vperm.xlu0 %4263, %v3273
          %v4265 = vpop.permute.xlu0 %4264
          %4267 = vset.pattern.permute.xlu0 1
          %4268 = vperm.xlu0 %4267, %v3274
          %v4269 = vpop.permute.xlu0 %4268
          %4271 = vset.pattern.permute.xlu0 1
          %4272 = vperm.xlu0 %4271, %v3275
          %v4273 = vpop.permute.xlu0 %4272
          %4275 = vset.pattern.permute.xlu0 1
          %4276 = vperm.xlu0 %4275, %v3276
          %v4277 = vpop.permute.xlu0 %4276
          %4279 = vset.pattern.permute.xlu0 1
          %4280 = vperm.xlu0 %4279, %v3277
          %v4281 = vpop.permute.xlu0 %4280
          %4283 = vset.pattern.permute.xlu0 1
          %4284 = vperm.xlu0 %4283, %v3278
          %v4285 = vpop.permute.xlu0 %4284
          %4287 = vset.pattern.permute.xlu0 1
          %4288 = vperm.xlu0 %4287, %v3279
          %v4289 = vpop.permute.xlu0 %4288
          %4291 = vset.pattern.permute.xlu0 1
          %4292 = vperm.xlu0 %4291, %v3280
          %v4293 = vpop.permute.xlu0 %4292
          %4295 = vset.pattern.permute.xlu0 1
          %4296 = vperm.xlu0 %4295, %v3281
          %v4297 = vpop.permute.xlu0 %4296
          %4299 = vset.pattern.permute.xlu0 1
          %4300 = vperm.xlu0 %4299, %v3282
          %v4301 = vpop.permute.xlu0 %4300
          %4303 = vset.pattern.permute.xlu0 1
          %4304 = vperm.xlu0 %4303, %v3283
          %v4305 = vpop.permute.xlu0 %4304
          %4307 = vset.pattern.permute.xlu0 1
          %4308 = vperm.xlu0 %4307, %v3284
          %v4309 = vpop.permute.xlu0 %4308
          %4311 = vset.pattern.permute.xlu0 1
          %4312 = vperm.xlu0 %4311, %v3285
          %v4313 = vpop.permute.xlu0 %4312
          %4315 = vset.pattern.permute.xlu0 1
          %4316 = vperm.xlu0 %4315, %v3286
          %v4317 = vpop.permute.xlu0 %4316
          %4319 = vset.pattern.permute.xlu0 1
          %4320 = vperm.xlu0 %4319, %v3287
          %v4321 = vpop.permute.xlu0 %4320
          %4323 = vset.pattern.permute.xlu0 1
          %4324 = vperm.xlu0 %4323, %v3288
          %v4325 = vpop.permute.xlu0 %4324
          %4327 = vset.pattern.permute.xlu0 1
          %4328 = vperm.xlu0 %4327, %v3289
          %v4329 = vpop.permute.xlu0 %4328
          %4331 = vset.pattern.permute.xlu0 1
          %4332 = vperm.xlu0 %4331, %v3290
          %v4333 = vpop.permute.xlu0 %4332
          %4335 = vset.pattern.permute.xlu0 1
          %4336 = vperm.xlu0 %4335, %v3291
          %v4337 = vpop.permute.xlu0 %4336
          %4339 = vset.pattern.permute.xlu0 1
          %4340 = vperm.xlu0 %4339, %v3292
          %v4341 = vpop.permute.xlu0 %4340
          %v4343 = vlaneseq
          %v4344 = vshrl.u32 %v4343, 7
          %v4345 = vsub.s32 1, %v4344
          %v4346 = vrot.slane %v3305, %v4345
          %v4347 = vlaneseq
          %v4348 = vshrl.u32 %v4347, 7
          %v4349 = vsub.s32 5, %v4348
          %v4350 = vrot.slane %v3305, %v4349
          %v4351 = vlaneseq
          %v4352 = vshrl.u32 %v4351, 7
          %v4353 = vsub.s32 1, %v4352
          %v4354 = vrot.slane %v3306, %v4353
          %v4355 = vlaneseq
          %v4356 = vshrl.u32 %v4355, 7
          %v4357 = vsub.s32 5, %v4356
          %v4358 = vrot.slane %v3306, %v4357
          %v4363 = vlaneseq
          %v4364 = vshrl.u32 %v4363, 7
          %v4365 = vsub.s32 1, %v4364
          %v4366 = vrot.slane %v4346, %v4365
          %v4367 = vlaneseq
          %v4368 = vshrl.u32 %v4367, 7
          %v4369 = vsub.s32 1, %v4368
          %v4370 = vrot.slane %v4350, %v4369
          %v4371 = vlaneseq
          %v4372 = vshrl.u32 %v4371, 7
          %v4373 = vsub.s32 1, %v4372
          %v4374 = vrot.slane %v4354, %v4373
          %v4375 = vlaneseq
          %v4376 = vshrl.u32 %v4375, 7
          %v4377 = vsub.s32 1, %v4376
          %v4378 = vrot.slane %v4358, %v4377
          %v4379 = vmin.f32 %v4217, %v4366
          %v4380 = vmin.f32 %v4217, %v4370
          %v4381 = vmin.f32 %v4217, %v4374
          %v4382 = vmin.f32 %v4217, %v4378
          %v4383 = vmin.f32 %v4221, %v4366
          %v4384 = vmin.f32 %v4221, %v4370
          %v4385 = vmin.f32 %v4221, %v4374
          %v4386 = vmin.f32 %v4221, %v4378
          %v4387 = vmin.f32 %v4225, %v4366
          %v4388 = vmin.f32 %v4225, %v4370
          %v4389 = vmin.f32 %v4225, %v4374
          %v4390 = vmin.f32 %v4225, %v4378
          %v4391 = vmin.f32 %v4229, %v4366
          %v4392 = vmin.f32 %v4229, %v4370
          %v4393 = vmin.f32 %v4229, %v4374
          %v4394 = vmin.f32 %v4229, %v4378
          %v4395 = vmin.f32 %v4233, %v4366
          %v4396 = vmin.f32 %v4233, %v4370
          %v4397 = vmin.f32 %v4233, %v4374
          %v4398 = vmin.f32 %v4233, %v4378
          %v4399 = vmin.f32 %v4237, %v4366
          %v4400 = vmin.f32 %v4237, %v4370
          %v4401 = vmin.f32 %v4237, %v4374
          %v4402 = vmin.f32 %v4237, %v4378
          %v4403 = vmin.f32 %v4241, %v4366
          %v4404 = vmin.f32 %v4241, %v4370
          %v4405 = vmin.f32 %v4241, %v4374
          %v4406 = vmin.f32 %v4241, %v4378
          %v4407 = vmin.f32 %v4245, %v4366
          %v4408 = vmin.f32 %v4245, %v4370
          %v4409 = vmin.f32 %v4245, %v4374
          %v4410 = vmin.f32 %v4245, %v4378
          %v4411 = vmin.f32 %v4249, %v4366
          %v4412 = vmin.f32 %v4249, %v4370
          %v4413 = vmin.f32 %v4249, %v4374
          %v4414 = vmin.f32 %v4249, %v4378
          %v4415 = vmin.f32 %v4253, %v4366
          %v4416 = vmin.f32 %v4253, %v4370
          %v4417 = vmin.f32 %v4253, %v4374
          %v4418 = vmin.f32 %v4253, %v4378
          %v4419 = vmin.f32 %v4257, %v4366
          %v4420 = vmin.f32 %v4257, %v4370
          %v4421 = vmin.f32 %v4257, %v4374
          %v4422 = vmin.f32 %v4257, %v4378
          %v4423 = vmin.f32 %v4261, %v4366
          %v4424 = vmin.f32 %v4261, %v4370
          %v4425 = vmin.f32 %v4261, %v4374
          %v4426 = vmin.f32 %v4261, %v4378
          %v4427 = vmin.f32 %v4265, %v4366
          %v4428 = vmin.f32 %v4265, %v4370
          %v4429 = vmin.f32 %v4265, %v4374
          %v4430 = vmin.f32 %v4265, %v4378
          %v4431 = vmin.f32 %v4269, %v4366
          %v4432 = vmin.f32 %v4269, %v4370
          %v4433 = vmin.f32 %v4269, %v4374
          %v4434 = vmin.f32 %v4269, %v4378
          %v4435 = vmin.f32 %v4273, %v4366
          %v4436 = vmin.f32 %v4273, %v4370
          %v4437 = vmin.f32 %v4273, %v4374
          %v4438 = vmin.f32 %v4273, %v4378
          %v4439 = vmin.f32 %v4277, %v4366
          %v4440 = vmin.f32 %v4277, %v4370
          %v4441 = vmin.f32 %v4277, %v4374
          %v4442 = vmin.f32 %v4277, %v4378
          %v4443 = vmin.f32 %v4281, %v4366
          %v4444 = vmin.f32 %v4281, %v4370
          %v4445 = vmin.f32 %v4281, %v4374
          %v4446 = vmin.f32 %v4281, %v4378
          %v4447 = vmin.f32 %v4285, %v4366
          %v4448 = vmin.f32 %v4285, %v4370
          %v4449 = vmin.f32 %v4285, %v4374
          %v4450 = vmin.f32 %v4285, %v4378
          %v4451 = vmin.f32 %v4289, %v4366
          %v4452 = vmin.f32 %v4289, %v4370
          %v4453 = vmin.f32 %v4289, %v4374
          %v4454 = vmin.f32 %v4289, %v4378
          %v4455 = vmin.f32 %v4293, %v4366
          %v4456 = vmin.f32 %v4293, %v4370
          %v4457 = vmin.f32 %v4293, %v4374
          %v4458 = vmin.f32 %v4293, %v4378
          %v4459 = vmin.f32 %v4297, %v4366
          %v4460 = vmin.f32 %v4297, %v4370
          %v4461 = vmin.f32 %v4297, %v4374
          %v4462 = vmin.f32 %v4297, %v4378
          %v4463 = vmin.f32 %v4301, %v4366
          %v4464 = vmin.f32 %v4301, %v4370
          %v4465 = vmin.f32 %v4301, %v4374
          %v4466 = vmin.f32 %v4301, %v4378
          %v4467 = vmin.f32 %v4305, %v4366
          %v4468 = vmin.f32 %v4305, %v4370
          %v4469 = vmin.f32 %v4305, %v4374
          %v4470 = vmin.f32 %v4305, %v4378
          %v4471 = vmin.f32 %v4309, %v4366
          %v4472 = vmin.f32 %v4309, %v4370
          %v4473 = vmin.f32 %v4309, %v4374
          %v4474 = vmin.f32 %v4309, %v4378
          %v4475 = vmin.f32 %v4313, %v4366
          %v4476 = vmin.f32 %v4313, %v4370
          %v4477 = vmin.f32 %v4313, %v4374
          %v4478 = vmin.f32 %v4313, %v4378
          %v4479 = vmin.f32 %v4317, %v4366
          %v4480 = vmin.f32 %v4317, %v4370
          %v4481 = vmin.f32 %v4317, %v4374
          %v4482 = vmin.f32 %v4317, %v4378
          %v4483 = vmin.f32 %v4321, %v4366
          %v4484 = vmin.f32 %v4321, %v4370
          %v4485 = vmin.f32 %v4321, %v4374
          %v4486 = vmin.f32 %v4321, %v4378
          %v4487 = vmin.f32 %v4325, %v4366
          %v4488 = vmin.f32 %v4325, %v4370
          %v4489 = vmin.f32 %v4325, %v4374
          %v4490 = vmin.f32 %v4325, %v4378
          %v4491 = vmin.f32 %v4329, %v4366
          %v4492 = vmin.f32 %v4329, %v4370
          %v4493 = vmin.f32 %v4329, %v4374
          %v4494 = vmin.f32 %v4329, %v4378
          %v4495 = vmin.f32 %v4333, %v4366
          %v4496 = vmin.f32 %v4333, %v4370
          %v4497 = vmin.f32 %v4333, %v4374
          %v4498 = vmin.f32 %v4333, %v4378
          %v4499 = vmin.f32 %v4337, %v4366
          %v4500 = vmin.f32 %v4337, %v4370
          %v4501 = vmin.f32 %v4337, %v4374
          %v4502 = vmin.f32 %v4337, %v4378
          %v4503 = vmin.f32 %v4341, %v4366
          %v4504 = vmin.f32 %v4341, %v4370
          %v4505 = vmin.f32 %v4341, %v4374
          %v4506 = vmin.f32 %v4341, %v4378
          %4507 = vset.pattern.permute.xlu0 1
          %4508 = vperm.xlu0 %4507, %v3229
          %v4509 = vpop.permute.xlu0 %4508
          %4511 = vset.pattern.permute.xlu0 1
          %4512 = vperm.xlu0 %4511, %v3230
          %v4513 = vpop.permute.xlu0 %4512
          %4515 = vset.pattern.permute.xlu0 1
          %4516 = vperm.xlu0 %4515, %v3231
          %v4517 = vpop.permute.xlu0 %4516
          %4519 = vset.pattern.permute.xlu0 1
          %4520 = vperm.xlu0 %4519, %v3232
          %v4521 = vpop.permute.xlu0 %4520
          %4523 = vset.pattern.permute.xlu0 1
          %4524 = vperm.xlu0 %4523, %v3233
          %v4525 = vpop.permute.xlu0 %4524
          %4527 = vset.pattern.permute.xlu0 1
          %4528 = vperm.xlu0 %4527, %v3234
          %v4529 = vpop.permute.xlu0 %4528
          %4531 = vset.pattern.permute.xlu0 1
          %4532 = vperm.xlu0 %4531, %v3235
          %v4533 = vpop.permute.xlu0 %4532
          %4535 = vset.pattern.permute.xlu0 1
          %4536 = vperm.xlu0 %4535, %v3236
          %v4537 = vpop.permute.xlu0 %4536
          %4539 = vset.pattern.permute.xlu0 1
          %4540 = vperm.xlu0 %4539, %v3237
          %v4541 = vpop.permute.xlu0 %4540
          %4543 = vset.pattern.permute.xlu0 1
          %4544 = vperm.xlu0 %4543, %v3238
          %v4545 = vpop.permute.xlu0 %4544
          %4547 = vset.pattern.permute.xlu0 1
          %4548 = vperm.xlu0 %4547, %v3239
          %v4549 = vpop.permute.xlu0 %4548
          %4551 = vset.pattern.permute.xlu0 1
          %4552 = vperm.xlu0 %4551, %v3240
          %v4553 = vpop.permute.xlu0 %4552
          %4555 = vset.pattern.permute.xlu0 1
          %4556 = vperm.xlu0 %4555, %v3241
          %v4557 = vpop.permute.xlu0 %4556
          %4559 = vset.pattern.permute.xlu0 1
          %4560 = vperm.xlu0 %4559, %v3242
          %v4561 = vpop.permute.xlu0 %4560
          %4563 = vset.pattern.permute.xlu0 1
          %4564 = vperm.xlu0 %4563, %v3243
          %v4565 = vpop.permute.xlu0 %4564
          %4567 = vset.pattern.permute.xlu0 1
          %4568 = vperm.xlu0 %4567, %v3244
          %v4569 = vpop.permute.xlu0 %4568
          %4571 = vset.pattern.permute.xlu0 1
          %4572 = vperm.xlu0 %4571, %v3245
          %v4573 = vpop.permute.xlu0 %4572
          %4575 = vset.pattern.permute.xlu0 1
          %4576 = vperm.xlu0 %4575, %v3246
          %v4577 = vpop.permute.xlu0 %4576
          %4579 = vset.pattern.permute.xlu0 1
          %4580 = vperm.xlu0 %4579, %v3247
          %v4581 = vpop.permute.xlu0 %4580
          %4583 = vset.pattern.permute.xlu0 1
          %4584 = vperm.xlu0 %4583, %v3248
          %v4585 = vpop.permute.xlu0 %4584
          %4587 = vset.pattern.permute.xlu0 1
          %4588 = vperm.xlu0 %4587, %v3249
          %v4589 = vpop.permute.xlu0 %4588
          %4591 = vset.pattern.permute.xlu0 1
          %4592 = vperm.xlu0 %4591, %v3250
          %v4593 = vpop.permute.xlu0 %4592
          %4595 = vset.pattern.permute.xlu0 1
          %4596 = vperm.xlu0 %4595, %v3251
          %v4597 = vpop.permute.xlu0 %4596
          %4599 = vset.pattern.permute.xlu0 1
          %4600 = vperm.xlu0 %4599, %v3252
          %v4601 = vpop.permute.xlu0 %4600
          %4603 = vset.pattern.permute.xlu0 1
          %4604 = vperm.xlu0 %4603, %v3253
          %v4605 = vpop.permute.xlu0 %4604
          %4607 = vset.pattern.permute.xlu0 1
          %4608 = vperm.xlu0 %4607, %v3254
          %v4609 = vpop.permute.xlu0 %4608
          %4611 = vset.pattern.permute.xlu0 1
          %4612 = vperm.xlu0 %4611, %v3255
          %v4613 = vpop.permute.xlu0 %4612
          %4615 = vset.pattern.permute.xlu0 1
          %4616 = vperm.xlu0 %4615, %v3256
          %v4617 = vpop.permute.xlu0 %4616
          %4619 = vset.pattern.permute.xlu0 1
          %4620 = vperm.xlu0 %4619, %v3257
          %v4621 = vpop.permute.xlu0 %4620
          %4623 = vset.pattern.permute.xlu0 1
          %4624 = vperm.xlu0 %4623, %v3258
          %v4625 = vpop.permute.xlu0 %4624
          %4627 = vset.pattern.permute.xlu0 1
          %4628 = vperm.xlu0 %4627, %v3259
          %v4629 = vpop.permute.xlu0 %4628
          %4631 = vset.pattern.permute.xlu0 1
          %4632 = vperm.xlu0 %4631, %v3260
          %v4633 = vpop.permute.xlu0 %4632
          %v4635 = vlaneseq
          %v4636 = vshrl.u32 %v4635, 7
          %v4637 = vsub.s32 1, %v4636
          %v4638 = vrot.slane %v3303, %v4637
          %v4639 = vlaneseq
          %v4640 = vshrl.u32 %v4639, 7
          %v4641 = vsub.s32 5, %v4640
          %v4642 = vrot.slane %v3303, %v4641
          %v4643 = vlaneseq
          %v4644 = vshrl.u32 %v4643, 7
          %v4645 = vsub.s32 1, %v4644
          %v4646 = vrot.slane %v3304, %v4645
          %v4647 = vlaneseq
          %v4648 = vshrl.u32 %v4647, 7
          %v4649 = vsub.s32 5, %v4648
          %v4650 = vrot.slane %v3304, %v4649
          %v4655 = vlaneseq
          %v4656 = vshrl.u32 %v4655, 7
          %v4657 = vsub.s32 1, %v4656
          %v4658 = vrot.slane %v4638, %v4657
          %v4659 = vlaneseq
          %v4660 = vshrl.u32 %v4659, 7
          %v4661 = vsub.s32 1, %v4660
          %v4662 = vrot.slane %v4642, %v4661
          %v4663 = vlaneseq
          %v4664 = vshrl.u32 %v4663, 7
          %v4665 = vsub.s32 1, %v4664
          %v4666 = vrot.slane %v4646, %v4665
          %v4667 = vlaneseq
          %v4668 = vshrl.u32 %v4667, 7
          %v4669 = vsub.s32 1, %v4668
          %v4670 = vrot.slane %v4650, %v4669
          %v4671 = vmax.f32 %v4509, %v4658
          %v4672 = vmax.f32 %v4509, %v4662
          %v4673 = vmax.f32 %v4509, %v4666
          %v4674 = vmax.f32 %v4509, %v4670
          %v4675 = vmax.f32 %v4513, %v4658
          %v4676 = vmax.f32 %v4513, %v4662
          %v4677 = vmax.f32 %v4513, %v4666
          %v4678 = vmax.f32 %v4513, %v4670
          %v4679 = vmax.f32 %v4517, %v4658
          %v4680 = vmax.f32 %v4517, %v4662
          %v4681 = vmax.f32 %v4517, %v4666
          %v4682 = vmax.f32 %v4517, %v4670
          %v4683 = vmax.f32 %v4521, %v4658
          %v4684 = vmax.f32 %v4521, %v4662
          %v4685 = vmax.f32 %v4521, %v4666
          %v4686 = vmax.f32 %v4521, %v4670
          %v4687 = vmax.f32 %v4525, %v4658
          %v4688 = vmax.f32 %v4525, %v4662
          %v4689 = vmax.f32 %v4525, %v4666
          %v4690 = vmax.f32 %v4525, %v4670
          %v4691 = vmax.f32 %v4529, %v4658
          %v4692 = vmax.f32 %v4529, %v4662
          %v4693 = vmax.f32 %v4529, %v4666
          %v4694 = vmax.f32 %v4529, %v4670
          %v4695 = vmax.f32 %v4533, %v4658
          %v4696 = vmax.f32 %v4533, %v4662
          %v4697 = vmax.f32 %v4533, %v4666
          %v4698 = vmax.f32 %v4533, %v4670
          %v4699 = vmax.f32 %v4537, %v4658
          %v4700 = vmax.f32 %v4537, %v4662
          %v4701 = vmax.f32 %v4537, %v4666
          %v4702 = vmax.f32 %v4537, %v4670
          %v4703 = vmax.f32 %v4541, %v4658
          %v4704 = vmax.f32 %v4541, %v4662
          %v4705 = vmax.f32 %v4541, %v4666
          %v4706 = vmax.f32 %v4541, %v4670
          %v4707 = vmax.f32 %v4545, %v4658
          %v4708 = vmax.f32 %v4545, %v4662
          %v4709 = vmax.f32 %v4545, %v4666
          %v4710 = vmax.f32 %v4545, %v4670
          %v4711 = vmax.f32 %v4549, %v4658
          %v4712 = vmax.f32 %v4549, %v4662
          %v4713 = vmax.f32 %v4549, %v4666
          %v4714 = vmax.f32 %v4549, %v4670
          %v4715 = vmax.f32 %v4553, %v4658
          %v4716 = vmax.f32 %v4553, %v4662
          %v4717 = vmax.f32 %v4553, %v4666
          %v4718 = vmax.f32 %v4553, %v4670
          %v4719 = vmax.f32 %v4557, %v4658
          %v4720 = vmax.f32 %v4557, %v4662
          %v4721 = vmax.f32 %v4557, %v4666
          %v4722 = vmax.f32 %v4557, %v4670
          %v4723 = vmax.f32 %v4561, %v4658
          %v4724 = vmax.f32 %v4561, %v4662
          %v4725 = vmax.f32 %v4561, %v4666
          %v4726 = vmax.f32 %v4561, %v4670
          %v4727 = vmax.f32 %v4565, %v4658
          %v4728 = vmax.f32 %v4565, %v4662
          %v4729 = vmax.f32 %v4565, %v4666
          %v4730 = vmax.f32 %v4565, %v4670
          %v4731 = vmax.f32 %v4569, %v4658
          %v4732 = vmax.f32 %v4569, %v4662
          %v4733 = vmax.f32 %v4569, %v4666
          %v4734 = vmax.f32 %v4569, %v4670
          %v4735 = vmax.f32 %v4573, %v4658
          %v4736 = vmax.f32 %v4573, %v4662
          %v4737 = vmax.f32 %v4573, %v4666
          %v4738 = vmax.f32 %v4573, %v4670
          %v4739 = vmax.f32 %v4577, %v4658
          %v4740 = vmax.f32 %v4577, %v4662
          %v4741 = vmax.f32 %v4577, %v4666
          %v4742 = vmax.f32 %v4577, %v4670
          %v4743 = vmax.f32 %v4581, %v4658
          %v4744 = vmax.f32 %v4581, %v4662
          %v4745 = vmax.f32 %v4581, %v4666
          %v4746 = vmax.f32 %v4581, %v4670
          %v4747 = vmax.f32 %v4585, %v4658
          %v4748 = vmax.f32 %v4585, %v4662
          %v4749 = vmax.f32 %v4585, %v4666
          %v4750 = vmax.f32 %v4585, %v4670
          %v4751 = vmax.f32 %v4589, %v4658
          %v4752 = vmax.f32 %v4589, %v4662
          %v4753 = vmax.f32 %v4589, %v4666
          %v4754 = vmax.f32 %v4589, %v4670
          %v4755 = vmax.f32 %v4593, %v4658
          %v4756 = vmax.f32 %v4593, %v4662
          %v4757 = vmax.f32 %v4593, %v4666
          %v4758 = vmax.f32 %v4593, %v4670
          %v4759 = vmax.f32 %v4597, %v4658
          %v4760 = vmax.f32 %v4597, %v4662
          %v4761 = vmax.f32 %v4597, %v4666
          %v4762 = vmax.f32 %v4597, %v4670
          %v4763 = vmax.f32 %v4601, %v4658
          %v4764 = vmax.f32 %v4601, %v4662
          %v4765 = vmax.f32 %v4601, %v4666
          %v4766 = vmax.f32 %v4601, %v4670
          %v4767 = vmax.f32 %v4605, %v4658
          %v4768 = vmax.f32 %v4605, %v4662
          %v4769 = vmax.f32 %v4605, %v4666
          %v4770 = vmax.f32 %v4605, %v4670
          %v4771 = vmax.f32 %v4609, %v4658
          %v4772 = vmax.f32 %v4609, %v4662
          %v4773 = vmax.f32 %v4609, %v4666
          %v4774 = vmax.f32 %v4609, %v4670
          %v4775 = vmax.f32 %v4613, %v4658
          %v4776 = vmax.f32 %v4613, %v4662
          %v4777 = vmax.f32 %v4613, %v4666
          %v4778 = vmax.f32 %v4613, %v4670
          %v4779 = vmax.f32 %v4617, %v4658
          %v4780 = vmax.f32 %v4617, %v4662
          %v4781 = vmax.f32 %v4617, %v4666
          %v4782 = vmax.f32 %v4617, %v4670
          %v4783 = vmax.f32 %v4621, %v4658
          %v4784 = vmax.f32 %v4621, %v4662
          %v4785 = vmax.f32 %v4621, %v4666
          %v4786 = vmax.f32 %v4621, %v4670
          %v4787 = vmax.f32 %v4625, %v4658
          %v4788 = vmax.f32 %v4625, %v4662
          %v4789 = vmax.f32 %v4625, %v4666
          %v4790 = vmax.f32 %v4625, %v4670
          %v4791 = vmax.f32 %v4629, %v4658
          %v4792 = vmax.f32 %v4629, %v4662
          %v4793 = vmax.f32 %v4629, %v4666
          %v4794 = vmax.f32 %v4629, %v4670
          %v4795 = vmax.f32 %v4633, %v4658
          %v4796 = vmax.f32 %v4633, %v4662
          %v4797 = vmax.f32 %v4633, %v4666
          %v4798 = vmax.f32 %v4633, %v4670
          %v4799 = vsub.f32 %v4379, %v4671
          %v4800 = vsub.f32 %v4380, %v4672
          %v4801 = vsub.f32 %v4381, %v4673
          %v4802 = vsub.f32 %v4382, %v4674
          %v4803 = vsub.f32 %v4383, %v4675
          %v4804 = vsub.f32 %v4384, %v4676
          %v4805 = vsub.f32 %v4385, %v4677
          %v4806 = vsub.f32 %v4386, %v4678
          %v4807 = vsub.f32 %v4387, %v4679
          %v4808 = vsub.f32 %v4388, %v4680
          %v4809 = vsub.f32 %v4389, %v4681
          %v4810 = vsub.f32 %v4390, %v4682
          %v4811 = vsub.f32 %v4391, %v4683
          %v4812 = vsub.f32 %v4392, %v4684
          %v4813 = vsub.f32 %v4393, %v4685
          %v4814 = vsub.f32 %v4394, %v4686
          %v4815 = vsub.f32 %v4395, %v4687
          %v4816 = vsub.f32 %v4396, %v4688
          %v4817 = vsub.f32 %v4397, %v4689
          %v4818 = vsub.f32 %v4398, %v4690
          %v4819 = vsub.f32 %v4399, %v4691
          %v4820 = vsub.f32 %v4400, %v4692
          %v4821 = vsub.f32 %v4401, %v4693
          %v4822 = vsub.f32 %v4402, %v4694
          %v4823 = vsub.f32 %v4403, %v4695
          %v4824 = vsub.f32 %v4404, %v4696
          %v4825 = vsub.f32 %v4405, %v4697
          %v4826 = vsub.f32 %v4406, %v4698
          %v4827 = vsub.f32 %v4407, %v4699
          %v4828 = vsub.f32 %v4408, %v4700
          %v4829 = vsub.f32 %v4409, %v4701
          %v4830 = vsub.f32 %v4410, %v4702
          %v4831 = vsub.f32 %v4411, %v4703
          %v4832 = vsub.f32 %v4412, %v4704
          %v4833 = vsub.f32 %v4413, %v4705
          %v4834 = vsub.f32 %v4414, %v4706
          %v4835 = vsub.f32 %v4415, %v4707
          %v4836 = vsub.f32 %v4416, %v4708
          %v4837 = vsub.f32 %v4417, %v4709
          %v4838 = vsub.f32 %v4418, %v4710
          %v4839 = vsub.f32 %v4419, %v4711
          %v4840 = vsub.f32 %v4420, %v4712
          %v4841 = vsub.f32 %v4421, %v4713
          %v4842 = vsub.f32 %v4422, %v4714
          %v4843 = vsub.f32 %v4423, %v4715
          %v4844 = vsub.f32 %v4424, %v4716
          %v4845 = vsub.f32 %v4425, %v4717
          %v4846 = vsub.f32 %v4426, %v4718
          %v4847 = vsub.f32 %v4427, %v4719
          %v4848 = vsub.f32 %v4428, %v4720
          %v4849 = vsub.f32 %v4429, %v4721
          %v4850 = vsub.f32 %v4430, %v4722
          %v4851 = vsub.f32 %v4431, %v4723
          %v4852 = vsub.f32 %v4432, %v4724
          %v4853 = vsub.f32 %v4433, %v4725
          %v4854 = vsub.f32 %v4434, %v4726
          %v4855 = vsub.f32 %v4435, %v4727
          %v4856 = vsub.f32 %v4436, %v4728
          %v4857 = vsub.f32 %v4437, %v4729
          %v4858 = vsub.f32 %v4438, %v4730
          %v4859 = vsub.f32 %v4439, %v4731
          %v4860 = vsub.f32 %v4440, %v4732
          %v4861 = vsub.f32 %v4441, %v4733
          %v4862 = vsub.f32 %v4442, %v4734
          %v4863 = vsub.f32 %v4443, %v4735
          %v4864 = vsub.f32 %v4444, %v4736
          %v4865 = vsub.f32 %v4445, %v4737
          %v4866 = vsub.f32 %v4446, %v4738
          %v4867 = vsub.f32 %v4447, %v4739
          %v4868 = vsub.f32 %v4448, %v4740
          %v4869 = vsub.f32 %v4449, %v4741
          %v4870 = vsub.f32 %v4450, %v4742
          %v4871 = vsub.f32 %v4451, %v4743
          %v4872 = vsub.f32 %v4452, %v4744
          %v4873 = vsub.f32 %v4453, %v4745
          %v4874 = vsub.f32 %v4454, %v4746
          %v4875 = vsub.f32 %v4455, %v4747
          %v4876 = vsub.f32 %v4456, %v4748
          %v4877 = vsub.f32 %v4457, %v4749
          %v4878 = vsub.f32 %v4458, %v4750
          %v4879 = vsub.f32 %v4459, %v4751
          %v4880 = vsub.f32 %v4460, %v4752
          %v4881 = vsub.f32 %v4461, %v4753
          %v4882 = vsub.f32 %v4462, %v4754
          %v4883 = vsub.f32 %v4463, %v4755
          %v4884 = vsub.f32 %v4464, %v4756
          %v4885 = vsub.f32 %v4465, %v4757
          %v4886 = vsub.f32 %v4466, %v4758
          %v4887 = vsub.f32 %v4467, %v4759
          %v4888 = vsub.f32 %v4468, %v4760
          %v4889 = vsub.f32 %v4469, %v4761
          %v4890 = vsub.f32 %v4470, %v4762
          %v4891 = vsub.f32 %v4471, %v4763
          %v4892 = vsub.f32 %v4472, %v4764
          %v4893 = vsub.f32 %v4473, %v4765
          %v4894 = vsub.f32 %v4474, %v4766
          %v4895 = vsub.f32 %v4475, %v4767
          %v4896 = vsub.f32 %v4476, %v4768
          %v4897 = vsub.f32 %v4477, %v4769
          %v4898 = vsub.f32 %v4478, %v4770
          %v4899 = vsub.f32 %v4479, %v4771
          %v4900 = vsub.f32 %v4480, %v4772
          %v4901 = vsub.f32 %v4481, %v4773
          %v4902 = vsub.f32 %v4482, %v4774
          %v4903 = vsub.f32 %v4483, %v4775
          %v4904 = vsub.f32 %v4484, %v4776
          %v4905 = vsub.f32 %v4485, %v4777
          %v4906 = vsub.f32 %v4486, %v4778
          %v4907 = vsub.f32 %v4487, %v4779
          %v4908 = vsub.f32 %v4488, %v4780
          %v4909 = vsub.f32 %v4489, %v4781
          %v4910 = vsub.f32 %v4490, %v4782
          %v4911 = vsub.f32 %v4491, %v4783
          %v4912 = vsub.f32 %v4492, %v4784
          %v4913 = vsub.f32 %v4493, %v4785
          %v4914 = vsub.f32 %v4494, %v4786
          %v4915 = vsub.f32 %v4495, %v4787
          %v4916 = vsub.f32 %v4496, %v4788
          %v4917 = vsub.f32 %v4497, %v4789
          %v4918 = vsub.f32 %v4498, %v4790
          %v4919 = vsub.f32 %v4499, %v4791
          %v4920 = vsub.f32 %v4500, %v4792
          %v4921 = vsub.f32 %v4501, %v4793
          %v4922 = vsub.f32 %v4502, %v4794
          %v4923 = vsub.f32 %v4503, %v4795
          %v4924 = vsub.f32 %v4504, %v4796
          %v4925 = vsub.f32 %v4505, %v4797
          %v4926 = vsub.f32 %v4506, %v4798
          %v4927 = vmax.f32 %v4799, 0.0
          %v4928 = vmax.f32 %v4800, 0.0
          %v4929 = vmax.f32 %v4801, 0.0
          %v4930 = vmax.f32 %v4802, 0.0
          %v4931 = vmax.f32 %v4803, 0.0
          %v4932 = vmax.f32 %v4804, 0.0
          %v4933 = vmax.f32 %v4805, 0.0
          %v4934 = vmax.f32 %v4806, 0.0
          %v4935 = vmax.f32 %v4807, 0.0
          %v4936 = vmax.f32 %v4808, 0.0
          %v4937 = vmax.f32 %v4809, 0.0
          %v4938 = vmax.f32 %v4810, 0.0
          %v4939 = vmax.f32 %v4811, 0.0
          %v4940 = vmax.f32 %v4812, 0.0
          %v4941 = vmax.f32 %v4813, 0.0
          %v4942 = vmax.f32 %v4814, 0.0
          %v4943 = vmax.f32 %v4815, 0.0
          %v4944 = vmax.f32 %v4816, 0.0
          %v4945 = vmax.f32 %v4817, 0.0
          %v4946 = vmax.f32 %v4818, 0.0
          %v4947 = vmax.f32 %v4819, 0.0
          %v4948 = vmax.f32 %v4820, 0.0
          %v4949 = vmax.f32 %v4821, 0.0
          %v4950 = vmax.f32 %v4822, 0.0
          %v4951 = vmax.f32 %v4823, 0.0
          %v4952 = vmax.f32 %v4824, 0.0
          %v4953 = vmax.f32 %v4825, 0.0
          %v4954 = vmax.f32 %v4826, 0.0
          %v4955 = vmax.f32 %v4827, 0.0
          %v4956 = vmax.f32 %v4828, 0.0
          %v4957 = vmax.f32 %v4829, 0.0
          %v4958 = vmax.f32 %v4830, 0.0
          %v4959 = vmax.f32 %v4831, 0.0
          %v4960 = vmax.f32 %v4832, 0.0
          %v4961 = vmax.f32 %v4833, 0.0
          %v4962 = vmax.f32 %v4834, 0.0
          %v4963 = vmax.f32 %v4835, 0.0
          %v4964 = vmax.f32 %v4836, 0.0
          %v4965 = vmax.f32 %v4837, 0.0
          %v4966 = vmax.f32 %v4838, 0.0
          %v4967 = vmax.f32 %v4839, 0.0
          %v4968 = vmax.f32 %v4840, 0.0
          %v4969 = vmax.f32 %v4841, 0.0
          %v4970 = vmax.f32 %v4842, 0.0
          %v4971 = vmax.f32 %v4843, 0.0
          %v4972 = vmax.f32 %v4844, 0.0
          %v4973 = vmax.f32 %v4845, 0.0
          %v4974 = vmax.f32 %v4846, 0.0
          %v4975 = vmax.f32 %v4847, 0.0
          %v4976 = vmax.f32 %v4848, 0.0
          %v4977 = vmax.f32 %v4849, 0.0
          %v4978 = vmax.f32 %v4850, 0.0
          %v4979 = vmax.f32 %v4851, 0.0
          %v4980 = vmax.f32 %v4852, 0.0
          %v4981 = vmax.f32 %v4853, 0.0
          %v4982 = vmax.f32 %v4854, 0.0
          %v4983 = vmax.f32 %v4855, 0.0
          %v4984 = vmax.f32 %v4856, 0.0
          %v4985 = vmax.f32 %v4857, 0.0
          %v4986 = vmax.f32 %v4858, 0.0
          %v4987 = vmax.f32 %v4859, 0.0
          %v4988 = vmax.f32 %v4860, 0.0
          %v4989 = vmax.f32 %v4861, 0.0
          %v4990 = vmax.f32 %v4862, 0.0
          %v4991 = vmax.f32 %v4863, 0.0
          %v4992 = vmax.f32 %v4864, 0.0
          %v4993 = vmax.f32 %v4865, 0.0
          %v4994 = vmax.f32 %v4866, 0.0
          %v4995 = vmax.f32 %v4867, 0.0
          %v4996 = vmax.f32 %v4868, 0.0
          %v4997 = vmax.f32 %v4869, 0.0
          %v4998 = vmax.f32 %v4870, 0.0
          %v4999 = vmax.f32 %v4871, 0.0
          %v5000 = vmax.f32 %v4872, 0.0
          %v5001 = vmax.f32 %v4873, 0.0
          %v5002 = vmax.f32 %v4874, 0.0
          %v5003 = vmax.f32 %v4875, 0.0
          %v5004 = vmax.f32 %v4876, 0.0
          %v5005 = vmax.f32 %v4877, 0.0
          %v5006 = vmax.f32 %v4878, 0.0
          %v5007 = vmax.f32 %v4879, 0.0
          %v5008 = vmax.f32 %v4880, 0.0
          %v5009 = vmax.f32 %v4881, 0.0
          %v5010 = vmax.f32 %v4882, 0.0
          %v5011 = vmax.f32 %v4883, 0.0
          %v5012 = vmax.f32 %v4884, 0.0
          %v5013 = vmax.f32 %v4885, 0.0
          %v5014 = vmax.f32 %v4886, 0.0
          %v5015 = vmax.f32 %v4887, 0.0
          %v5016 = vmax.f32 %v4888, 0.0
          %v5017 = vmax.f32 %v4889, 0.0
          %v5018 = vmax.f32 %v4890, 0.0
          %v5019 = vmax.f32 %v4891, 0.0
          %v5020 = vmax.f32 %v4892, 0.0
          %v5021 = vmax.f32 %v4893, 0.0
          %v5022 = vmax.f32 %v4894, 0.0
          %v5023 = vmax.f32 %v4895, 0.0
          %v5024 = vmax.f32 %v4896, 0.0
          %v5025 = vmax.f32 %v4897, 0.0
          %v5026 = vmax.f32 %v4898, 0.0
          %v5027 = vmax.f32 %v4899, 0.0
          %v5028 = vmax.f32 %v4900, 0.0
          %v5029 = vmax.f32 %v4901, 0.0
          %v5030 = vmax.f32 %v4902, 0.0
          %v5031 = vmax.f32 %v4903, 0.0
          %v5032 = vmax.f32 %v4904, 0.0
          %v5033 = vmax.f32 %v4905, 0.0
          %v5034 = vmax.f32 %v4906, 0.0
          %v5035 = vmax.f32 %v4907, 0.0
          %v5036 = vmax.f32 %v4908, 0.0
          %v5037 = vmax.f32 %v4909, 0.0
          %v5038 = vmax.f32 %v4910, 0.0
          %v5039 = vmax.f32 %v4911, 0.0
          %v5040 = vmax.f32 %v4912, 0.0
          %v5041 = vmax.f32 %v4913, 0.0
          %v5042 = vmax.f32 %v4914, 0.0
          %v5043 = vmax.f32 %v4915, 0.0
          %v5044 = vmax.f32 %v4916, 0.0
          %v5045 = vmax.f32 %v4917, 0.0
          %v5046 = vmax.f32 %v4918, 0.0
          %v5047 = vmax.f32 %v4919, 0.0
          %v5048 = vmax.f32 %v4920, 0.0
          %v5049 = vmax.f32 %v4921, 0.0
          %v5050 = vmax.f32 %v4922, 0.0
          %v5051 = vmax.f32 %v4923, 0.0
          %v5052 = vmax.f32 %v4924, 0.0
          %v5053 = vmax.f32 %v4925, 0.0
          %v5054 = vmax.f32 %v4926, 0.0
          %v5055 = vmul.f32 %v4087, %v4927
          %v5056 = vmul.f32 %v4088, %v4928
          %v5057 = vmul.f32 %v4089, %v4929
          %v5058 = vmul.f32 %v4090, %v4930
          %v5059 = vmul.f32 %v4091, %v4931
          %v5060 = vmul.f32 %v4092, %v4932
          %v5061 = vmul.f32 %v4093, %v4933
          %v5062 = vmul.f32 %v4094, %v4934
          %v5063 = vmul.f32 %v4095, %v4935
          %v5064 = vmul.f32 %v4096, %v4936
          %v5065 = vmul.f32 %v4097, %v4937
          %v5066 = vmul.f32 %v4098, %v4938
          %v5067 = vmul.f32 %v4099, %v4939
          %v5068 = vmul.f32 %v4100, %v4940
          %v5069 = vmul.f32 %v4101, %v4941
          %v5070 = vmul.f32 %v4102, %v4942
          %v5071 = vmul.f32 %v4103, %v4943
          %v5072 = vmul.f32 %v4104, %v4944
          %v5073 = vmul.f32 %v4105, %v4945
          %v5074 = vmul.f32 %v4106, %v4946
          %v5075 = vmul.f32 %v4107, %v4947
          %v5076 = vmul.f32 %v4108, %v4948
          %v5077 = vmul.f32 %v4109, %v4949
          %v5078 = vmul.f32 %v4110, %v4950
          %v5079 = vmul.f32 %v4111, %v4951
          %v5080 = vmul.f32 %v4112, %v4952
          %v5081 = vmul.f32 %v4113, %v4953
          %v5082 = vmul.f32 %v4114, %v4954
          %v5083 = vmul.f32 %v4115, %v4955
          %v5084 = vmul.f32 %v4116, %v4956
          %v5085 = vmul.f32 %v4117, %v4957
          %v5086 = vmul.f32 %v4118, %v4958
          %v5087 = vmul.f32 %v4119, %v4959
          %v5088 = vmul.f32 %v4120, %v4960
          %v5089 = vmul.f32 %v4121, %v4961
          %v5090 = vmul.f32 %v4122, %v4962
          %v5091 = vmul.f32 %v4123, %v4963
          %v5092 = vmul.f32 %v4124, %v4964
          %v5093 = vmul.f32 %v4125, %v4965
          %v5094 = vmul.f32 %v4126, %v4966
          %v5095 = vmul.f32 %v4127, %v4967
          %v5096 = vmul.f32 %v4128, %v4968
          %v5097 = vmul.f32 %v4129, %v4969
          %v5098 = vmul.f32 %v4130, %v4970
          %v5099 = vmul.f32 %v4131, %v4971
          %v5100 = vmul.f32 %v4132, %v4972
          %v5101 = vmul.f32 %v4133, %v4973
          %v5102 = vmul.f32 %v4134, %v4974
          %v5103 = vmul.f32 %v4135, %v4975
          %v5104 = vmul.f32 %v4136, %v4976
          %v5105 = vmul.f32 %v4137, %v4977
          %v5106 = vmul.f32 %v4138, %v4978
          %v5107 = vmul.f32 %v4139, %v4979
          %v5108 = vmul.f32 %v4140, %v4980
          %v5109 = vmul.f32 %v4141, %v4981
          %v5110 = vmul.f32 %v4142, %v4982
          %v5111 = vmul.f32 %v4143, %v4983
          %v5112 = vmul.f32 %v4144, %v4984
          %v5113 = vmul.f32 %v4145, %v4985
          %v5114 = vmul.f32 %v4146, %v4986
          %v5115 = vmul.f32 %v4147, %v4987
          %v5116 = vmul.f32 %v4148, %v4988
          %v5117 = vmul.f32 %v4149, %v4989
          %v5118 = vmul.f32 %v4150, %v4990
          %v5119 = vmul.f32 %v4151, %v4991
          %v5120 = vmul.f32 %v4152, %v4992
          %v5121 = vmul.f32 %v4153, %v4993
          %v5122 = vmul.f32 %v4154, %v4994
          %v5123 = vmul.f32 %v4155, %v4995
          %v5124 = vmul.f32 %v4156, %v4996
          %v5125 = vmul.f32 %v4157, %v4997
          %v5126 = vmul.f32 %v4158, %v4998
          %v5127 = vmul.f32 %v4159, %v4999
          %v5128 = vmul.f32 %v4160, %v5000
          %v5129 = vmul.f32 %v4161, %v5001
          %v5130 = vmul.f32 %v4162, %v5002
          %v5131 = vmul.f32 %v4163, %v5003
          %v5132 = vmul.f32 %v4164, %v5004
          %v5133 = vmul.f32 %v4165, %v5005
          %v5134 = vmul.f32 %v4166, %v5006
          %v5135 = vmul.f32 %v4167, %v5007
          %v5136 = vmul.f32 %v4168, %v5008
          %v5137 = vmul.f32 %v4169, %v5009
          %v5138 = vmul.f32 %v4170, %v5010
          %v5139 = vmul.f32 %v4171, %v5011
          %v5140 = vmul.f32 %v4172, %v5012
          %v5141 = vmul.f32 %v4173, %v5013
          %v5142 = vmul.f32 %v4174, %v5014
          %v5143 = vmul.f32 %v4175, %v5015
          %v5144 = vmul.f32 %v4176, %v5016
          %v5145 = vmul.f32 %v4177, %v5017
          %v5146 = vmul.f32 %v4178, %v5018
          %v5147 = vmul.f32 %v4179, %v5019
          %v5148 = vmul.f32 %v4180, %v5020
          %v5149 = vmul.f32 %v4181, %v5021
          %v5150 = vmul.f32 %v4182, %v5022
          %v5151 = vmul.f32 %v4183, %v5023
          %v5152 = vmul.f32 %v4184, %v5024
          %v5153 = vmul.f32 %v4185, %v5025
          %v5154 = vmul.f32 %v4186, %v5026
          %v5155 = vmul.f32 %v4187, %v5027
          %v5156 = vmul.f32 %v4188, %v5028
          %v5157 = vmul.f32 %v4189, %v5029
          %v5158 = vmul.f32 %v4190, %v5030
          %v5159 = vmul.f32 %v4191, %v5031
          %v5160 = vmul.f32 %v4192, %v5032
          %v5161 = vmul.f32 %v4193, %v5033
          %v5162 = vmul.f32 %v4194, %v5034
          %v5163 = vmul.f32 %v4195, %v5035
          %v5164 = vmul.f32 %v4196, %v5036
          %v5165 = vmul.f32 %v4197, %v5037
          %v5166 = vmul.f32 %v4198, %v5038
          %v5167 = vmul.f32 %v4199, %v5039
          %v5168 = vmul.f32 %v4200, %v5040
          %v5169 = vmul.f32 %v4201, %v5041
          %v5170 = vmul.f32 %v4202, %v5042
          %v5171 = vmul.f32 %v4203, %v5043
          %v5172 = vmul.f32 %v4204, %v5044
          %v5173 = vmul.f32 %v4205, %v5045
          %v5174 = vmul.f32 %v4206, %v5046
          %v5175 = vmul.f32 %v4207, %v5047
          %v5176 = vmul.f32 %v4208, %v5048
          %v5177 = vmul.f32 %v4209, %v5049
          %v5178 = vmul.f32 %v4210, %v5050
          %v5179 = vmul.f32 %v4211, %v5051
          %v5180 = vmul.f32 %v4212, %v5052
          %v5181 = vmul.f32 %v4213, %v5053
          %v5182 = vmul.f32 %v4214, %v5054
          %5215 = vrot.lane.b32.xlu0 %v2643, 127
          %v5216 = vpop.permute.xlu0 %5215
          %5217 = vrot.lane.b32.xlu0 %v2644, 127
          %v5218 = vpop.permute.xlu0 %5217
          %5219 = vrot.lane.b32.xlu0 %v2645, 127
          %v5220 = vpop.permute.xlu0 %5219
          %5221 = vrot.lane.b32.xlu0 %v2646, 127
          %v5222 = vpop.permute.xlu0 %5221
          %5223 = vrot.lane.b32.xlu0 %v2647, 127
          %v5224 = vpop.permute.xlu0 %5223
          %5225 = vrot.lane.b32.xlu0 %v2648, 127
          %v5226 = vpop.permute.xlu0 %5225
          %5227 = vrot.lane.b32.xlu0 %v2649, 127
          %v5228 = vpop.permute.xlu0 %5227
          %5229 = vrot.lane.b32.xlu0 %v2650, 127
          %v5230 = vpop.permute.xlu0 %5229
          %5231 = vrot.lane.b32.xlu0 %v2651, 127
          %v5232 = vpop.permute.xlu0 %5231
          %5233 = vrot.lane.b32.xlu0 %v2652, 127
          %v5234 = vpop.permute.xlu0 %5233
          %5235 = vrot.lane.b32.xlu0 %v2653, 127
          %v5236 = vpop.permute.xlu0 %5235
          %5237 = vrot.lane.b32.xlu0 %v2654, 127
          %v5238 = vpop.permute.xlu0 %5237
          %5239 = vrot.lane.b32.xlu0 %v2655, 127
          %v5240 = vpop.permute.xlu0 %5239
          %5241 = vrot.lane.b32.xlu0 %v2656, 127
          %v5242 = vpop.permute.xlu0 %5241
          %5243 = vrot.lane.b32.xlu0 %v2657, 127
          %v5244 = vpop.permute.xlu0 %5243
          %5245 = vrot.lane.b32.xlu0 %v2658, 127
          %v5246 = vpop.permute.xlu0 %5245
          %5247 = vrot.lane.b32.xlu0 %v2659, 127
          %v5248 = vpop.permute.xlu0 %5247
          %5249 = vrot.lane.b32.xlu0 %v2660, 127
          %v5250 = vpop.permute.xlu0 %5249
          %5251 = vrot.lane.b32.xlu0 %v2661, 127
          %v5252 = vpop.permute.xlu0 %5251
          %5253 = vrot.lane.b32.xlu0 %v2662, 127
          %v5254 = vpop.permute.xlu0 %5253
          %5255 = vrot.lane.b32.xlu0 %v2663, 127
          %v5256 = vpop.permute.xlu0 %5255
          %5257 = vrot.lane.b32.xlu0 %v2664, 127
          %v5258 = vpop.permute.xlu0 %5257
          %5259 = vrot.lane.b32.xlu0 %v2665, 127
          %v5260 = vpop.permute.xlu0 %5259
          %5261 = vrot.lane.b32.xlu0 %v2666, 127
          %v5262 = vpop.permute.xlu0 %5261
          %5263 = vrot.lane.b32.xlu0 %v2667, 127
          %v5264 = vpop.permute.xlu0 %5263
          %5265 = vrot.lane.b32.xlu0 %v2668, 127
          %v5266 = vpop.permute.xlu0 %5265
          %5267 = vrot.lane.b32.xlu0 %v2669, 127
          %v5268 = vpop.permute.xlu0 %5267
          %5269 = vrot.lane.b32.xlu0 %v2670, 127
          %v5270 = vpop.permute.xlu0 %5269
          %5271 = vrot.lane.b32.xlu0 %v2671, 127
          %v5272 = vpop.permute.xlu0 %5271
          %5273 = vrot.lane.b32.xlu0 %v2672, 127
          %v5274 = vpop.permute.xlu0 %5273
          %5275 = vrot.lane.b32.xlu0 %v2673, 127
          %v5276 = vpop.permute.xlu0 %5275
          %5277 = vrot.lane.b32.xlu0 %v2674, 127
          %v5278 = vpop.permute.xlu0 %5277
          %v5311 = vmul.f32 %v2643, %v5216
          %v5312 = vmul.f32 %v2644, %v5218
          %v5313 = vmul.f32 %v2645, %v5220
          %v5314 = vmul.f32 %v2646, %v5222
          %v5315 = vmul.f32 %v2647, %v5224
          %v5316 = vmul.f32 %v2648, %v5226
          %v5317 = vmul.f32 %v2649, %v5228
          %v5318 = vmul.f32 %v2650, %v5230
          %v5319 = vmul.f32 %v2651, %v5232
          %v5320 = vmul.f32 %v2652, %v5234
          %v5321 = vmul.f32 %v2653, %v5236
          %v5322 = vmul.f32 %v2654, %v5238
          %v5323 = vmul.f32 %v2655, %v5240
          %v5324 = vmul.f32 %v2656, %v5242
          %v5325 = vmul.f32 %v2657, %v5244
          %v5326 = vmul.f32 %v2658, %v5246
          %v5327 = vmul.f32 %v2659, %v5248
          %v5328 = vmul.f32 %v2660, %v5250
          %v5329 = vmul.f32 %v2661, %v5252
          %v5330 = vmul.f32 %v2662, %v5254
          %v5331 = vmul.f32 %v2663, %v5256
          %v5332 = vmul.f32 %v2664, %v5258
          %v5333 = vmul.f32 %v2665, %v5260
          %v5334 = vmul.f32 %v2666, %v5262
          %v5335 = vmul.f32 %v2667, %v5264
          %v5336 = vmul.f32 %v2668, %v5266
          %v5337 = vmul.f32 %v2669, %v5268
          %v5338 = vmul.f32 %v2670, %v5270
          %v5339 = vmul.f32 %v2671, %v5272
          %v5340 = vmul.f32 %v2672, %v5274
          %v5341 = vmul.f32 %v2673, %v5276
          %v5342 = vmul.f32 %v2674, %v5278
          %v5345 = vrot.slane %v2707, 5
          %v5346 = vrot.slane %v5345, 4
          %v5347 = vrot.slane %v2708, 5
          %v5348 = vrot.slane %v5347, 4
          %v5351 = vmul.f32 %v2707, %v5346
          %v5352 = vmul.f32 %v2708, %v5348
          %5354 = vset.pattern.permute.xlu0 2
          %5355 = vperm.xlu0 %5354, %v5311
          %v5356 = vpop.permute.xlu0 %5355
          %5359 = vset.pattern.permute.xlu0 2
          %5360 = vperm.xlu0 %5359, %v5312
          %v5361 = vpop.permute.xlu0 %5360
          %5364 = vset.pattern.permute.xlu0 2
          %5365 = vperm.xlu0 %5364, %v5313
          %v5366 = vpop.permute.xlu0 %5365
          %5369 = vset.pattern.permute.xlu0 2
          %5370 = vperm.xlu0 %5369, %v5314
          %v5371 = vpop.permute.xlu0 %5370
          %5374 = vset.pattern.permute.xlu0 2
          %5375 = vperm.xlu0 %5374, %v5315
          %v5376 = vpop.permute.xlu0 %5375
          %5379 = vset.pattern.permute.xlu0 2
          %5380 = vperm.xlu0 %5379, %v5316
          %v5381 = vpop.permute.xlu0 %5380
          %5384 = vset.pattern.permute.xlu0 2
          %5385 = vperm.xlu0 %5384, %v5317
          %v5386 = vpop.permute.xlu0 %5385
          %5389 = vset.pattern.permute.xlu0 2
          %5390 = vperm.xlu0 %5389, %v5318
          %v5391 = vpop.permute.xlu0 %5390
          %5394 = vset.pattern.permute.xlu0 2
          %5395 = vperm.xlu0 %5394, %v5319
          %v5396 = vpop.permute.xlu0 %5395
          %5399 = vset.pattern.permute.xlu0 2
          %5400 = vperm.xlu0 %5399, %v5320
          %v5401 = vpop.permute.xlu0 %5400
          %5404 = vset.pattern.permute.xlu0 2
          %5405 = vperm.xlu0 %5404, %v5321
          %v5406 = vpop.permute.xlu0 %5405
          %5409 = vset.pattern.permute.xlu0 2
          %5410 = vperm.xlu0 %5409, %v5322
          %v5411 = vpop.permute.xlu0 %5410
          %5414 = vset.pattern.permute.xlu0 2
          %5415 = vperm.xlu0 %5414, %v5323
          %v5416 = vpop.permute.xlu0 %5415
          %5419 = vset.pattern.permute.xlu0 2
          %5420 = vperm.xlu0 %5419, %v5324
          %v5421 = vpop.permute.xlu0 %5420
          %5424 = vset.pattern.permute.xlu0 2
          %5425 = vperm.xlu0 %5424, %v5325
          %v5426 = vpop.permute.xlu0 %5425
          %5429 = vset.pattern.permute.xlu0 2
          %5430 = vperm.xlu0 %5429, %v5326
          %v5431 = vpop.permute.xlu0 %5430
          %5434 = vset.pattern.permute.xlu0 2
          %5435 = vperm.xlu0 %5434, %v5327
          %v5436 = vpop.permute.xlu0 %5435
          %5439 = vset.pattern.permute.xlu0 2
          %5440 = vperm.xlu0 %5439, %v5328
          %v5441 = vpop.permute.xlu0 %5440
          %5444 = vset.pattern.permute.xlu0 2
          %5445 = vperm.xlu0 %5444, %v5329
          %v5446 = vpop.permute.xlu0 %5445
          %5449 = vset.pattern.permute.xlu0 2
          %5450 = vperm.xlu0 %5449, %v5330
          %v5451 = vpop.permute.xlu0 %5450
          %5454 = vset.pattern.permute.xlu0 2
          %5455 = vperm.xlu0 %5454, %v5331
          %v5456 = vpop.permute.xlu0 %5455
          %5459 = vset.pattern.permute.xlu0 2
          %5460 = vperm.xlu0 %5459, %v5332
          %v5461 = vpop.permute.xlu0 %5460
          %5464 = vset.pattern.permute.xlu0 2
          %5465 = vperm.xlu0 %5464, %v5333
          %v5466 = vpop.permute.xlu0 %5465
          %5469 = vset.pattern.permute.xlu0 2
          %5470 = vperm.xlu0 %5469, %v5334
          %v5471 = vpop.permute.xlu0 %5470
          %5474 = vset.pattern.permute.xlu0 2
          %5475 = vperm.xlu0 %5474, %v5335
          %v5476 = vpop.permute.xlu0 %5475
          %5479 = vset.pattern.permute.xlu0 2
          %5480 = vperm.xlu0 %5479, %v5336
          %v5481 = vpop.permute.xlu0 %5480
          %5484 = vset.pattern.permute.xlu0 2
          %5485 = vperm.xlu0 %5484, %v5337
          %v5486 = vpop.permute.xlu0 %5485
          %5489 = vset.pattern.permute.xlu0 2
          %5490 = vperm.xlu0 %5489, %v5338
          %v5491 = vpop.permute.xlu0 %5490
          %5494 = vset.pattern.permute.xlu0 2
          %5495 = vperm.xlu0 %5494, %v5339
          %v5496 = vpop.permute.xlu0 %5495
          %5499 = vset.pattern.permute.xlu0 2
          %5500 = vperm.xlu0 %5499, %v5340
          %v5501 = vpop.permute.xlu0 %5500
          %5504 = vset.pattern.permute.xlu0 2
          %5505 = vperm.xlu0 %5504, %v5341
          %v5506 = vpop.permute.xlu0 %5505
          %5509 = vset.pattern.permute.xlu0 2
          %5510 = vperm.xlu0 %5509, %v5342
          %v5511 = vpop.permute.xlu0 %5510
          %v5515 = vlaneseq
          %v5516 = vshrl.u32 %v5515, 7
          %v5517 = vsub.s32 2, %v5516
          %v5518 = vrot.slane %v5351, %v5517
          %v5519 = vlaneseq
          %v5520 = vshrl.u32 %v5519, 7
          %v5521 = vsub.s32 6, %v5520
          %v5522 = vrot.slane %v5351, %v5521
          %v5523 = vlaneseq
          %v5524 = vshrl.u32 %v5523, 7
          %v5525 = vsub.s32 2, %v5524
          %v5526 = vrot.slane %v5352, %v5525
          %v5527 = vlaneseq
          %v5528 = vshrl.u32 %v5527, 7
          %v5529 = vsub.s32 6, %v5528
          %v5530 = vrot.slane %v5352, %v5529
          %v5535 = vlaneseq
          %v5536 = vshrl.u32 %v5535, 7
          %v5537 = vsub.s32 2, %v5536
          %v5538 = vrot.slane %v5518, %v5537
          %v5539 = vlaneseq
          %v5540 = vshrl.u32 %v5539, 7
          %v5541 = vsub.s32 2, %v5540
          %v5542 = vrot.slane %v5522, %v5541
          %v5543 = vlaneseq
          %v5544 = vshrl.u32 %v5543, 7
          %v5545 = vsub.s32 2, %v5544
          %v5546 = vrot.slane %v5526, %v5545
          %v5547 = vlaneseq
          %v5548 = vshrl.u32 %v5547, 7
          %v5549 = vsub.s32 2, %v5548
          %v5550 = vrot.slane %v5530, %v5549
          %v5551 = vadd.f32 %v5356, %v5538
          %v5552 = vadd.f32 %v5356, %v5542
          %v5553 = vadd.f32 %v5356, %v5546
          %v5554 = vadd.f32 %v5356, %v5550
          %v5555 = vadd.f32 %v5361, %v5538
          %v5556 = vadd.f32 %v5361, %v5542
          %v5557 = vadd.f32 %v5361, %v5546
          %v5558 = vadd.f32 %v5361, %v5550
          %v5559 = vadd.f32 %v5366, %v5538
          %v5560 = vadd.f32 %v5366, %v5542
          %v5561 = vadd.f32 %v5366, %v5546
          %v5562 = vadd.f32 %v5366, %v5550
          %v5563 = vadd.f32 %v5371, %v5538
          %v5564 = vadd.f32 %v5371, %v5542
          %v5565 = vadd.f32 %v5371, %v5546
          %v5566 = vadd.f32 %v5371, %v5550
          %v5567 = vadd.f32 %v5376, %v5538
          %v5568 = vadd.f32 %v5376, %v5542
          %v5569 = vadd.f32 %v5376, %v5546
          %v5570 = vadd.f32 %v5376, %v5550
          %v5571 = vadd.f32 %v5381, %v5538
          %v5572 = vadd.f32 %v5381, %v5542
          %v5573 = vadd.f32 %v5381, %v5546
          %v5574 = vadd.f32 %v5381, %v5550
          %v5575 = vadd.f32 %v5386, %v5538
          %v5576 = vadd.f32 %v5386, %v5542
          %v5577 = vadd.f32 %v5386, %v5546
          %v5578 = vadd.f32 %v5386, %v5550
          %v5579 = vadd.f32 %v5391, %v5538
          %v5580 = vadd.f32 %v5391, %v5542
          %v5581 = vadd.f32 %v5391, %v5546
          %v5582 = vadd.f32 %v5391, %v5550
          %v5583 = vadd.f32 %v5396, %v5538
          %v5584 = vadd.f32 %v5396, %v5542
          %v5585 = vadd.f32 %v5396, %v5546
          %v5586 = vadd.f32 %v5396, %v5550
          %v5587 = vadd.f32 %v5401, %v5538
          %v5588 = vadd.f32 %v5401, %v5542
          %v5589 = vadd.f32 %v5401, %v5546
          %v5590 = vadd.f32 %v5401, %v5550
          %v5591 = vadd.f32 %v5406, %v5538
          %v5592 = vadd.f32 %v5406, %v5542
          %v5593 = vadd.f32 %v5406, %v5546
          %v5594 = vadd.f32 %v5406, %v5550
          %v5595 = vadd.f32 %v5411, %v5538
          %v5596 = vadd.f32 %v5411, %v5542
          %v5597 = vadd.f32 %v5411, %v5546
          %v5598 = vadd.f32 %v5411, %v5550
          %v5599 = vadd.f32 %v5416, %v5538
          %v5600 = vadd.f32 %v5416, %v5542
          %v5601 = vadd.f32 %v5416, %v5546
          %v5602 = vadd.f32 %v5416, %v5550
          %v5603 = vadd.f32 %v5421, %v5538
          %v5604 = vadd.f32 %v5421, %v5542
          %v5605 = vadd.f32 %v5421, %v5546
          %v5606 = vadd.f32 %v5421, %v5550
          %v5607 = vadd.f32 %v5426, %v5538
          %v5608 = vadd.f32 %v5426, %v5542
          %v5609 = vadd.f32 %v5426, %v5546
          %v5610 = vadd.f32 %v5426, %v5550
          %v5611 = vadd.f32 %v5431, %v5538
          %v5612 = vadd.f32 %v5431, %v5542
          %v5613 = vadd.f32 %v5431, %v5546
          %v5614 = vadd.f32 %v5431, %v5550
          %v5615 = vadd.f32 %v5436, %v5538
          %v5616 = vadd.f32 %v5436, %v5542
          %v5617 = vadd.f32 %v5436, %v5546
          %v5618 = vadd.f32 %v5436, %v5550
          %v5619 = vadd.f32 %v5441, %v5538
          %v5620 = vadd.f32 %v5441, %v5542
          %v5621 = vadd.f32 %v5441, %v5546
          %v5622 = vadd.f32 %v5441, %v5550
          %v5623 = vadd.f32 %v5446, %v5538
          %v5624 = vadd.f32 %v5446, %v5542
          %v5625 = vadd.f32 %v5446, %v5546
          %v5626 = vadd.f32 %v5446, %v5550
          %v5627 = vadd.f32 %v5451, %v5538
          %v5628 = vadd.f32 %v5451, %v5542
          %v5629 = vadd.f32 %v5451, %v5546
          %v5630 = vadd.f32 %v5451, %v5550
          %v5631 = vadd.f32 %v5456, %v5538
          %v5632 = vadd.f32 %v5456, %v5542
          %v5633 = vadd.f32 %v5456, %v5546
          %v5634 = vadd.f32 %v5456, %v5550
          %v5635 = vadd.f32 %v5461, %v5538
          %v5636 = vadd.f32 %v5461, %v5542
          %v5637 = vadd.f32 %v5461, %v5546
          %v5638 = vadd.f32 %v5461, %v5550
          %v5639 = vadd.f32 %v5466, %v5538
          %v5640 = vadd.f32 %v5466, %v5542
          %v5641 = vadd.f32 %v5466, %v5546
          %v5642 = vadd.f32 %v5466, %v5550
          %v5643 = vadd.f32 %v5471, %v5538
          %v5644 = vadd.f32 %v5471, %v5542
          %v5645 = vadd.f32 %v5471, %v5546
          %v5646 = vadd.f32 %v5471, %v5550
          %v5647 = vadd.f32 %v5476, %v5538
          %v5648 = vadd.f32 %v5476, %v5542
          %v5649 = vadd.f32 %v5476, %v5546
          %v5650 = vadd.f32 %v5476, %v5550
          %v5651 = vadd.f32 %v5481, %v5538
          %v5652 = vadd.f32 %v5481, %v5542
          %v5653 = vadd.f32 %v5481, %v5546
          %v5654 = vadd.f32 %v5481, %v5550
          %v5655 = vadd.f32 %v5486, %v5538
          %v5656 = vadd.f32 %v5486, %v5542
          %v5657 = vadd.f32 %v5486, %v5546
          %v5658 = vadd.f32 %v5486, %v5550
          %v5659 = vadd.f32 %v5491, %v5538
          %v5660 = vadd.f32 %v5491, %v5542
          %v5661 = vadd.f32 %v5491, %v5546
          %v5662 = vadd.f32 %v5491, %v5550
          %v5663 = vadd.f32 %v5496, %v5538
          %v5664 = vadd.f32 %v5496, %v5542
          %v5665 = vadd.f32 %v5496, %v5546
          %v5666 = vadd.f32 %v5496, %v5550
          %v5667 = vadd.f32 %v5501, %v5538
          %v5668 = vadd.f32 %v5501, %v5542
          %v5669 = vadd.f32 %v5501, %v5546
          %v5670 = vadd.f32 %v5501, %v5550
          %v5671 = vadd.f32 %v5506, %v5538
          %v5672 = vadd.f32 %v5506, %v5542
          %v5673 = vadd.f32 %v5506, %v5546
          %v5674 = vadd.f32 %v5506, %v5550
          %v5675 = vadd.f32 %v5511, %v5538
          %v5676 = vadd.f32 %v5511, %v5542
          %v5677 = vadd.f32 %v5511, %v5546
          %v5678 = vadd.f32 %v5511, %v5550
          %v5679 = vsub.f32 %v5551, %v5055
          %v5680 = vsub.f32 %v5552, %v5056
          %v5681 = vsub.f32 %v5553, %v5057
          %v5682 = vsub.f32 %v5554, %v5058
          %v5683 = vsub.f32 %v5555, %v5059
          %v5684 = vsub.f32 %v5556, %v5060
          %v5685 = vsub.f32 %v5557, %v5061
          %v5686 = vsub.f32 %v5558, %v5062
          %v5687 = vsub.f32 %v5559, %v5063
          %v5688 = vsub.f32 %v5560, %v5064
          %v5689 = vsub.f32 %v5561, %v5065
          %v5690 = vsub.f32 %v5562, %v5066
          %v5691 = vsub.f32 %v5563, %v5067
          %v5692 = vsub.f32 %v5564, %v5068
          %v5693 = vsub.f32 %v5565, %v5069
          %v5694 = vsub.f32 %v5566, %v5070
          %v5695 = vsub.f32 %v5567, %v5071
          %v5696 = vsub.f32 %v5568, %v5072
          %v5697 = vsub.f32 %v5569, %v5073
          %v5698 = vsub.f32 %v5570, %v5074
          %v5699 = vsub.f32 %v5571, %v5075
          %v5700 = vsub.f32 %v5572, %v5076
          %v5701 = vsub.f32 %v5573, %v5077
          %v5702 = vsub.f32 %v5574, %v5078
          %v5703 = vsub.f32 %v5575, %v5079
          %v5704 = vsub.f32 %v5576, %v5080
          %v5705 = vsub.f32 %v5577, %v5081
          %v5706 = vsub.f32 %v5578, %v5082
          %v5707 = vsub.f32 %v5579, %v5083
          %v5708 = vsub.f32 %v5580, %v5084
          %v5709 = vsub.f32 %v5581, %v5085
          %v5710 = vsub.f32 %v5582, %v5086
          %v5711 = vsub.f32 %v5583, %v5087
          %v5712 = vsub.f32 %v5584, %v5088
          %v5713 = vsub.f32 %v5585, %v5089
          %v5714 = vsub.f32 %v5586, %v5090
          %v5715 = vsub.f32 %v5587, %v5091
          %v5716 = vsub.f32 %v5588, %v5092
          %v5717 = vsub.f32 %v5589, %v5093
          %v5718 = vsub.f32 %v5590, %v5094
          %v5719 = vsub.f32 %v5591, %v5095
          %v5720 = vsub.f32 %v5592, %v5096
          %v5721 = vsub.f32 %v5593, %v5097
          %v5722 = vsub.f32 %v5594, %v5098
          %v5723 = vsub.f32 %v5595, %v5099
          %v5724 = vsub.f32 %v5596, %v5100
          %v5725 = vsub.f32 %v5597, %v5101
          %v5726 = vsub.f32 %v5598, %v5102
          %v5727 = vsub.f32 %v5599, %v5103
          %v5728 = vsub.f32 %v5600, %v5104
          %v5729 = vsub.f32 %v5601, %v5105
          %v5730 = vsub.f32 %v5602, %v5106
          %v5731 = vsub.f32 %v5603, %v5107
          %v5732 = vsub.f32 %v5604, %v5108
          %v5733 = vsub.f32 %v5605, %v5109
          %v5734 = vsub.f32 %v5606, %v5110
          %v5735 = vsub.f32 %v5607, %v5111
          %v5736 = vsub.f32 %v5608, %v5112
          %v5737 = vsub.f32 %v5609, %v5113
          %v5738 = vsub.f32 %v5610, %v5114
          %v5739 = vsub.f32 %v5611, %v5115
          %v5740 = vsub.f32 %v5612, %v5116
          %v5741 = vsub.f32 %v5613, %v5117
          %v5742 = vsub.f32 %v5614, %v5118
          %v5743 = vsub.f32 %v5615, %v5119
          %v5744 = vsub.f32 %v5616, %v5120
          %v5745 = vsub.f32 %v5617, %v5121
          %v5746 = vsub.f32 %v5618, %v5122
          %v5747 = vsub.f32 %v5619, %v5123
          %v5748 = vsub.f32 %v5620, %v5124
          %v5749 = vsub.f32 %v5621, %v5125
          %v5750 = vsub.f32 %v5622, %v5126
          %v5751 = vsub.f32 %v5623, %v5127
          %v5752 = vsub.f32 %v5624, %v5128
          %v5753 = vsub.f32 %v5625, %v5129
          %v5754 = vsub.f32 %v5626, %v5130
          %v5755 = vsub.f32 %v5627, %v5131
          %v5756 = vsub.f32 %v5628, %v5132
          %v5757 = vsub.f32 %v5629, %v5133
          %v5758 = vsub.f32 %v5630, %v5134
          %v5759 = vsub.f32 %v5631, %v5135
          %v5760 = vsub.f32 %v5632, %v5136
          %v5761 = vsub.f32 %v5633, %v5137
          %v5762 = vsub.f32 %v5634, %v5138
          %v5763 = vsub.f32 %v5635, %v5139
          %v5764 = vsub.f32 %v5636, %v5140
          %v5765 = vsub.f32 %v5637, %v5141
          %v5766 = vsub.f32 %v5638, %v5142
          %v5767 = vsub.f32 %v5639, %v5143
          %v5768 = vsub.f32 %v5640, %v5144
          %v5769 = vsub.f32 %v5641, %v5145
          %v5770 = vsub.f32 %v5642, %v5146
          %v5771 = vsub.f32 %v5643, %v5147
          %v5772 = vsub.f32 %v5644, %v5148
          %v5773 = vsub.f32 %v5645, %v5149
          %v5774 = vsub.f32 %v5646, %v5150
          %v5775 = vsub.f32 %v5647, %v5151
          %v5776 = vsub.f32 %v5648, %v5152
          %v5777 = vsub.f32 %v5649, %v5153
          %v5778 = vsub.f32 %v5650, %v5154
          %v5779 = vsub.f32 %v5651, %v5155
          %v5780 = vsub.f32 %v5652, %v5156
          %v5781 = vsub.f32 %v5653, %v5157
          %v5782 = vsub.f32 %v5654, %v5158
          %v5783 = vsub.f32 %v5655, %v5159
          %v5784 = vsub.f32 %v5656, %v5160
          %v5785 = vsub.f32 %v5657, %v5161
          %v5786 = vsub.f32 %v5658, %v5162
          %v5787 = vsub.f32 %v5659, %v5163
          %v5788 = vsub.f32 %v5660, %v5164
          %v5789 = vsub.f32 %v5661, %v5165
          %v5790 = vsub.f32 %v5662, %v5166
          %v5791 = vsub.f32 %v5663, %v5167
          %v5792 = vsub.f32 %v5664, %v5168
          %v5793 = vsub.f32 %v5665, %v5169
          %v5794 = vsub.f32 %v5666, %v5170
          %v5795 = vsub.f32 %v5667, %v5171
          %v5796 = vsub.f32 %v5668, %v5172
          %v5797 = vsub.f32 %v5669, %v5173
          %v5798 = vsub.f32 %v5670, %v5174
          %v5799 = vsub.f32 %v5671, %v5175
          %v5800 = vsub.f32 %v5672, %v5176
          %v5801 = vsub.f32 %v5673, %v5177
          %v5802 = vsub.f32 %v5674, %v5178
          %v5803 = vsub.f32 %v5675, %v5179
          %v5804 = vsub.f32 %v5676, %v5180
          %v5805 = vsub.f32 %v5677, %v5181
          %v5806 = vsub.f32 %v5678, %v5182
          %v5807 = vmax.f32 %v5679, 1e-12
          %v5808 = vmax.f32 %v5680, 1e-12
          %v5809 = vmax.f32 %v5681, 1e-12
          %v5810 = vmax.f32 %v5682, 1e-12
          %v5811 = vmax.f32 %v5683, 1e-12
          %v5812 = vmax.f32 %v5684, 1e-12
          %v5813 = vmax.f32 %v5685, 1e-12
          %v5814 = vmax.f32 %v5686, 1e-12
          %v5815 = vmax.f32 %v5687, 1e-12
          %v5816 = vmax.f32 %v5688, 1e-12
          %v5817 = vmax.f32 %v5689, 1e-12
          %v5818 = vmax.f32 %v5690, 1e-12
          %v5819 = vmax.f32 %v5691, 1e-12
          %v5820 = vmax.f32 %v5692, 1e-12
          %v5821 = vmax.f32 %v5693, 1e-12
          %v5822 = vmax.f32 %v5694, 1e-12
          %v5823 = vmax.f32 %v5695, 1e-12
          %v5824 = vmax.f32 %v5696, 1e-12
          %v5825 = vmax.f32 %v5697, 1e-12
          %v5826 = vmax.f32 %v5698, 1e-12
          %v5827 = vmax.f32 %v5699, 1e-12
          %v5828 = vmax.f32 %v5700, 1e-12
          %v5829 = vmax.f32 %v5701, 1e-12
          %v5830 = vmax.f32 %v5702, 1e-12
          %v5831 = vmax.f32 %v5703, 1e-12
          %v5832 = vmax.f32 %v5704, 1e-12
          %v5833 = vmax.f32 %v5705, 1e-12
          %v5834 = vmax.f32 %v5706, 1e-12
          %v5835 = vmax.f32 %v5707, 1e-12
          %v5836 = vmax.f32 %v5708, 1e-12
          %v5837 = vmax.f32 %v5709, 1e-12
          %v5838 = vmax.f32 %v5710, 1e-12
          %v5839 = vmax.f32 %v5711, 1e-12
          %v5840 = vmax.f32 %v5712, 1e-12
          %v5841 = vmax.f32 %v5713, 1e-12
          %v5842 = vmax.f32 %v5714, 1e-12
          %v5843 = vmax.f32 %v5715, 1e-12
          %v5844 = vmax.f32 %v5716, 1e-12
          %v5845 = vmax.f32 %v5717, 1e-12
          %v5846 = vmax.f32 %v5718, 1e-12
          %v5847 = vmax.f32 %v5719, 1e-12
          %v5848 = vmax.f32 %v5720, 1e-12
          %v5849 = vmax.f32 %v5721, 1e-12
          %v5850 = vmax.f32 %v5722, 1e-12
          %v5851 = vmax.f32 %v5723, 1e-12
          %v5852 = vmax.f32 %v5724, 1e-12
          %v5853 = vmax.f32 %v5725, 1e-12
          %v5854 = vmax.f32 %v5726, 1e-12
          %v5855 = vmax.f32 %v5727, 1e-12
          %v5856 = vmax.f32 %v5728, 1e-12
          %v5857 = vmax.f32 %v5729, 1e-12
          %v5858 = vmax.f32 %v5730, 1e-12
          %v5859 = vmax.f32 %v5731, 1e-12
          %v5860 = vmax.f32 %v5732, 1e-12
          %v5861 = vmax.f32 %v5733, 1e-12
          %v5862 = vmax.f32 %v5734, 1e-12
          %v5863 = vmax.f32 %v5735, 1e-12
          %v5864 = vmax.f32 %v5736, 1e-12
          %v5865 = vmax.f32 %v5737, 1e-12
          %v5866 = vmax.f32 %v5738, 1e-12
          %v5867 = vmax.f32 %v5739, 1e-12
          %v5868 = vmax.f32 %v5740, 1e-12
          %v5869 = vmax.f32 %v5741, 1e-12
          %v5870 = vmax.f32 %v5742, 1e-12
          %v5871 = vmax.f32 %v5743, 1e-12
          %v5872 = vmax.f32 %v5744, 1e-12
          %v5873 = vmax.f32 %v5745, 1e-12
          %v5874 = vmax.f32 %v5746, 1e-12
          %v5875 = vmax.f32 %v5747, 1e-12
          %v5876 = vmax.f32 %v5748, 1e-12
          %v5877 = vmax.f32 %v5749, 1e-12
          %v5878 = vmax.f32 %v5750, 1e-12
          %v5879 = vmax.f32 %v5751, 1e-12
          %v5880 = vmax.f32 %v5752, 1e-12
          %v5881 = vmax.f32 %v5753, 1e-12
          %v5882 = vmax.f32 %v5754, 1e-12
          %v5883 = vmax.f32 %v5755, 1e-12
          %v5884 = vmax.f32 %v5756, 1e-12
          %v5885 = vmax.f32 %v5757, 1e-12
          %v5886 = vmax.f32 %v5758, 1e-12
          %v5887 = vmax.f32 %v5759, 1e-12
          %v5888 = vmax.f32 %v5760, 1e-12
          %v5889 = vmax.f32 %v5761, 1e-12
          %v5890 = vmax.f32 %v5762, 1e-12
          %v5891 = vmax.f32 %v5763, 1e-12
          %v5892 = vmax.f32 %v5764, 1e-12
          %v5893 = vmax.f32 %v5765, 1e-12
          %v5894 = vmax.f32 %v5766, 1e-12
          %v5895 = vmax.f32 %v5767, 1e-12
          %v5896 = vmax.f32 %v5768, 1e-12
          %v5897 = vmax.f32 %v5769, 1e-12
          %v5898 = vmax.f32 %v5770, 1e-12
          %v5899 = vmax.f32 %v5771, 1e-12
          %v5900 = vmax.f32 %v5772, 1e-12
          %v5901 = vmax.f32 %v5773, 1e-12
          %v5902 = vmax.f32 %v5774, 1e-12
          %v5903 = vmax.f32 %v5775, 1e-12
          %v5904 = vmax.f32 %v5776, 1e-12
          %v5905 = vmax.f32 %v5777, 1e-12
          %v5906 = vmax.f32 %v5778, 1e-12
          %v5907 = vmax.f32 %v5779, 1e-12
          %v5908 = vmax.f32 %v5780, 1e-12
          %v5909 = vmax.f32 %v5781, 1e-12
          %v5910 = vmax.f32 %v5782, 1e-12
          %v5911 = vmax.f32 %v5783, 1e-12
          %v5912 = vmax.f32 %v5784, 1e-12
          %v5913 = vmax.f32 %v5785, 1e-12
          %v5914 = vmax.f32 %v5786, 1e-12
          %v5915 = vmax.f32 %v5787, 1e-12
          %v5916 = vmax.f32 %v5788, 1e-12
          %v5917 = vmax.f32 %v5789, 1e-12
          %v5918 = vmax.f32 %v5790, 1e-12
          %v5919 = vmax.f32 %v5791, 1e-12
          %v5920 = vmax.f32 %v5792, 1e-12
          %v5921 = vmax.f32 %v5793, 1e-12
          %v5922 = vmax.f32 %v5794, 1e-12
          %v5923 = vmax.f32 %v5795, 1e-12
          %v5924 = vmax.f32 %v5796, 1e-12
          %v5925 = vmax.f32 %v5797, 1e-12
          %v5926 = vmax.f32 %v5798, 1e-12
          %v5927 = vmax.f32 %v5799, 1e-12
          %v5928 = vmax.f32 %v5800, 1e-12
          %v5929 = vmax.f32 %v5801, 1e-12
          %v5930 = vmax.f32 %v5802, 1e-12
          %v5931 = vmax.f32 %v5803, 1e-12
          %v5932 = vmax.f32 %v5804, 1e-12
          %v5933 = vmax.f32 %v5805, 1e-12
          %v5934 = vmax.f32 %v5806, 1e-12
          %v5935 = vrcp.pop %v5807
          %v5936 = vrcp.pop %v5808
          %v5937 = vrcp.pop %v5809
          %v5938 = vrcp.pop %v5810
          %v5939 = vrcp.pop %v5811
          %v5940 = vrcp.pop %v5812
          %v5941 = vrcp.pop %v5813
          %v5942 = vrcp.pop %v5814
          %v5943 = vrcp.pop %v5815
          %v5944 = vrcp.pop %v5816
          %v5945 = vrcp.pop %v5817
          %v5946 = vrcp.pop %v5818
          %v5947 = vrcp.pop %v5819
          %v5948 = vrcp.pop %v5820
          %v5949 = vrcp.pop %v5821
          %v5950 = vrcp.pop %v5822
          %v5951 = vrcp.pop %v5823
          %v5952 = vrcp.pop %v5824
          %v5953 = vrcp.pop %v5825
          %v5954 = vrcp.pop %v5826
          %v5955 = vrcp.pop %v5827
          %v5956 = vrcp.pop %v5828
          %v5957 = vrcp.pop %v5829
          %v5958 = vrcp.pop %v5830
          %v5959 = vrcp.pop %v5831
          %v5960 = vrcp.pop %v5832
          %v5961 = vrcp.pop %v5833
          %v5962 = vrcp.pop %v5834
          %v5963 = vrcp.pop %v5835
          %v5964 = vrcp.pop %v5836
          %v5965 = vrcp.pop %v5837
          %v5966 = vrcp.pop %v5838
          %v5967 = vrcp.pop %v5839
          %v5968 = vrcp.pop %v5840
          %v5969 = vrcp.pop %v5841
          %v5970 = vrcp.pop %v5842
          %v5971 = vrcp.pop %v5843
          %v5972 = vrcp.pop %v5844
          %v5973 = vrcp.pop %v5845
          %v5974 = vrcp.pop %v5846
          %v5975 = vrcp.pop %v5847
          %v5976 = vrcp.pop %v5848
          %v5977 = vrcp.pop %v5849
          %v5978 = vrcp.pop %v5850
          %v5979 = vrcp.pop %v5851
          %v5980 = vrcp.pop %v5852
          %v5981 = vrcp.pop %v5853
          %v5982 = vrcp.pop %v5854
          %v5983 = vrcp.pop %v5855
          %v5984 = vrcp.pop %v5856
          %v5985 = vrcp.pop %v5857
          %v5986 = vrcp.pop %v5858
          %v5987 = vrcp.pop %v5859
          %v5988 = vrcp.pop %v5860
          %v5989 = vrcp.pop %v5861
          %v5990 = vrcp.pop %v5862
          %v5991 = vrcp.pop %v5863
          %v5992 = vrcp.pop %v5864
          %v5993 = vrcp.pop %v5865
          %v5994 = vrcp.pop %v5866
          %v5995 = vrcp.pop %v5867
          %v5996 = vrcp.pop %v5868
          %v5997 = vrcp.pop %v5869
          %v5998 = vrcp.pop %v5870
          %v5999 = vrcp.pop %v5871
          %v6000 = vrcp.pop %v5872
          %v6001 = vrcp.pop %v5873
          %v6002 = vrcp.pop %v5874
          %v6003 = vrcp.pop %v5875
          %v6004 = vrcp.pop %v5876
          %v6005 = vrcp.pop %v5877
          %v6006 = vrcp.pop %v5878
          %v6007 = vrcp.pop %v5879
          %v6008 = vrcp.pop %v5880
          %v6009 = vrcp.pop %v5881
          %v6010 = vrcp.pop %v5882
          %v6011 = vrcp.pop %v5883
          %v6012 = vrcp.pop %v5884
          %v6013 = vrcp.pop %v5885
          %v6014 = vrcp.pop %v5886
          %v6015 = vrcp.pop %v5887
          %v6016 = vrcp.pop %v5888
          %v6017 = vrcp.pop %v5889
          %v6018 = vrcp.pop %v5890
          %v6019 = vrcp.pop %v5891
          %v6020 = vrcp.pop %v5892
          %v6021 = vrcp.pop %v5893
          %v6022 = vrcp.pop %v5894
          %v6023 = vrcp.pop %v5895
          %v6024 = vrcp.pop %v5896
          %v6025 = vrcp.pop %v5897
          %v6026 = vrcp.pop %v5898
          %v6027 = vrcp.pop %v5899
          %v6028 = vrcp.pop %v5900
          %v6029 = vrcp.pop %v5901
          %v6030 = vrcp.pop %v5902
          %v6031 = vrcp.pop %v5903
          %v6032 = vrcp.pop %v5904
          %v6033 = vrcp.pop %v5905
          %v6034 = vrcp.pop %v5906
          %v6035 = vrcp.pop %v5907
          %v6036 = vrcp.pop %v5908
          %v6037 = vrcp.pop %v5909
          %v6038 = vrcp.pop %v5910
          %v6039 = vrcp.pop %v5911
          %v6040 = vrcp.pop %v5912
          %v6041 = vrcp.pop %v5913
          %v6042 = vrcp.pop %v5914
          %v6043 = vrcp.pop %v5915
          %v6044 = vrcp.pop %v5916
          %v6045 = vrcp.pop %v5917
          %v6046 = vrcp.pop %v5918
          %v6047 = vrcp.pop %v5919
          %v6048 = vrcp.pop %v5920
          %v6049 = vrcp.pop %v5921
          %v6050 = vrcp.pop %v5922
          %v6051 = vrcp.pop %v5923
          %v6052 = vrcp.pop %v5924
          %v6053 = vrcp.pop %v5925
          %v6054 = vrcp.pop %v5926
          %v6055 = vrcp.pop %v5927
          %v6056 = vrcp.pop %v5928
          %v6057 = vrcp.pop %v5929
          %v6058 = vrcp.pop %v5930
          %v6059 = vrcp.pop %v5931
          %v6060 = vrcp.pop %v5932
          %v6061 = vrcp.pop %v5933
          %v6062 = vrcp.pop %v5934
          %v6063 = vmul.f32 %v5055, %v5935
          %v6064 = vmul.f32 %v5056, %v5936
          %v6065 = vmul.f32 %v5057, %v5937
          %v6066 = vmul.f32 %v5058, %v5938
          %v6067 = vmul.f32 %v5059, %v5939
          %v6068 = vmul.f32 %v5060, %v5940
          %v6069 = vmul.f32 %v5061, %v5941
          %v6070 = vmul.f32 %v5062, %v5942
          %v6071 = vmul.f32 %v5063, %v5943
          %v6072 = vmul.f32 %v5064, %v5944
          %v6073 = vmul.f32 %v5065, %v5945
          %v6074 = vmul.f32 %v5066, %v5946
          %v6075 = vmul.f32 %v5067, %v5947
          %v6076 = vmul.f32 %v5068, %v5948
          %v6077 = vmul.f32 %v5069, %v5949
          %v6078 = vmul.f32 %v5070, %v5950
          %v6079 = vmul.f32 %v5071, %v5951
          %v6080 = vmul.f32 %v5072, %v5952
          %v6081 = vmul.f32 %v5073, %v5953
          %v6082 = vmul.f32 %v5074, %v5954
          %v6083 = vmul.f32 %v5075, %v5955
          %v6084 = vmul.f32 %v5076, %v5956
          %v6085 = vmul.f32 %v5077, %v5957
          %v6086 = vmul.f32 %v5078, %v5958
          %v6087 = vmul.f32 %v5079, %v5959
          %v6088 = vmul.f32 %v5080, %v5960
          %v6089 = vmul.f32 %v5081, %v5961
          %v6090 = vmul.f32 %v5082, %v5962
          %v6091 = vmul.f32 %v5083, %v5963
          %v6092 = vmul.f32 %v5084, %v5964
          %v6093 = vmul.f32 %v5085, %v5965
          %v6094 = vmul.f32 %v5086, %v5966
          %v6095 = vmul.f32 %v5087, %v5967
          %v6096 = vmul.f32 %v5088, %v5968
          %v6097 = vmul.f32 %v5089, %v5969
          %v6098 = vmul.f32 %v5090, %v5970
          %v6099 = vmul.f32 %v5091, %v5971
          %v6100 = vmul.f32 %v5092, %v5972
          %v6101 = vmul.f32 %v5093, %v5973
          %v6102 = vmul.f32 %v5094, %v5974
          %v6103 = vmul.f32 %v5095, %v5975
          %v6104 = vmul.f32 %v5096, %v5976
          %v6105 = vmul.f32 %v5097, %v5977
          %v6106 = vmul.f32 %v5098, %v5978
          %v6107 = vmul.f32 %v5099, %v5979
          %v6108 = vmul.f32 %v5100, %v5980
          %v6109 = vmul.f32 %v5101, %v5981
          %v6110 = vmul.f32 %v5102, %v5982
          %v6111 = vmul.f32 %v5103, %v5983
          %v6112 = vmul.f32 %v5104, %v5984
          %v6113 = vmul.f32 %v5105, %v5985
          %v6114 = vmul.f32 %v5106, %v5986
          %v6115 = vmul.f32 %v5107, %v5987
          %v6116 = vmul.f32 %v5108, %v5988
          %v6117 = vmul.f32 %v5109, %v5989
          %v6118 = vmul.f32 %v5110, %v5990
          %v6119 = vmul.f32 %v5111, %v5991
          %v6120 = vmul.f32 %v5112, %v5992
          %v6121 = vmul.f32 %v5113, %v5993
          %v6122 = vmul.f32 %v5114, %v5994
          %v6123 = vmul.f32 %v5115, %v5995
          %v6124 = vmul.f32 %v5116, %v5996
          %v6125 = vmul.f32 %v5117, %v5997
          %v6126 = vmul.f32 %v5118, %v5998
          %v6127 = vmul.f32 %v5119, %v5999
          %v6128 = vmul.f32 %v5120, %v6000
          %v6129 = vmul.f32 %v5121, %v6001
          %v6130 = vmul.f32 %v5122, %v6002
          %v6131 = vmul.f32 %v5123, %v6003
          %v6132 = vmul.f32 %v5124, %v6004
          %v6133 = vmul.f32 %v5125, %v6005
          %v6134 = vmul.f32 %v5126, %v6006
          %v6135 = vmul.f32 %v5127, %v6007
          %v6136 = vmul.f32 %v5128, %v6008
          %v6137 = vmul.f32 %v5129, %v6009
          %v6138 = vmul.f32 %v5130, %v6010
          %v6139 = vmul.f32 %v5131, %v6011
          %v6140 = vmul.f32 %v5132, %v6012
          %v6141 = vmul.f32 %v5133, %v6013
          %v6142 = vmul.f32 %v5134, %v6014
          %v6143 = vmul.f32 %v5135, %v6015
          %v6144 = vmul.f32 %v5136, %v6016
          %v6145 = vmul.f32 %v5137, %v6017
          %v6146 = vmul.f32 %v5138, %v6018
          %v6147 = vmul.f32 %v5139, %v6019
          %v6148 = vmul.f32 %v5140, %v6020
          %v6149 = vmul.f32 %v5141, %v6021
          %v6150 = vmul.f32 %v5142, %v6022
          %v6151 = vmul.f32 %v5143, %v6023
          %v6152 = vmul.f32 %v5144, %v6024
          %v6153 = vmul.f32 %v5145, %v6025
          %v6154 = vmul.f32 %v5146, %v6026
          %v6155 = vmul.f32 %v5147, %v6027
          %v6156 = vmul.f32 %v5148, %v6028
          %v6157 = vmul.f32 %v5149, %v6029
          %v6158 = vmul.f32 %v5150, %v6030
          %v6159 = vmul.f32 %v5151, %v6031
          %v6160 = vmul.f32 %v5152, %v6032
          %v6161 = vmul.f32 %v5153, %v6033
          %v6162 = vmul.f32 %v5154, %v6034
          %v6163 = vmul.f32 %v5155, %v6035
          %v6164 = vmul.f32 %v5156, %v6036
          %v6165 = vmul.f32 %v5157, %v6037
          %v6166 = vmul.f32 %v5158, %v6038
          %v6167 = vmul.f32 %v5159, %v6039
          %v6168 = vmul.f32 %v5160, %v6040
          %v6169 = vmul.f32 %v5161, %v6041
          %v6170 = vmul.f32 %v5162, %v6042
          %v6171 = vmul.f32 %v5163, %v6043
          %v6172 = vmul.f32 %v5164, %v6044
          %v6173 = vmul.f32 %v5165, %v6045
          %v6174 = vmul.f32 %v5166, %v6046
          %v6175 = vmul.f32 %v5167, %v6047
          %v6176 = vmul.f32 %v5168, %v6048
          %v6177 = vmul.f32 %v5169, %v6049
          %v6178 = vmul.f32 %v5170, %v6050
          %v6179 = vmul.f32 %v5171, %v6051
          %v6180 = vmul.f32 %v5172, %v6052
          %v6181 = vmul.f32 %v5173, %v6053
          %v6182 = vmul.f32 %v5174, %v6054
          %v6183 = vmul.f32 %v5175, %v6055
          %v6184 = vmul.f32 %v5176, %v6056
          %v6185 = vmul.f32 %v5177, %v6057
          %v6186 = vmul.f32 %v5178, %v6058
          %v6187 = vmul.f32 %v5179, %v6059
          %v6188 = vmul.f32 %v5180, %v6060
          %v6189 = vmul.f32 %v5181, %v6061
          %v6190 = vmul.f32 %v5182, %v6062
          %v6191 = vsel %vm2941, %v6063, 0.0
          %v6192 = vsel %vm2942, %v6064, 0.0
          %v6193 = vsel %vm2943, %v6065, 0.0
          %v6194 = vsel %vm2944, %v6066, 0.0
          %v6195 = vsel %vm2945, %v6067, 0.0
          %v6196 = vsel %vm2946, %v6068, 0.0
          %v6197 = vsel %vm2947, %v6069, 0.0
          %v6198 = vsel %vm2948, %v6070, 0.0
          %v6199 = vsel %vm2949, %v6071, 0.0
          %v6200 = vsel %vm2950, %v6072, 0.0
          %v6201 = vsel %vm2951, %v6073, 0.0
          %v6202 = vsel %vm2952, %v6074, 0.0
          %v6203 = vsel %vm2953, %v6075, 0.0
          %v6204 = vsel %vm2954, %v6076, 0.0
          %v6205 = vsel %vm2955, %v6077, 0.0
          %v6206 = vsel %vm2956, %v6078, 0.0
          %v6207 = vsel %vm2957, %v6079, 0.0
          %v6208 = vsel %vm2958, %v6080, 0.0
          %v6209 = vsel %vm2959, %v6081, 0.0
          %v6210 = vsel %vm2960, %v6082, 0.0
          %v6211 = vsel %vm2961, %v6083, 0.0
          %v6212 = vsel %vm2962, %v6084, 0.0
          %v6213 = vsel %vm2963, %v6085, 0.0
          %v6214 = vsel %vm2964, %v6086, 0.0
          %v6215 = vsel %vm2965, %v6087, 0.0
          %v6216 = vsel %vm2966, %v6088, 0.0
          %v6217 = vsel %vm2967, %v6089, 0.0
          %v6218 = vsel %vm2968, %v6090, 0.0
          %v6219 = vsel %vm2969, %v6091, 0.0
          %v6220 = vsel %vm2970, %v6092, 0.0
          %v6221 = vsel %vm2971, %v6093, 0.0
          %v6222 = vsel %vm2972, %v6094, 0.0
          %v6223 = vsel %vm2973, %v6095, 0.0
          %v6224 = vsel %vm2974, %v6096, 0.0
          %v6225 = vsel %vm2975, %v6097, 0.0
          %v6226 = vsel %vm2976, %v6098, 0.0
          %v6227 = vsel %vm2977, %v6099, 0.0
          %v6228 = vsel %vm2978, %v6100, 0.0
          %v6229 = vsel %vm2979, %v6101, 0.0
          %v6230 = vsel %vm2980, %v6102, 0.0
          %v6231 = vsel %vm2981, %v6103, 0.0
          %v6232 = vsel %vm2982, %v6104, 0.0
          %v6233 = vsel %vm2983, %v6105, 0.0
          %v6234 = vsel %vm2984, %v6106, 0.0
          %v6235 = vsel %vm2985, %v6107, 0.0
          %v6236 = vsel %vm2986, %v6108, 0.0
          %v6237 = vsel %vm2987, %v6109, 0.0
          %v6238 = vsel %vm2988, %v6110, 0.0
          %v6239 = vsel %vm2989, %v6111, 0.0
          %v6240 = vsel %vm2990, %v6112, 0.0
          %v6241 = vsel %vm2991, %v6113, 0.0
          %v6242 = vsel %vm2992, %v6114, 0.0
          %v6243 = vsel %vm2993, %v6115, 0.0
          %v6244 = vsel %vm2994, %v6116, 0.0
          %v6245 = vsel %vm2995, %v6117, 0.0
          %v6246 = vsel %vm2996, %v6118, 0.0
          %v6247 = vsel %vm2997, %v6119, 0.0
          %v6248 = vsel %vm2998, %v6120, 0.0
          %v6249 = vsel %vm2999, %v6121, 0.0
          %v6250 = vsel %vm3000, %v6122, 0.0
          %v6251 = vsel %vm3001, %v6123, 0.0
          %v6252 = vsel %vm3002, %v6124, 0.0
          %v6253 = vsel %vm3003, %v6125, 0.0
          %v6254 = vsel %vm3004, %v6126, 0.0
          %v6255 = vsel %vm3005, %v6127, 0.0
          %v6256 = vsel %vm3006, %v6128, 0.0
          %v6257 = vsel %vm3007, %v6129, 0.0
          %v6258 = vsel %vm3008, %v6130, 0.0
          %v6259 = vsel %vm3009, %v6131, 0.0
          %v6260 = vsel %vm3010, %v6132, 0.0
          %v6261 = vsel %vm3011, %v6133, 0.0
          %v6262 = vsel %vm3012, %v6134, 0.0
          %v6263 = vsel %vm3013, %v6135, 0.0
          %v6264 = vsel %vm3014, %v6136, 0.0
          %v6265 = vsel %vm3015, %v6137, 0.0
          %v6266 = vsel %vm3016, %v6138, 0.0
          %v6267 = vsel %vm3017, %v6139, 0.0
          %v6268 = vsel %vm3018, %v6140, 0.0
          %v6269 = vsel %vm3019, %v6141, 0.0
          %v6270 = vsel %vm3020, %v6142, 0.0
          %v6271 = vsel %vm3021, %v6143, 0.0
          %v6272 = vsel %vm3022, %v6144, 0.0
          %v6273 = vsel %vm3023, %v6145, 0.0
          %v6274 = vsel %vm3024, %v6146, 0.0
          %v6275 = vsel %vm3025, %v6147, 0.0
          %v6276 = vsel %vm3026, %v6148, 0.0
          %v6277 = vsel %vm3027, %v6149, 0.0
          %v6278 = vsel %vm3028, %v6150, 0.0
          %v6279 = vsel %vm3029, %v6151, 0.0
          %v6280 = vsel %vm3030, %v6152, 0.0
          %v6281 = vsel %vm3031, %v6153, 0.0
          %v6282 = vsel %vm3032, %v6154, 0.0
          %v6283 = vsel %vm3033, %v6155, 0.0
          %v6284 = vsel %vm3034, %v6156, 0.0
          %v6285 = vsel %vm3035, %v6157, 0.0
          %v6286 = vsel %vm3036, %v6158, 0.0
          %v6287 = vsel %vm3037, %v6159, 0.0
          %v6288 = vsel %vm3038, %v6160, 0.0
          %v6289 = vsel %vm3039, %v6161, 0.0
          %v6290 = vsel %vm3040, %v6162, 0.0
          %v6291 = vsel %vm3041, %v6163, 0.0
          %v6292 = vsel %vm3042, %v6164, 0.0
          %v6293 = vsel %vm3043, %v6165, 0.0
          %v6294 = vsel %vm3044, %v6166, 0.0
          %v6295 = vsel %vm3045, %v6167, 0.0
          %v6296 = vsel %vm3046, %v6168, 0.0
          %v6297 = vsel %vm3047, %v6169, 0.0
          %v6298 = vsel %vm3048, %v6170, 0.0
          %v6299 = vsel %vm3049, %v6171, 0.0
          %v6300 = vsel %vm3050, %v6172, 0.0
          %v6301 = vsel %vm3051, %v6173, 0.0
          %v6302 = vsel %vm3052, %v6174, 0.0
          %v6303 = vsel %vm3053, %v6175, 0.0
          %v6304 = vsel %vm3054, %v6176, 0.0
          %v6305 = vsel %vm3055, %v6177, 0.0
          %v6306 = vsel %vm3056, %v6178, 0.0
          %v6307 = vsel %vm3057, %v6179, 0.0
          %v6308 = vsel %vm3058, %v6180, 0.0
          %v6309 = vsel %vm3059, %v6181, 0.0
          %v6310 = vsel %vm3060, %v6182, 0.0
          %v6311 = vsel %vm3061, %v6183, 0.0
          %v6312 = vsel %vm3062, %v6184, 0.0
          %v6313 = vsel %vm3063, %v6185, 0.0
          %v6314 = vsel %vm3064, %v6186, 0.0
          %v6315 = vsel %vm3065, %v6187, 0.0
          %v6316 = vsel %vm3066, %v6188, 0.0
          %v6317 = vsel %vm3067, %v6189, 0.0
          %v6318 = vsel %vm3068, %v6190, 0.0
          %s6319 = sld [smem:[#allocation2]]
          %v6320 = vadd.f32 %v6191, %v6192
          %v6321 = vadd.f32 %v6320, %v6193
          %v6322 = vadd.f32 %v6321, %v6194
          %v6323 = vadd.f32 %v6322, %v6195
          %v6324 = vadd.f32 %v6323, %v6196
          %v6325 = vadd.f32 %v6324, %v6197
          %v6326 = vadd.f32 %v6325, %v6198
          %v6327 = vadd.f32 %v6326, %v6199
          %v6328 = vadd.f32 %v6327, %v6200
          %v6329 = vadd.f32 %v6328, %v6201
          %v6330 = vadd.f32 %v6329, %v6202
          %v6331 = vadd.f32 %v6330, %v6203
          %v6332 = vadd.f32 %v6331, %v6204
          %v6333 = vadd.f32 %v6332, %v6205
          %v6334 = vadd.f32 %v6333, %v6206
          %v6335 = vadd.f32 %v6334, %v6207
          %v6336 = vadd.f32 %v6335, %v6208
          %v6337 = vadd.f32 %v6336, %v6209
          %v6338 = vadd.f32 %v6337, %v6210
          %v6339 = vadd.f32 %v6338, %v6211
          %v6340 = vadd.f32 %v6339, %v6212
          %v6341 = vadd.f32 %v6340, %v6213
          %v6342 = vadd.f32 %v6341, %v6214
          %v6343 = vadd.f32 %v6342, %v6215
          %v6344 = vadd.f32 %v6343, %v6216
          %v6345 = vadd.f32 %v6344, %v6217
          %v6346 = vadd.f32 %v6345, %v6218
          %v6347 = vadd.f32 %v6346, %v6219
          %v6348 = vadd.f32 %v6347, %v6220
          %v6349 = vadd.f32 %v6348, %v6221
          %v6350 = vadd.f32 %v6349, %v6222
          %v6351 = vadd.f32 %v6350, %v6223
          %v6352 = vadd.f32 %v6351, %v6224
          %v6353 = vadd.f32 %v6352, %v6225
          %v6354 = vadd.f32 %v6353, %v6226
          %v6355 = vadd.f32 %v6354, %v6227
          %v6356 = vadd.f32 %v6355, %v6228
          %v6357 = vadd.f32 %v6356, %v6229
          %v6358 = vadd.f32 %v6357, %v6230
          %v6359 = vadd.f32 %v6358, %v6231
          %v6360 = vadd.f32 %v6359, %v6232
          %v6361 = vadd.f32 %v6360, %v6233
          %v6362 = vadd.f32 %v6361, %v6234
          %v6363 = vadd.f32 %v6362, %v6235
          %v6364 = vadd.f32 %v6363, %v6236
          %v6365 = vadd.f32 %v6364, %v6237
          %v6366 = vadd.f32 %v6365, %v6238
          %v6367 = vadd.f32 %v6366, %v6239
          %v6368 = vadd.f32 %v6367, %v6240
          %v6369 = vadd.f32 %v6368, %v6241
          %v6370 = vadd.f32 %v6369, %v6242
          %v6371 = vadd.f32 %v6370, %v6243
          %v6372 = vadd.f32 %v6371, %v6244
          %v6373 = vadd.f32 %v6372, %v6245
          %v6374 = vadd.f32 %v6373, %v6246
          %v6375 = vadd.f32 %v6374, %v6247
          %v6376 = vadd.f32 %v6375, %v6248
          %v6377 = vadd.f32 %v6376, %v6249
          %v6378 = vadd.f32 %v6377, %v6250
          %v6379 = vadd.f32 %v6378, %v6251
          %v6380 = vadd.f32 %v6379, %v6252
          %v6381 = vadd.f32 %v6380, %v6253
          %v6382 = vadd.f32 %v6381, %v6254
          %v6383 = vadd.f32 %v6382, %v6255
          %v6384 = vadd.f32 %v6383, %v6256
          %v6385 = vadd.f32 %v6384, %v6257
          %v6386 = vadd.f32 %v6385, %v6258
          %v6387 = vadd.f32 %v6386, %v6259
          %v6388 = vadd.f32 %v6387, %v6260
          %v6389 = vadd.f32 %v6388, %v6261
          %v6390 = vadd.f32 %v6389, %v6262
          %v6391 = vadd.f32 %v6390, %v6263
          %v6392 = vadd.f32 %v6391, %v6264
          %v6393 = vadd.f32 %v6392, %v6265
          %v6394 = vadd.f32 %v6393, %v6266
          %v6395 = vadd.f32 %v6394, %v6267
          %v6396 = vadd.f32 %v6395, %v6268
          %v6397 = vadd.f32 %v6396, %v6269
          %v6398 = vadd.f32 %v6397, %v6270
          %v6399 = vadd.f32 %v6398, %v6271
          %v6400 = vadd.f32 %v6399, %v6272
          %v6401 = vadd.f32 %v6400, %v6273
          %v6402 = vadd.f32 %v6401, %v6274
          %v6403 = vadd.f32 %v6402, %v6275
          %v6404 = vadd.f32 %v6403, %v6276
          %v6405 = vadd.f32 %v6404, %v6277
          %v6406 = vadd.f32 %v6405, %v6278
          %v6407 = vadd.f32 %v6406, %v6279
          %v6408 = vadd.f32 %v6407, %v6280
          %v6409 = vadd.f32 %v6408, %v6281
          %v6410 = vadd.f32 %v6409, %v6282
          %v6411 = vadd.f32 %v6410, %v6283
          %v6412 = vadd.f32 %v6411, %v6284
          %v6413 = vadd.f32 %v6412, %v6285
          %v6414 = vadd.f32 %v6413, %v6286
          %v6415 = vadd.f32 %v6414, %v6287
          %v6416 = vadd.f32 %v6415, %v6288
          %v6417 = vadd.f32 %v6416, %v6289
          %v6418 = vadd.f32 %v6417, %v6290
          %v6419 = vadd.f32 %v6418, %v6291
          %v6420 = vadd.f32 %v6419, %v6292
          %v6421 = vadd.f32 %v6420, %v6293
          %v6422 = vadd.f32 %v6421, %v6294
          %v6423 = vadd.f32 %v6422, %v6295
          %v6424 = vadd.f32 %v6423, %v6296
          %v6425 = vadd.f32 %v6424, %v6297
          %v6426 = vadd.f32 %v6425, %v6298
          %v6427 = vadd.f32 %v6426, %v6299
          %v6428 = vadd.f32 %v6427, %v6300
          %v6429 = vadd.f32 %v6428, %v6301
          %v6430 = vadd.f32 %v6429, %v6302
          %v6431 = vadd.f32 %v6430, %v6303
          %v6432 = vadd.f32 %v6431, %v6304
          %v6433 = vadd.f32 %v6432, %v6305
          %v6434 = vadd.f32 %v6433, %v6306
          %v6435 = vadd.f32 %v6434, %v6307
          %v6436 = vadd.f32 %v6435, %v6308
          %v6437 = vadd.f32 %v6436, %v6309
          %v6438 = vadd.f32 %v6437, %v6310
          %v6439 = vadd.f32 %v6438, %v6311
          %v6440 = vadd.f32 %v6439, %v6312
          %v6441 = vadd.f32 %v6440, %v6313
          %v6442 = vadd.f32 %v6441, %v6314
          %v6443 = vadd.f32 %v6442, %v6315
          %v6444 = vadd.f32 %v6443, %v6316
          %v6445 = vadd.f32 %v6444, %v6317
          %v6446 = vadd.f32 %v6445, %v6318
          %6447 = vadd.xlane.f32.xlu0 %v6446
          %v6448 = vpop.xlane.xlu0 %6447
          %v6449 = vrot.slane %v6448, 4
          %v6450 = vadd.f32 %v6448, %v6449
          %v6451 = vrot.slane %v6450, 2
          %v6452 = vadd.f32 %v6450, %v6451
          %v6453 = vrot.slane %v6452, 1
          %v6454 = vadd.f32 %v6452, %v6453
          %s6455 = vtos %v6454
          %s6456 = sadd.f32 %s6319, %s6455
          %s6457 = scalar_lea.smem [#allocation2], 0
          %6458 = sst [smem:[%s6457]] %s6456
        $region44: #{tpu_custom_call.1} parent=31 // pred_fallthru
          _
        // Predicated region
        $region45: #{tpu_custom_call.1} parent=31 // pred_check
          %p6459 = pneg %p234
        $region46: #{tpu_custom_call.1} parent=31 // pred_check_branch
          %6461 = sbr.rel (%p6459) target = $region48
        $region47: #{tpu_custom_call.1} parent=31 // pred_region
          %v6462 = vlaneseq
          %v6463 = vand.u32 %v6462, 127
          %vm6464 = vcmp.eq.s32.totalorder %v6463, 0
          %s6465 = sld [smem:[#allocation2]]
          %v6466 = vstv %s6465
          %v6467 = vsel %vm6464, %v6466, 0.0
          %vm6468 = vcmp.eq.s32.totalorder %v6463, 1
          %s6469 = sld [smem:[#allocation2 + $0x1]]
          %v6470 = vstv %s6469
          %v6471 = vsel %vm6468, %v6470, 0.0
          %v6472 = vadd.f32 %v6467, %v6471
          %vm6473 = vcmp.eq.s32.totalorder %v6463, 2
          %s6474 = sld [smem:[#allocation2 + $0x2]]
          %v6475 = vstv %s6474
          %v6476 = vsel %vm6473, %v6475, 0.0
          %v6477 = vadd.f32 %v6472, %v6476
          %6478 = vst [vmem:[%s210] sm:$0xff] %v6477
        $region48: #{tpu_custom_call.1} parent=31 // pred_fallthru
          _
        %s6479 = sand.u32 %s117, 1
        %s6480 = scalar_lea.sflag [#allocation6], %s6479
        %s6481 = sand.u32 %s117, 1
        %s6482 = smul.addr %s6481, 8
        %s6483 = scalar_lea.vmem [#allocation5], %s6482
        // Predicated region
        $region49: #{tpu_custom_call.1} parent=31 // pred_check
          %p6484 = pneg %p127
        $region50: #{tpu_custom_call.1} parent=31 // pred_check_branch
          %6486 = sbr.rel (%p6484) target = $region52
        $region51: #{tpu_custom_call.1} parent=31 // pred_region
          %s6488 = ssub.s32 128, 128
          %6489 = vsyncadd %s6480, %s6488
          %s6490 = smul.addr %s23, 128
          %s6491 = scalar_lea.hbm %s4, %s6490
          %s6493 = sshll.u32 %s6483, 4
          %s6494 = int_to_ptr.vmem [resolvable:$true] %s6493
          %6496 = dma.vmem_to_hbm [thread:$0]  %s6494, 128, %s6491, %s6480
        $region52: #{tpu_custom_call.1} parent=31 // pred_fallthru
          _
      $region32: #{tpu_custom_call.1} parent=5 // pred_fallthru
        _
      %p6497 = scmp.le.s32.totalorder 2, %s14
      // Predicated region
      $region53: #{tpu_custom_call.1} parent=5 // pred_check
        %p6498 = pneg %p6497
      $region54: #{tpu_custom_call.1} parent=5 // pred_check_branch
        %6500 = sbr.rel (%p6498) target = $region56
      $region55: #{tpu_custom_call.1} parent=5 // pred_region
        %s6501 = ssub.s32 %s14, 2
        // Predicated region
        $region57: #{tpu_custom_call.1} parent=55 // pred_check
          %p6502 = pneg %p133
        $region58: #{tpu_custom_call.1} parent=55 // pred_check_branch
          %6504 = sbr.rel (%p6502) target = $region60
        $region59: #{tpu_custom_call.1} parent=55 // pred_region
          %s6505 = sand.u32 %s118, 1
          %s6506 = scalar_lea.sflag [#allocation6], %s6505
          %s6507 = sand.u32 %s118, 1
          %s6508 = smul.addr %s6507, 8
          %s6509 = scalar_lea.vmem [#allocation5], %s6508
          %6510 = dma.done %s6506, 128
        $region60: #{tpu_custom_call.1} parent=55 // pred_fallthru
          _
      $region56: #{tpu_custom_call.1} parent=5 // pred_fallthru
        _
    $region6: #{tpu_custom_call.1} parent=1 // loop_footer
      %s18 = sadd.s32 1, %s14
    $region7: #{tpu_custom_call.1} parent=1 // loop_footer_branch
      %13 = sbr.rel target = $region3
    $region8: #{tpu_custom_call.1} parent=1 // loop_exit
      _
    %6511 = vsyncpa [#allocation6], 1
    %s6512 = scalar_lea.sflag [#allocation6], 1
    %6513 = vsyncpa %s6512, 1

</llo_original>
